<compile_context>
chip_gen: v5e
topology: v5e:2x2
jax: 0.10.0
libtpu: 0.0.40
codegen_flags: <defaults>
</compile_context>

<pallas_src>
import jax
import jax.numpy as jnp
from jax import lax
from jax.experimental import pallas as pl
from jax.experimental.pallas import tpu as pltpu
import numpy as np


def _make_resconv_kernel(H, W, C):
    """One batch element: relu -> 3 pre-shifted bf16 copies -> 9 accumulating tap matmuls."""
    TM = 8 if H % 8 == 0 else H          # image rows per accumulator chunk (acc ~16 vregs)

    def kernel(x_ref, w_ref, gb_ref, o_ref, xs_ref):
        # x_ref : (1, H, W, C) f32          -- one NHWC batch element (single HBM read)
        # w_ref : (9, C, C)   bf16          -- tanh(gate) * conv weights, tap-major
        # gb_ref: (1, C)      f32           -- tanh(gate) * bias
        # o_ref : (1, H, W, C) f32          -- output block
        # xs_ref: VMEM (3, H+2, W, C) bf16  -- kx-pre-shifted, H-padded relu(x)

        xr = jnp.maximum(x_ref[0], 0.0)                       # (H, W, C) f32, norm='none'
        col = lax.broadcasted_iota(jnp.int32, (W, C), 0)      # sublane (W) index

        # Three kx-shifted copies: xs[kx][h+1, w, :] = relu(x)[h, w+kx-1, :] (zero outside).
        # pltpu.roll is a cyclic sublane rotate (XLU slot); the single wrapped-around
        # column is zeroed with a select.  Shifting is done ONCE here instead of per tap.
        xs_ref[1, 1:H + 1] = xr.astype(jnp.bfloat16)
        xs_ref[0, 1:H + 1] = jnp.where(
            col >= 1, pltpu.roll(xr, 1, axis=1), 0.0).astype(jnp.bfloat16)
        xs_ref[2, 1:H + 1] = jnp.where(                       # shift W-1 == cyclic shift -1
            col <= W - 2, pltpu.roll(xr, W - 1, axis=1), 0.0).astype(jnp.bfloat16)

        # Zero only the two H-border rows (re-written every step on purpose: the grid
        # axis is "parallel", so no step may rely on a previous step's scratch state).
        zrow = jnp.zeros((3, W, C), jnp.bfloat16)
        xs_ref[:, 0] = zrow
        xs_ref[:, H + 1] = zrow

        # 3x3 conv as 9 accumulating tap matmuls.  Every LHS is a leading-axis slice of
        # the pre-shifted scratch -> aligned, no relayouts; bf16 operands, f32 accumulate.
        for r0 in range(0, H, TM):
            acc = jnp.zeros((TM * W, C), jnp.float32)
            for ky in range(3):
                for kx in range(3):
                    lhs = xs_ref[kx, r0 + ky:r0 + ky + TM].reshape(TM * W, C)
                    acc = acc + jnp.dot(lhs, w_ref[ky * 3 + kx],
                                        preferred_element_type=jnp.float32)
            # y = x + tanh(gate)*conv + tanh(gate)*bias  (gate & bias folds in wrapper)
            o_ref[0, r0:r0 + TM] = (x_ref[0, r0:r0 + TM]
                                    + acc.reshape(TM, W, C)
                                    + gb_ref[...]).astype(o_ref.dtype)

    return kernel


def resconv_forward(x_nchw, w_oihw, bias, gate):
    """ResConv forward.  x_nchw: (B,C,H,W) f32, w_oihw: (C,C,3,3), bias: (C,), gate: scalar."""
    B, C, H, W = x_nchw.shape
    assert w_oihw.shape == (C, C, 3, 3), "ResConv residual requires C_in == C_out"
    assert C % 128 == 0, "kernel assumes a lane-dense channel dim (C % 128 == 0)"

    # Wrapper glue (cheap, done once): NHWC layout, tap-major weights with tanh(gate)
    # folded in, and tanh(gate)*bias.
    g = jnp.tanh(jnp.asarray(gate, jnp.float32))
    x = jnp.transpose(x_nchw, (0, 2, 3, 1))                            # (B, H, W, C)
    w9 = (jnp.transpose(w_oihw, (2, 3, 1, 0))                          # (ky, kx, Cin, Cout)
          .reshape(9, C, C) * g).astype(jnp.bfloat16)                  # gate folded, bf16
    gb = (g * bias.astype(jnp.float32)).reshape(1, C)                  # tanh(gate) * bias

    out = pl.pallas_call(
        _make_resconv_kernel(H, W, C),
        out_shape=jax.ShapeDtypeStruct((B, H, W, C), jnp.float32),
        grid=(B,),
        in_specs=[
            pl.BlockSpec((1, H, W, C), lambda b: (b, 0, 0, 0)),        # x (single HBM read)
            pl.BlockSpec((9, C, C), lambda b: (0, 0, 0)),              # gated weights
            pl.BlockSpec((1, C), lambda b: (0, 0)),                    # gated bias
        ],
        out_specs=pl.BlockSpec((1, H, W, C), lambda b: (b, 0, 0, 0)),
        scratch_shapes=[
            pltpu.VMEM((3, H + 2, W, C), jnp.bfloat16),                # pre-shifted relu(x)
        ],
        compiler_params=pltpu.CompilerParams(
            dimension_semantics=("parallel",)),                        # v7x: 2 TCs over batch
    )(x, w9, gb)

    return jnp.transpose(out, (0, 3, 1, 2))                            # back to NCHW


def resconv_reference(x_nchw, w_oihw, bias, gate):
    """Pure-JAX f32 reference of the PyTorch forward (NCHW)."""
    y = jax.nn.relu(x_nchw)
    conv = lax.conv_general_dilated(
        y, w_oihw, window_strides=(1, 1), padding=((1, 1), (1, 1)),
        dimension_numbers=("NCHW", "OIHW", "NCHW"))
    conv = conv + bias.reshape(1, -1, 1, 1)
    return x_nchw + jnp.tanh(gate) * conv


if __name__ == "__main__":
    # C=128 keeps the channel (lane) dim fully dense; ResConv needs C_in == C_out.
    B, C, H, W = 2, 128, 16, 16

    key = jax.random.PRNGKey(0)
    k_x, k_w, k_b = jax.random.split(key, 3)

    x = jax.random.normal(k_x, (B, C, H, W), dtype=jnp.float32)
    # Conv2d weight (C_out, C_in, 3, 3) and bias (C_out,), deterministic init.
    w = jax.random.normal(k_w, (C, C, 3, 3), dtype=jnp.float32) * 0.05
    b = jax.random.normal(k_b, (C,), dtype=jnp.float32) * 0.1
    # The module initializes the gate to 0.0 (which zeroes the conv branch); use a
    # nonzero deterministic value so the conv path is actually exercised.
    gate = jnp.float32(0.3)

    out = jax.block_until_ready(resconv_forward(x, w, b, gate))
    ref = jax.block_until_ready(resconv_reference(x, w, b, gate))

    # bf16 MXU operands with f32 accumulation -> compare at bf16-level tolerance.
    np.testing.assert_allclose(np.asarray(out), np.asarray(ref),
                               rtol=2e-2, atol=2e-2)
    print("KERNEL_OK")
</pallas_src>

<mosaic_0001>
module attributes {stable_mosaic.version = 11 : i64} {
  func.func @kernel(%arg0: i32, %arg1: memref<1x16x16x128xf32, #tpu.memory_space<vmem>>, %arg2: memref<9x128x128xbf16, #tpu.memory_space<vmem>>, %arg3: memref<1x128xf32, #tpu.memory_space<vmem>>, %arg4: memref<1x16x16x128xf32, #tpu.memory_space<vmem>>, %arg5: memref<3x18x16x128xbf16, #tpu.memory_space<vmem>>) attributes {dimension_semantics = [#tpu.dimension_semantics<parallel>], iteration_bounds = array<i64: 2>, scalar_prefetch = 0 : i64, scratch_operands = 1 : i64, tpu.core_type = #tpu.core_type<tc>, window_params = [{transform_indices = @transform_0, window_bounds = array<i64: 1, 16, 16, 128>}, {pipeline_mode = #tpu.pipeline_mode<synchronous>, transform_indices = @transform_1, window_bounds = array<i64: 9, 128, 128>}, {pipeline_mode = #tpu.pipeline_mode<synchronous>, transform_indices = @transform_2, window_bounds = array<i64: 1, 128>}, {transform_indices = @transform_3, window_bounds = array<i64: 1, 16, 16, 128>}]} {
    %c0 = arith.constant 0 : index
    %c0_0 = arith.constant 0 : index
    %c0_1 = arith.constant 0 : index
    %c0_2 = arith.constant 0 : index
    %0 = vector.load %arg1[%c0, %c0_0, %c0_1, %c0_2] : memref<1x16x16x128xf32, #tpu.memory_space<vmem>>, vector<1x16x16x128xf32>
    %1 = vector.shape_cast %0 : vector<1x16x16x128xf32> to vector<16x16x128xf32>
    %cst = arith.constant 0.000000e+00 : f32
    %2 = vector.broadcast %cst : f32 to vector<16x16x128xf32>
    %3 = arith.maximumf %1, %2 : vector<16x16x128xf32>
    %4 = tpu.iota {dimensions = array<i32: 0>} : vector<16x128xi32>
    %5 = arith.truncf %3 : vector<16x16x128xf32> to vector<16x16x128xbf16>
    %c1 = arith.constant 1 : index
    %c1_3 = arith.constant 1 : index
    %c0_4 = arith.constant 0 : index
    %c0_5 = arith.constant 0 : index
    %6 = vector.load %arg5[%c1, %c1_3, %c0_4, %c0_5] : memref<3x18x16x128xbf16, #tpu.memory_space<vmem>>, vector<1x16x16x128xbf16>
    %7 = vector.shape_cast %6 : vector<1x16x16x128xbf16> to vector<16x16x128xbf16>
    %8 = vector.shape_cast %5 : vector<16x16x128xbf16> to vector<1x16x16x128xbf16>
    tpu.vector_store %arg5[%c1, %c1_3, %c0_4, %c0_5], %8 {strides = array<i32>} : memref<3x18x16x128xbf16, #tpu.memory_space<vmem>>, vector<1x16x16x128xbf16>,
    %c1_i32 = arith.constant 1 : i32
    %9 = vector.broadcast %c1_i32 : i32 to vector<16x128xi32>
    %10 = arith.cmpi sge, %4, %9 : vector<16x128xi32>
    %c1_i32_6 = arith.constant 1 : i32
    %11 = tpu.dynamic_rotate %3 by %c1_i32_6 dim 1 : vector<16x16x128xf32>, i32 -> vector<16x16x128xf32>
    %cst_7 = arith.constant 0.000000e+00 : f32
    %12 = vector.shape_cast %10 : vector<16x128xi1> to vector<1x16x128xi1>
    %13 = vector.broadcast %12 : vector<1x16x128xi1> to vector<16x16x128xi1>
    %14 = vector.broadcast %cst_7 : f32 to vector<16x16x128xf32>
    %15 = arith.select %13, %11, %14 : vector<16x16x128xi1>, vector<16x16x128xf32>
    %16 = arith.truncf %15 : vector<16x16x128xf32> to vector<16x16x128xbf16>
    %c0_8 = arith.constant 0 : index
    %c1_9 = arith.constant 1 : index
    %c0_10 = arith.constant 0 : index
    %c0_11 = arith.constant 0 : index
    %17 = vector.load %arg5[%c0_8, %c1_9, %c0_10, %c0_11] : memref<3x18x16x128xbf16, #tpu.memory_space<vmem>>, vector<1x16x16x128xbf16>
    %18 = vector.shape_cast %17 : vector<1x16x16x128xbf16> to vector<16x16x128xbf16>
    %19 = vector.shape_cast %16 : vector<16x16x128xbf16> to vector<1x16x16x128xbf16>
    tpu.vector_store %arg5[%c0_8, %c1_9, %c0_10, %c0_11], %19 {strides = array<i32>} : memref<3x18x16x128xbf16, #tpu.memory_space<vmem>>, vector<1x16x16x128xbf16>,
    %c14_i32 = arith.constant 14 : i32
    %20 = vector.broadcast %c14_i32 : i32 to vector<16x128xi32>
    %21 = arith.cmpi sle, %4, %20 : vector<16x128xi32>
    %c15_i32 = arith.constant 15 : i32
    %22 = tpu.dynamic_rotate %3 by %c15_i32 dim 1 : vector<16x16x128xf32>, i32 -> vector<16x16x128xf32>
    %cst_12 = arith.constant 0.000000e+00 : f32
    %23 = vector.shape_cast %21 : vector<16x128xi1> to vector<1x16x128xi1>
    %24 = vector.broadcast %23 : vector<1x16x128xi1> to vector<16x16x128xi1>
    %25 = vector.broadcast %cst_12 : f32 to vector<16x16x128xf32>
    %26 = arith.select %24, %22, %25 : vector<16x16x128xi1>, vector<16x16x128xf32>
    %27 = arith.truncf %26 : vector<16x16x128xf32> to vector<16x16x128xbf16>
    %c2 = arith.constant 2 : index
    %c1_13 = arith.constant 1 : index
    %c0_14 = arith.constant 0 : index
    %c0_15 = arith.constant 0 : index
    %28 = vector.load %arg5[%c2, %c1_13, %c0_14, %c0_15] : memref<3x18x16x128xbf16, #tpu.memory_space<vmem>>, vector<1x16x16x128xbf16>
    %29 = vector.shape_cast %28 : vector<1x16x16x128xbf16> to vector<16x16x128xbf16>
    %30 = vector.shape_cast %27 : vector<16x16x128xbf16> to vector<1x16x16x128xbf16>
    tpu.vector_store %arg5[%c2, %c1_13, %c0_14, %c0_15], %30 {strides = array<i32>} : memref<3x18x16x128xbf16, #tpu.memory_space<vmem>>, vector<1x16x16x128xbf16>,
    %cst_16 = arith.constant 0.000000e+00 : bf16
    %31 = vector.broadcast %cst_16 : bf16 to vector<3x16x128xbf16>
    %c0_17 = arith.constant 0 : index
    %c0_18 = arith.constant 0 : index
    %c0_19 = arith.constant 0 : index
    %c0_20 = arith.constant 0 : index
    %32 = vector.load %arg5[%c0_17, %c0_18, %c0_19, %c0_20] : memref<3x18x16x128xbf16, #tpu.memory_space<vmem>>, vector<3x1x16x128xbf16>
    %33 = vector.shape_cast %32 : vector<3x1x16x128xbf16> to vector<3x16x128xbf16>
    %34 = vector.shape_cast %31 : vector<3x16x128xbf16> to vector<3x1x16x128xbf16>
    tpu.vector_store %arg5[%c0_17, %c0_18, %c0_19, %c0_20], %34 {strides = array<i32>} : memref<3x18x16x128xbf16, #tpu.memory_space<vmem>>, vector<3x1x16x128xbf16>,
    %c0_21 = arith.constant 0 : index
    %c17 = arith.constant 17 : index
    %c0_22 = arith.constant 0 : index
    %c0_23 = arith.constant 0 : index
    %35 = vector.load %arg5[%c0_21, %c17, %c0_22, %c0_23] : memref<3x18x16x128xbf16, #tpu.memory_space<vmem>>, vector<3x1x16x128xbf16>
    %36 = vector.shape_cast %35 : vector<3x1x16x128xbf16> to vector<3x16x128xbf16>
    %37 = vector.shape_cast %31 : vector<3x16x128xbf16> to vector<3x1x16x128xbf16>
    tpu.vector_store %arg5[%c0_21, %c17, %c0_22, %c0_23], %37 {strides = array<i32>} : memref<3x18x16x128xbf16, #tpu.memory_space<vmem>>, vector<3x1x16x128xbf16>,
    %cst_24 = arith.constant 0.000000e+00 : f32
    %38 = vector.broadcast %cst_24 : f32 to vector<128x128xf32>
    %c0_25 = arith.constant 0 : index
    %c0_26 = arith.constant 0 : index
    %c0_27 = arith.constant 0 : index
    %c0_28 = arith.constant 0 : index
    %39 = vector.load %arg5[%c0_25, %c0_26, %c0_27, %c0_28] : memref<3x18x16x128xbf16, #tpu.memory_space<vmem>>, vector<1x8x16x128xbf16>
    %40 = vector.shape_cast %39 : vector<1x8x16x128xbf16> to vector<8x16x128xbf16>
    %41 = vector.shape_cast %40 : vector<8x16x128xbf16> to vector<128x128xbf16>
    %c0_29 = arith.constant 0 : index
    %c0_30 = arith.constant 0 : index
    %c0_31 = arith.constant 0 : index
    %42 = vector.load %arg2[%c0_29, %c0_30, %c0_31] : memref<9x128x128xbf16, #tpu.memory_space<vmem>>, vector<1x128x128xbf16>
    %43 = vector.shape_cast %42 : vector<1x128x128xbf16> to vector<128x128xbf16>
    %cst_32 = arith.constant dense<0.000000e+00> : vector<128x128xf32>
    %44 = tpu.matmul %41, %43, %cst_32 {dimension_numbers = #tpu.dot_dimension_numbers<[1], [0], [0], [1], [0, 0, 1, 1], [], []>} : vector<128x128xbf16>, vector<128x128xbf16>, vector<128x128xf32> -> vector<128x128xf32>
    %45 = arith.addf %38, %44 : vector<128x128xf32>
    %c1_33 = arith.constant 1 : index
    %c0_34 = arith.constant 0 : index
    %c0_35 = arith.constant 0 : index
    %c0_36 = arith.constant 0 : index
    %46 = vector.load %arg5[%c1_33, %c0_34, %c0_35, %c0_36] : memref<3x18x16x128xbf16, #tpu.memory_space<vmem>>, vector<1x8x16x128xbf16>
    %47 = vector.shape_cast %46 : vector<1x8x16x128xbf16> to vector<8x16x128xbf16>
    %48 = vector.shape_cast %47 : vector<8x16x128xbf16> to vector<128x128xbf16>
    %c1_37 = arith.constant 1 : index
    %c0_38 = arith.constant 0 : index
    %c0_39 = arith.constant 0 : index
    %49 = vector.load %arg2[%c1_37, %c0_38, %c0_39] : memref<9x128x128xbf16, #tpu.memory_space<vmem>>, vector<1x128x128xbf16>
    %50 = vector.shape_cast %49 : vector<1x128x128xbf16> to vector<128x128xbf16>
    %cst_40 = arith.constant dense<0.000000e+00> : vector<128x128xf32>
    %51 = tpu.matmul %48, %50, %cst_40 {dimension_numbers = #tpu.dot_dimension_numbers<[1], [0], [0], [1], [0, 0, 1, 1], [], []>} : vector<128x128xbf16>, vector<128x128xbf16>, vector<128x128xf32> -> vector<128x128xf32>
    %52 = arith.addf %45, %51 : vector<128x128xf32>
    %c2_41 = arith.constant 2 : index
    %c0_42 = arith.constant 0 : index
    %c0_43 = arith.constant 0 : index
    %c0_44 = arith.constant 0 : index
    %53 = vector.load %arg5[%c2_41, %c0_42, %c0_43, %c0_44] : memref<3x18x16x128xbf16, #tpu.memory_space<vmem>>, vector<1x8x16x128xbf16>
    %54 = vector.shape_cast %53 : vector<1x8x16x128xbf16> to vector<8x16x128xbf16>
    %55 = vector.shape_cast %54 : vector<8x16x128xbf16> to vector<128x128xbf16>
    %c2_45 = arith.constant 2 : index
    %c0_46 = arith.constant 0 : index
    %c0_47 = arith.constant 0 : index
    %56 = vector.load %arg2[%c2_45, %c0_46, %c0_47] : memref<9x128x128xbf16, #tpu.memory_space<vmem>>, vector<1x128x128xbf16>
    %57 = vector.shape_cast %56 : vector<1x128x128xbf16> to vector<128x128xbf16>
    %cst_48 = arith.constant dense<0.000000e+00> : vector<128x128xf32>
    %58 = tpu.matmul %55, %57, %cst_48 {dimension_numbers = #tpu.dot_dimension_numbers<[1], [0], [0], [1], [0, 0, 1, 1], [], []>} : vector<128x128xbf16>, vector<128x128xbf16>, vector<128x128xf32> -> vector<128x128xf32>
    %59 = arith.addf %52, %58 : vector<128x128xf32>
    %c0_49 = arith.constant 0 : index
    %c1_50 = arith.constant 1 : index
    %c0_51 = arith.constant 0 : index
    %c0_52 = arith.constant 0 : index
    %60 = vector.load %arg5[%c0_49, %c1_50, %c0_51, %c0_52] : memref<3x18x16x128xbf16, #tpu.memory_space<vmem>>, vector<1x8x16x128xbf16>
    %61 = vector.shape_cast %60 : vector<1x8x16x128xbf16> to vector<8x16x128xbf16>
    %62 = vector.shape_cast %61 : vector<8x16x128xbf16> to vector<128x128xbf16>
    %c3 = arith.constant 3 : index
    %c0_53 = arith.constant 0 : index
    %c0_54 = arith.constant 0 : index
    %63 = vector.load %arg2[%c3, %c0_53, %c0_54] : memref<9x128x128xbf16, #tpu.memory_space<vmem>>, vector<1x128x128xbf16>
    %64 = vector.shape_cast %63 : vector<1x128x128xbf16> to vector<128x128xbf16>
    %cst_55 = arith.constant dense<0.000000e+00> : vector<128x128xf32>
    %65 = tpu.matmul %62, %64, %cst_55 {dimension_numbers = #tpu.dot_dimension_numbers<[1], [0], [0], [1], [0, 0, 1, 1], [], []>} : vector<128x128xbf16>, vector<128x128xbf16>, vector<128x128xf32> -> vector<128x128xf32>
    %66 = arith.addf %59, %65 : vector<128x128xf32>
    %c1_56 = arith.constant 1 : index
    %c1_57 = arith.constant 1 : index
    %c0_58 = arith.constant 0 : index
    %c0_59 = arith.constant 0 : index
    %67 = vector.load %arg5[%c1_56, %c1_57, %c0_58, %c0_59] : memref<3x18x16x128xbf16, #tpu.memory_space<vmem>>, vector<1x8x16x128xbf16>
    %68 = vector.shape_cast %67 : vector<1x8x16x128xbf16> to vector<8x16x128xbf16>
    %69 = vector.shape_cast %68 : vector<8x16x128xbf16> to vector<128x128xbf16>
    %c4 = arith.constant 4 : index
    %c0_60 = arith.constant 0 : index
    %c0_61 = arith.constant 0 : index
    %70 = vector.load %arg2[%c4, %c0_60, %c0_61] : memref<9x128x128xbf16, #tpu.memory_space<vmem>>, vector<1x128x128xbf16>
    %71 = vector.shape_cast %70 : vector<1x128x128xbf16> to vector<128x128xbf16>
    %cst_62 = arith.constant dense<0.000000e+00> : vector<128x128xf32>
    %72 = tpu.matmul %69, %71, %cst_62 {dimension_numbers = #tpu.dot_dimension_numbers<[1], [0], [0], [1], [0, 0, 1, 1], [], []>} : vector<128x128xbf16>, vector<128x128xbf16>, vector<128x128xf32> -> vector<128x128xf32>
    %73 = arith.addf %66, %72 : vector<128x128xf32>
    %c2_63 = arith.constant 2 : index
    %c1_64 = arith.constant 1 : index
    %c0_65 = arith.constant 0 : index
    %c0_66 = arith.constant 0 : index
    %74 = vector.load %arg5[%c2_63, %c1_64, %c0_65, %c0_66] : memref<3x18x16x128xbf16, #tpu.memory_space<vmem>>, vector<1x8x16x128xbf16>
    %75 = vector.shape_cast %74 : vector<1x8x16x128xbf16> to vector<8x16x128xbf16>
    %76 = vector.shape_cast %75 : vector<8x16x128xbf16> to vector<128x128xbf16>
    %c5 = arith.constant 5 : index
    %c0_67 = arith.constant 0 : index
    %c0_68 = arith.constant 0 : index
    %77 = vector.load %arg2[%c5, %c0_67, %c0_68] : memref<9x128x128xbf16, #tpu.memory_space<vmem>>, vector<1x128x128xbf16>
    %78 = vector.shape_cast %77 : vector<1x128x128xbf16> to vector<128x128xbf16>
    %cst_69 = arith.constant dense<0.000000e+00> : vector<128x128xf32>
    %79 = tpu.matmul %76, %78, %cst_69 {dimension_numbers = #tpu.dot_dimension_numbers<[1], [0], [0], [1], [0, 0, 1, 1], [], []>} : vector<128x128xbf16>, vector<128x128xbf16>, vector<128x128xf32> -> vector<128x128xf32>
    %80 = arith.addf %73, %79 : vector<128x128xf32>
    %c0_70 = arith.constant 0 : index
    %c2_71 = arith.constant 2 : index
    %c0_72 = arith.constant 0 : index
    %c0_73 = arith.constant 0 : index
    %81 = vector.load %arg5[%c0_70, %c2_71, %c0_72, %c0_73] : memref<3x18x16x128xbf16, #tpu.memory_space<vmem>>, vector<1x8x16x128xbf16>
    %82 = vector.shape_cast %81 : vector<1x8x16x128xbf16> to vector<8x16x128xbf16>
    %83 = vector.shape_cast %82 : vector<8x16x128xbf16> to vector<128x128xbf16>
    %c6 = arith.constant 6 : index
    %c0_74 = arith.constant 0 : index
    %c0_75 = arith.constant 0 : index
    %84 = vector.load %arg2[%c6, %c0_74, %c0_75] : memref<9x128x128xbf16, #tpu.memory_space<vmem>>, vector<1x128x128xbf16>
    %85 = vector.shape_cast %84 : vector<1x128x128xbf16> to vector<128x128xbf16>
    %cst_76 = arith.constant dense<0.000000e+00> : vector<128x128xf32>
    %86 = tpu.matmul %83, %85, %cst_76 {dimension_numbers = #tpu.dot_dimension_numbers<[1], [0], [0], [1], [0, 0, 1, 1], [], []>} : vector<128x128xbf16>, vector<128x128xbf16>, vector<128x128xf32> -> vector<128x128xf32>
    %87 = arith.addf %80, %86 : vector<128x128xf32>
    %c1_77 = arith.constant 1 : index
    %c2_78 = arith.constant 2 : index
    %c0_79 = arith.constant 0 : index
    %c0_80 = arith.constant 0 : index
    %88 = vector.load %arg5[%c1_77, %c2_78, %c0_79, %c0_80] : memref<3x18x16x128xbf16, #tpu.memory_space<vmem>>, vector<1x8x16x128xbf16>
    %89 = vector.shape_cast %88 : vector<1x8x16x128xbf16> to vector<8x16x128xbf16>
    %90 = vector.shape_cast %89 : vector<8x16x128xbf16> to vector<128x128xbf16>
    %c7 = arith.constant 7 : index
    %c0_81 = arith.constant 0 : index
    %c0_82 = arith.constant 0 : index
    %91 = vector.load %arg2[%c7, %c0_81, %c0_82] : memref<9x128x128xbf16, #tpu.memory_space<vmem>>, vector<1x128x128xbf16>
    %92 = vector.shape_cast %91 : vector<1x128x128xbf16> to vector<128x128xbf16>
    %cst_83 = arith.constant dense<0.000000e+00> : vector<128x128xf32>
    %93 = tpu.matmul %90, %92, %cst_83 {dimension_numbers = #tpu.dot_dimension_numbers<[1], [0], [0], [1], [0, 0, 1, 1], [], []>} : vector<128x128xbf16>, vector<128x128xbf16>, vector<128x128xf32> -> vector<128x128xf32>
    %94 = arith.addf %87, %93 : vector<128x128xf32>
    %c2_84 = arith.constant 2 : index
    %c2_85 = arith.constant 2 : index
    %c0_86 = arith.constant 0 : index
    %c0_87 = arith.constant 0 : index
    %95 = vector.load %arg5[%c2_84, %c2_85, %c0_86, %c0_87] : memref<3x18x16x128xbf16, #tpu.memory_space<vmem>>, vector<1x8x16x128xbf16>
    %96 = vector.shape_cast %95 : vector<1x8x16x128xbf16> to vector<8x16x128xbf16>
    %97 = vector.shape_cast %96 : vector<8x16x128xbf16> to vector<128x128xbf16>
    %c8 = arith.constant 8 : index
    %c0_88 = arith.constant 0 : index
    %c0_89 = arith.constant 0 : index
    %98 = vector.load %arg2[%c8, %c0_88, %c0_89] : memref<9x128x128xbf16, #tpu.memory_space<vmem>>, vector<1x128x128xbf16>
    %99 = vector.shape_cast %98 : vector<1x128x128xbf16> to vector<128x128xbf16>
    %cst_90 = arith.constant dense<0.000000e+00> : vector<128x128xf32>
    %100 = tpu.matmul %97, %99, %cst_90 {dimension_numbers = #tpu.dot_dimension_numbers<[1], [0], [0], [1], [0, 0, 1, 1], [], []>} : vector<128x128xbf16>, vector<128x128xbf16>, vector<128x128xf32> -> vector<128x128xf32>
    %101 = arith.addf %94, %100 : vector<128x128xf32>
    %c0_91 = arith.constant 0 : index
    %c0_92 = arith.constant 0 : index
    %c0_93 = arith.constant 0 : index
    %c0_94 = arith.constant 0 : index
    %102 = vector.load %arg1[%c0_91, %c0_92, %c0_93, %c0_94] : memref<1x16x16x128xf32, #tpu.memory_space<vmem>>, vector<1x8x16x128xf32>
    %103 = vector.shape_cast %102 : vector<1x8x16x128xf32> to vector<8x16x128xf32>
    %104 = vector.shape_cast %101 : vector<128x128xf32> to vector<8x16x128xf32>
    %105 = arith.addf %103, %104 : vector<8x16x128xf32>
    %c0_95 = arith.constant 0 : index
    %c0_96 = arith.constant 0 : index
    %106 = vector.load %arg3[%c0_95, %c0_96] : memref<1x128xf32, #tpu.memory_space<vmem>>, vector<1x128xf32>
    %107 = vector.shape_cast %106 : vector<1x128xf32> to vector<1x1x128xf32>
    %108 = vector.broadcast %107 : vector<1x1x128xf32> to vector<8x16x128xf32>
    %109 = arith.addf %105, %108 : vector<8x16x128xf32>
    %c0_97 = arith.constant 0 : index
    %c0_98 = arith.constant 0 : index
    %c0_99 = arith.constant 0 : index
    %c0_100 = arith.constant 0 : index
    %110 = vector.load %arg4[%c0_97, %c0_98, %c0_99, %c0_100] : memref<1x16x16x128xf32, #tpu.memory_space<vmem>>, vector<1x8x16x128xf32>
    %111 = vector.shape_cast %110 : vector<1x8x16x128xf32> to vector<8x16x128xf32>
    %112 = vector.shape_cast %109 : vector<8x16x128xf32> to vector<1x8x16x128xf32>
    tpu.vector_store %arg4[%c0_97, %c0_98, %c0_99, %c0_100], %112 {strides = array<i32>} : memref<1x16x16x128xf32, #tpu.memory_space<vmem>>, vector<1x8x16x128xf32>,
    %cst_101 = arith.constant 0.000000e+00 : f32
    %113 = vector.broadcast %cst_101 : f32 to vector<128x128xf32>
    %c0_102 = arith.constant 0 : index
    %c8_103 = arith.constant 8 : index
    %c0_104 = arith.constant 0 : index
    %c0_105 = arith.constant 0 : index
    %114 = vector.load %arg5[%c0_102, %c8_103, %c0_104, %c0_105] : memref<3x18x16x128xbf16, #tpu.memory_space<vmem>>, vector<1x8x16x128xbf16>
    %115 = vector.shape_cast %114 : vector<1x8x16x128xbf16> to vector<8x16x128xbf16>
    %116 = vector.shape_cast %115 : vector<8x16x128xbf16> to vector<128x128xbf16>
    %c0_106 = arith.constant 0 : index
    %c0_107 = arith.constant 0 : index
    %c0_108 = arith.constant 0 : index
    %117 = vector.load %arg2[%c0_106, %c0_107, %c0_108] : memref<9x128x128xbf16, #tpu.memory_space<vmem>>, vector<1x128x128xbf16>
    %118 = vector.shape_cast %117 : vector<1x128x128xbf16> to vector<128x128xbf16>
    %cst_109 = arith.constant dense<0.000000e+00> : vector<128x128xf32>
    %119 = tpu.matmul %116, %118, %cst_109 {dimension_numbers = #tpu.dot_dimension_numbers<[1], [0], [0], [1], [0, 0, 1, 1], [], []>} : vector<128x128xbf16>, vector<128x128xbf16>, vector<128x128xf32> -> vector<128x128xf32>
    %120 = arith.addf %113, %119 : vector<128x128xf32>
    %c1_110 = arith.constant 1 : index
    %c8_111 = arith.constant 8 : index
    %c0_112 = arith.constant 0 : index
    %c0_113 = arith.constant 0 : index
    %121 = vector.load %arg5[%c1_110, %c8_111, %c0_112, %c0_113] : memref<3x18x16x128xbf16, #tpu.memory_space<vmem>>, vector<1x8x16x128xbf16>
    %122 = vector.shape_cast %121 : vector<1x8x16x128xbf16> to vector<8x16x128xbf16>
    %123 = vector.shape_cast %122 : vector<8x16x128xbf16> to vector<128x128xbf16>
    %c1_114 = arith.constant 1 : index
    %c0_115 = arith.constant 0 : index
    %c0_116 = arith.constant 0 : index
    %124 = vector.load %arg2[%c1_114, %c0_115, %c0_116] : memref<9x128x128xbf16, #tpu.memory_space<vmem>>, vector<1x128x128xbf16>
    %125 = vector.shape_cast %124 : vector<1x128x128xbf16> to vector<128x128xbf16>
    %cst_117 = arith.constant dense<0.000000e+00> : vector<128x128xf32>
    %126 = tpu.matmul %123, %125, %cst_117 {dimension_numbers = #tpu.dot_dimension_numbers<[1], [0], [0], [1], [0, 0, 1, 1], [], []>} : vector<128x128xbf16>, vector<128x128xbf16>, vector<128x128xf32> -> vector<128x128xf32>
    %127 = arith.addf %120, %126 : vector<128x128xf32>
    %c2_118 = arith.constant 2 : index
    %c8_119 = arith.constant 8 : index
    %c0_120 = arith.constant 0 : index
    %c0_121 = arith.constant 0 : index
    %128 = vector.load %arg5[%c2_118, %c8_119, %c0_120, %c0_121] : memref<3x18x16x128xbf16, #tpu.memory_space<vmem>>, vector<1x8x16x128xbf16>
    %129 = vector.shape_cast %128 : vector<1x8x16x128xbf16> to vector<8x16x128xbf16>
    %130 = vector.shape_cast %129 : vector<8x16x128xbf16> to vector<128x128xbf16>
    %c2_122 = arith.constant 2 : index
    %c0_123 = arith.constant 0 : index
    %c0_124 = arith.constant 0 : index
    %131 = vector.load %arg2[%c2_122, %c0_123, %c0_124] : memref<9x128x128xbf16, #tpu.memory_space<vmem>>, vector<1x128x128xbf16>
    %132 = vector.shape_cast %131 : vector<1x128x128xbf16> to vector<128x128xbf16>
    %cst_125 = arith.constant dense<0.000000e+00> : vector<128x128xf32>
    %133 = tpu.matmul %130, %132, %cst_125 {dimension_numbers = #tpu.dot_dimension_numbers<[1], [0], [0], [1], [0, 0, 1, 1], [], []>} : vector<128x128xbf16>, vector<128x128xbf16>, vector<128x128xf32> -> vector<128x128xf32>
    %134 = arith.addf %127, %133 : vector<128x128xf32>
    %c0_126 = arith.constant 0 : index
    %c9 = arith.constant 9 : index
    %c0_127 = arith.constant 0 : index
    %c0_128 = arith.constant 0 : index
    %135 = vector.load %arg5[%c0_126, %c9, %c0_127, %c0_128] : memref<3x18x16x128xbf16, #tpu.memory_space<vmem>>, vector<1x8x16x128xbf16>
    %136 = vector.shape_cast %135 : vector<1x8x16x128xbf16> to vector<8x16x128xbf16>
    %137 = vector.shape_cast %136 : vector<8x16x128xbf16> to vector<128x128xbf16>
    %c3_129 = arith.constant 3 : index
    %c0_130 = arith.constant 0 : index
    %c0_131 = arith.constant 0 : index
    %138 = vector.load %arg2[%c3_129, %c0_130, %c0_131] : memref<9x128x128xbf16, #tpu.memory_space<vmem>>, vector<1x128x128xbf16>
    %139 = vector.shape_cast %138 : vector<1x128x128xbf16> to vector<128x128xbf16>
    %cst_132 = arith.constant dense<0.000000e+00> : vector<128x128xf32>
    %140 = tpu.matmul %137, %139, %cst_132 {dimension_numbers = #tpu.dot_dimension_numbers<[1], [0], [0], [1], [0, 0, 1, 1], [], []>} : vector<128x128xbf16>, vector<128x128xbf16>, vector<128x128xf32> -> vector<128x128xf32>
    %141 = arith.addf %134, %140 : vector<128x128xf32>
    %c1_133 = arith.constant 1 : index
    %c9_134 = arith.constant 9 : index
    %c0_135 = arith.constant 0 : index
    %c0_136 = arith.constant 0 : index
    %142 = vector.load %arg5[%c1_133, %c9_134, %c0_135, %c0_136] : memref<3x18x16x128xbf16, #tpu.memory_space<vmem>>, vector<1x8x16x128xbf16>
    %143 = vector.shape_cast %142 : vector<1x8x16x128xbf16> to vector<8x16x128xbf16>
    %144 = vector.shape_cast %143 : vector<8x16x128xbf16> to vector<128x128xbf16>
    %c4_137 = arith.constant 4 : index
    %c0_138 = arith.constant 0 : index
    %c0_139 = arith.constant 0 : index
    %145 = vector.load %arg2[%c4_137, %c0_138, %c0_139] : memref<9x128x128xbf16, #tpu.memory_space<vmem>>, vector<1x128x128xbf16>
    %146 = vector.shape_cast %145 : vector<1x128x128xbf16> to vector<128x128xbf16>
    %cst_140 = arith.constant dense<0.000000e+00> : vector<128x128xf32>
    %147 = tpu.matmul %144, %146, %cst_140 {dimension_numbers = #tpu.dot_dimension_numbers<[1], [0], [0], [1], [0, 0, 1, 1], [], []>} : vector<128x128xbf16>, vector<128x128xbf16>, vector<128x128xf32> -> vector<128x128xf32>
    %148 = arith.addf %141, %147 : vector<128x128xf32>
    %c2_141 = arith.constant 2 : index
    %c9_142 = arith.constant 9 : index
    %c0_143 = arith.constant 0 : index
    %c0_144 = arith.constant 0 : index
    %149 = vector.load %arg5[%c2_141, %c9_142, %c0_143, %c0_144] : memref<3x18x16x128xbf16, #tpu.memory_space<vmem>>, vector<1x8x16x128xbf16>
    %150 = vector.shape_cast %149 : vector<1x8x16x128xbf16> to vector<8x16x128xbf16>
    %151 = vector.shape_cast %150 : vector<8x16x128xbf16> to vector<128x128xbf16>
    %c5_145 = arith.constant 5 : index
    %c0_146 = arith.constant 0 : index
    %c0_147 = arith.constant 0 : index
    %152 = vector.load %arg2[%c5_145, %c0_146, %c0_147] : memref<9x128x128xbf16, #tpu.memory_space<vmem>>, vector<1x128x128xbf16>
    %153 = vector.shape_cast %152 : vector<1x128x128xbf16> to vector<128x128xbf16>
    %cst_148 = arith.constant dense<0.000000e+00> : vector<128x128xf32>
    %154 = tpu.matmul %151, %153, %cst_148 {dimension_numbers = #tpu.dot_dimension_numbers<[1], [0], [0], [1], [0, 0, 1, 1], [], []>} : vector<128x128xbf16>, vector<128x128xbf16>, vector<128x128xf32> -> vector<128x128xf32>
    %155 = arith.addf %148, %154 : vector<128x128xf32>
    %c0_149 = arith.constant 0 : index
    %c10 = arith.constant 10 : index
    %c0_150 = arith.constant 0 : index
    %c0_151 = arith.constant 0 : index
    %156 = vector.load %arg5[%c0_149, %c10, %c0_150, %c0_151] : memref<3x18x16x128xbf16, #tpu.memory_space<vmem>>, vector<1x8x16x128xbf16>
    %157 = vector.shape_cast %156 : vector<1x8x16x128xbf16> to vector<8x16x128xbf16>
    %158 = vector.shape_cast %157 : vector<8x16x128xbf16> to vector<128x128xbf16>
    %c6_152 = arith.constant 6 : index
    %c0_153 = arith.constant 0 : index
    %c0_154 = arith.constant 0 : index
    %159 = vector.load %arg2[%c6_152, %c0_153, %c0_154] : memref<9x128x128xbf16, #tpu.memory_space<vmem>>, vector<1x128x128xbf16>
    %160 = vector.shape_cast %159 : vector<1x128x128xbf16> to vector<128x128xbf16>
    %cst_155 = arith.constant dense<0.000000e+00> : vector<128x128xf32>
    %161 = tpu.matmul %158, %160, %cst_155 {dimension_numbers = #tpu.dot_dimension_numbers<[1], [0], [0], [1], [0, 0, 1, 1], [], []>} : vector<128x128xbf16>, vector<128x128xbf16>, vector<128x128xf32> -> vector<128x128xf32>
    %162 = arith.addf %155, %161 : vector<128x128xf32>
    %c1_156 = arith.constant 1 : index
    %c10_157 = arith.constant 10 : index
    %c0_158 = arith.constant 0 : index
    %c0_159 = arith.constant 0 : index
    %163 = vector.load %arg5[%c1_156, %c10_157, %c0_158, %c0_159] : memref<3x18x16x128xbf16, #tpu.memory_space<vmem>>, vector<1x8x16x128xbf16>
    %164 = vector.shape_cast %163 : vector<1x8x16x128xbf16> to vector<8x16x128xbf16>
    %165 = vector.shape_cast %164 : vector<8x16x128xbf16> to vector<128x128xbf16>
    %c7_160 = arith.constant 7 : index
    %c0_161 = arith.constant 0 : index
    %c0_162 = arith.constant 0 : index
    %166 = vector.load %arg2[%c7_160, %c0_161, %c0_162] : memref<9x128x128xbf16, #tpu.memory_space<vmem>>, vector<1x128x128xbf16>
    %167 = vector.shape_cast %166 : vector<1x128x128xbf16> to vector<128x128xbf16>
    %cst_163 = arith.constant dense<0.000000e+00> : vector<128x128xf32>
    %168 = tpu.matmul %165, %167, %cst_163 {dimension_numbers = #tpu.dot_dimension_numbers<[1], [0], [0], [1], [0, 0, 1, 1], [], []>} : vector<128x128xbf16>, vector<128x128xbf16>, vector<128x128xf32> -> vector<128x128xf32>
    %169 = arith.addf %162, %168 : vector<128x128xf32>
    %c2_164 = arith.constant 2 : index
    %c10_165 = arith.constant 10 : index
    %c0_166 = arith.constant 0 : index
    %c0_167 = arith.constant 0 : index
    %170 = vector.load %arg5[%c2_164, %c10_165, %c0_166, %c0_167] : memref<3x18x16x128xbf16, #tpu.memory_space<vmem>>, vector<1x8x16x128xbf16>
    %171 = vector.shape_cast %170 : vector<1x8x16x128xbf16> to vector<8x16x128xbf16>
    %172 = vector.shape_cast %171 : vector<8x16x128xbf16> to vector<128x128xbf16>
    %c8_168 = arith.constant 8 : index
    %c0_169 = arith.constant 0 : index
    %c0_170 = arith.constant 0 : index
    %173 = vector.load %arg2[%c8_168, %c0_169, %c0_170] : memref<9x128x128xbf16, #tpu.memory_space<vmem>>, vector<1x128x128xbf16>
    %174 = vector.shape_cast %173 : vector<1x128x128xbf16> to vector<128x128xbf16>
    %cst_171 = arith.constant dense<0.000000e+00> : vector<128x128xf32>
    %175 = tpu.matmul %172, %174, %cst_171 {dimension_numbers = #tpu.dot_dimension_numbers<[1], [0], [0], [1], [0, 0, 1, 1], [], []>} : vector<128x128xbf16>, vector<128x128xbf16>, vector<128x128xf32> -> vector<128x128xf32>
    %176 = arith.addf %169, %175 : vector<128x128xf32>
    %c0_172 = arith.constant 0 : index
    %c8_173 = arith.constant 8 : index
    %c0_174 = arith.constant 0 : index
    %c0_175 = arith.constant 0 : index
    %177 = vector.load %arg1[%c0_172, %c8_173, %c0_174, %c0_175] : memref<1x16x16x128xf32, #tpu.memory_space<vmem>>, vector<1x8x16x128xf32>
    %178 = vector.shape_cast %177 : vector<1x8x16x128xf32> to vector<8x16x128xf32>
    %179 = vector.shape_cast %176 : vector<128x128xf32> to vector<8x16x128xf32>
    %180 = arith.addf %178, %179 : vector<8x16x128xf32>
    %c0_176 = arith.constant 0 : index
    %c0_177 = arith.constant 0 : index
    %181 = vector.load %arg3[%c0_176, %c0_177] : memref<1x128xf32, #tpu.memory_space<vmem>>, vector<1x128xf32>
    %182 = vector.shape_cast %181 : vector<1x128xf32> to vector<1x1x128xf32>
    %183 = vector.broadcast %182 : vector<1x1x128xf32> to vector<8x16x128xf32>
    %184 = arith.addf %180, %183 : vector<8x16x128xf32>
    %c0_178 = arith.constant 0 : index
    %c8_179 = arith.constant 8 : index
    %c0_180 = arith.constant 0 : index
    %c0_181 = arith.constant 0 : index
    %185 = vector.load %arg4[%c0_178, %c8_179, %c0_180, %c0_181] : memref<1x16x16x128xf32, #tpu.memory_space<vmem>>, vector<1x8x16x128xf32>
    %186 = vector.shape_cast %185 : vector<1x8x16x128xf32> to vector<8x16x128xf32>
    %187 = vector.shape_cast %184 : vector<8x16x128xf32> to vector<1x8x16x128xf32>
    tpu.vector_store %arg4[%c0_178, %c8_179, %c0_180, %c0_181], %187 {strides = array<i32>} : memref<1x16x16x128xf32, #tpu.memory_space<vmem>>, vector<1x8x16x128xf32>,
    return
  }
  func.func @transform_0(%arg0: i32) -> (i32, i32, i32, i32) {
    %c0_i32 = arith.constant 0 : i32
    %c0_i32_0 = arith.constant 0 : i32
    %c0_i32_1 = arith.constant 0 : i32
    %c0_i32_2 = arith.constant 0 : i32
    return %arg0, %c0_i32, %c0_i32_0, %c0_i32_1 : i32, i32, i32, i32
  }
  func.func @transform_1(%arg0: i32) -> (i32, i32, i32) {
    %c0_i32 = arith.constant 0 : i32
    %c0_i32_0 = arith.constant 0 : i32
    %c0_i32_1 = arith.constant 0 : i32
    %c0_i32_2 = arith.constant 0 : i32
    return %c0_i32, %c0_i32_0, %c0_i32_1 : i32, i32, i32
  }
  func.func @transform_2(%arg0: i32) -> (i32, i32) {
    %c0_i32 = arith.constant 0 : i32
    %c0_i32_0 = arith.constant 0 : i32
    %c0_i32_1 = arith.constant 0 : i32
    return %c0_i32, %c0_i32_0 : i32, i32
  }
  func.func @transform_3(%arg0: i32) -> (i32, i32, i32, i32) {
    %c0_i32 = arith.constant 0 : i32
    %c0_i32_0 = arith.constant 0 : i32
    %c0_i32_1 = arith.constant 0 : i32
    %c0_i32_2 = arith.constant 0 : i32
    return %arg0, %c0_i32, %c0_i32_0, %c0_i32_1 : i32, i32, i32, i32
  }
}

</mosaic_0001>

<llo_original>
// kernel: tpu_custom_call.1
$region0: #{tpu_custom_call.1}
  #allocation0 [shape = 'u32[]', space=smem, size = 0x4, offset = 0x4, fixed_abs, tag = 'smem constant byte address 0x4 - core index']
  #allocation1 [shape = 'u32[72,128]{1,0:T(1,128)}', space=vmem, size = 0x9000, scoped, tag = 'internal scratch']
  #allocation2 [shape = 'bf16[3,18,16,128]{3,2,1,0:T(8,128)(2,1)}', space=vmem, size = 0x36000, scoped, tag = 'scratch operand']
  %s0 = inlined_call_operand.hbm [shape: f32[2,16,16,128], index: 0, kind: input, shape index: {}]
  %s1 = inlined_call_operand.hbm [shape: bf16[9,128,128], index: 1, kind: input, shape index: {}]
  %s2 = inlined_call_operand.vmem [shape: f32[1,128], index: 2, kind: input, shape index: {}]
  %s3 = inlined_call_operand.hbm [shape: f32[2,16,16,128], index: 3, kind: output, shape index: {}]
  %s4 = sld [smem:[#allocation0]]
  $region53: #{tpu_custom_call.1} parent=0
    _
  %s6 = ssub.s32 1, %s4
  %s7 = scalar_select 0, %s6, %s4
  $region1: #{tpu_custom_call.1} parent=0
    #allocation3 [shape = 'u8[262144]{0}', space=vmem, size = 0x40000, scoped, tag = 'input window, operand 0']
    #allocation4 [shape = 's32[2]{0}', space=sflag, size = 0x8, scoped, tag = 'scoped memory for tpu_custom_call.1']
    #allocation5 [shape = 's32[2]{0}', space=sflag, size = 0x8, scoped, tag = 'scoped memory for tpu_custom_call.1']
    #allocation6 [shape = 'u8[294912]{0}', space=vmem, size = 0x48000, scoped, tag = 'input window, operand 1, single buffered']
    #allocation7 [shape = 's32[1]{0}', space=sflag, size = 0x4, scoped, tag = 'scoped memory for tpu_custom_call.1']
    #allocation8 [shape = 'u8[262144]{0}', space=vmem, size = 0x40000, scoped, tag = 'output window, operand 0']
    %8 = vsyncpa [#allocation4], 0
    %s9 = scalar_lea.sflag [#allocation4], 1
    %10 = vsyncpa %s9, 0
    %11 = vsyncpa [#allocation7], 0
    %12 = vsyncpa [#allocation5], 0
    %s13 = scalar_lea.sflag [#allocation5], 1
    %14 = vsyncpa %s13, 0
    loop: start=0, step=1, limit=4
    $region2: #{tpu_custom_call.1} parent=1 // loop_pre_header
      _
    $region3: #{tpu_custom_call.1} parent=1 // loop_header
      %s16 = sphi 0, %s20
      %p17 = scmp.ge.s32.totalorder %s16, 4
      %s26 = sphi 0, %s28
      %s29 = sphi 0, %s26
      %s30 = sphi 0, %s29
      %s46 = sphi 0, %s30
      %s50 = sphi 0, %s50
      %s52 = sphi 0, %s50
      %s53 = sphi 0, %s52
      %s67 = sphi 0, %s53
      %s71 = sphi 0, %s71
      %s73 = sphi 0, %s71
      %s74 = sphi 0, %s73
      %s88 = sphi 0, %s74
      %s94 = sphi 0, %s96
      %s97 = sphi 0, %s94
      %s98 = sphi 0, %s97
      %s114 = sphi 0, %s98
    $region4: #{tpu_custom_call.1} parent=1 // loop_header_branch
      %19 = sbr.rel (%p17) target = $region8
    $region5: #{tpu_custom_call.1} parent=1 // loop_body
      %s21 = ssub.s32 %s16, 1
      %s22 = ssub.s32 %s16, 2
      %s23 = sadd.s32 %s16, 1
      %s24 = ssub.s32 %s16, %s23
      %p25 = scmp.eq.s32.totalorder %s24, 0
      %s27 = sadd.s32 %s26, 1
      %s28 = scalar_select %p25, %s26, %s27
      %p31 = pneg %p25
      %p32 = scmp.eq.s32.totalorder %s16, 1
      %p33 = por %p31, %p32
      %p34 = scmp.ne.s32.totalorder %s26, %s29
      %p35 = scmp.eq.s32.totalorder %s16, 0
      %p36 = por %p34, %p35
      %p37 = scmp.ne.s32.totalorder %s26, %s29
      %p38 = scmp.eq.s32.totalorder %s21, 1
      %p39 = por %p37, %p38
      %p40 = scmp.ne.s32.totalorder %s29, %s30
      %p41 = scmp.eq.s32.totalorder %s21, 0
      %p42 = por %p40, %p41
      %p43 = scmp.ne.s32.totalorder %s29, %s30
      %p44 = scmp.eq.s32.totalorder %s22, 1
      %p45 = por %p43, %p44
      %p47 = scmp.ne.s32.totalorder %s30, %s46
      %p48 = scmp.eq.s32.totalorder %s22, 0
      %p49 = por %p47, %p48
      %s51 = sadd.s32 %s50, 1
      %p54 = scmp.eq.s32.totalorder %s16, 1
      %p55 = scmp.ne.s32.totalorder %s50, %s52
      %p56 = scmp.eq.s32.totalorder %s16, 0
      %p57 = por %p55, %p56
      %p58 = scmp.ne.s32.totalorder %s50, %s52
      %p59 = scmp.eq.s32.totalorder %s21, 1
      %p60 = por %p58, %p59
      %p61 = scmp.ne.s32.totalorder %s52, %s53
      %p62 = scmp.eq.s32.totalorder %s21, 0
      %p63 = por %p61, %p62
      %p64 = scmp.ne.s32.totalorder %s52, %s53
      %p65 = scmp.eq.s32.totalorder %s22, 1
      %p66 = por %p64, %p65
      %p68 = scmp.ne.s32.totalorder %s53, %s67
      %p69 = scmp.eq.s32.totalorder %s22, 0
      %p70 = por %p68, %p69
      %s72 = sadd.s32 %s71, 1
      %p75 = scmp.eq.s32.totalorder %s16, 1
      %p76 = scmp.ne.s32.totalorder %s71, %s73
      %p77 = scmp.eq.s32.totalorder %s16, 0
      %p78 = por %p76, %p77
      %p79 = scmp.ne.s32.totalorder %s71, %s73
      %p80 = scmp.eq.s32.totalorder %s21, 1
      %p81 = por %p79, %p80
      %p82 = scmp.ne.s32.totalorder %s73, %s74
      %p83 = scmp.eq.s32.totalorder %s21, 0
      %p84 = por %p82, %p83
      %p85 = scmp.ne.s32.totalorder %s73, %s74
      %p86 = scmp.eq.s32.totalorder %s22, 1
      %p87 = por %p85, %p86
      %p89 = scmp.ne.s32.totalorder %s74, %s88
      %p90 = scmp.eq.s32.totalorder %s22, 0
      %p91 = por %p89, %p90
      %s92 = ssub.s32 %s16, %s23
      %p93 = scmp.eq.s32.totalorder %s92, 0
      %s95 = sadd.s32 %s94, 1
      %s96 = scalar_select %p93, %s94, %s95
      %p99 = pneg %p93
      %p100 = scmp.eq.s32.totalorder %s16, 1
      %p101 = por %p99, %p100
      %p102 = scmp.ne.s32.totalorder %s94, %s97
      %p103 = scmp.eq.s32.totalorder %s16, 0
      %p104 = por %p102, %p103
      %p105 = scmp.ne.s32.totalorder %s94, %s97
      %p106 = scmp.eq.s32.totalorder %s21, 1
      %p107 = por %p105, %p106
      %p108 = scmp.ne.s32.totalorder %s97, %s98
      %p109 = scmp.eq.s32.totalorder %s21, 0
      %p110 = por %p108, %p109
      %p111 = scmp.ne.s32.totalorder %s97, %s98
      %p112 = scmp.eq.s32.totalorder %s22, 1
      %p113 = por %p111, %p112
      %p115 = scmp.ne.s32.totalorder %s98, %s114
      %p116 = scmp.eq.s32.totalorder %s22, 0
      %p117 = por %p115, %p116
      %p118 = scmp.le.s32.totalorder 1, %s16
      %p119 = scmp.lt.s32.totalorder %s16, 3
      %p120 = pnand %p118, %p119
      %p121 = pneg %p120
      // Predicated region
      $region9: #{tpu_custom_call.1} parent=5 // pred_check
        _
      $region10: #{tpu_custom_call.1} parent=5 // pred_check_branch
        %123 = sbr.rel (%p120) target = $region12
      $region11: #{tpu_custom_call.1} parent=5 // pred_region
        %s124 = ssub.s32 %s16, 1
        // Predicated region
        $region13: #{tpu_custom_call.1} parent=11 // pred_check
          %p125 = pneg %p63
        $region14: #{tpu_custom_call.1} parent=11 // pred_check_branch
          %127 = sbr.rel (%p125) target = $region16
        $region15: #{tpu_custom_call.1} parent=11 // pred_region
          %129 = vsyncadd [#allocation7], 0
          %s130 = sshll.u32 %s1, 4
          %s131 = int_to_ptr.hbm [resolvable:$true] %s130
          %s132 = sshll.u32 [#allocation6], 4
          %s133 = int_to_ptr.vmem [resolvable:$true] %s132
          %138 = dma.hbm_to_vmem [thread:$0]  %s131, 9216, %s133, [#allocation7], 64, 64, 4
        $region16: #{tpu_custom_call.1} parent=11 // pred_fallthru
          _
        // Predicated region
        $region17: #{tpu_custom_call.1} parent=11 // pred_check
          %p139 = pneg %p84
        $region18: #{tpu_custom_call.1} parent=11 // pred_check_branch
          %141 = sbr.rel (%p139) target = $region20
        $region19: #{tpu_custom_call.1} parent=11 // pred_region
          _
        $region20: #{tpu_custom_call.1} parent=11 // pred_fallthru
          _
      $region12: #{tpu_custom_call.1} parent=5 // pred_fallthru
        _
      %p142 = scmp.lt.s32.totalorder %s16, 2
      // Predicated region
      $region21: #{tpu_custom_call.1} parent=5 // pred_check
        %p143 = pneg %p142
      $region22: #{tpu_custom_call.1} parent=5 // pred_check_branch
        %145 = sbr.rel (%p143) target = $region24
      $region23: #{tpu_custom_call.1} parent=5 // pred_region
        // Predicated region
        $region25: #{tpu_custom_call.1} parent=23 // pred_check
          %p146 = pneg %p36
        $region26: #{tpu_custom_call.1} parent=23 // pred_check_branch
          %148 = sbr.rel (%p146) target = $region28
        $region27: #{tpu_custom_call.1} parent=23 // pred_region
          %s149 = sand.u32 %s26, 1
          %s150 = scalar_lea.sflag [#allocation4], %s149
          %s151 = sand.u32 %s26, 1
          %s152 = smul.addr %s151, 256
          %s153 = scalar_lea.vmem [#allocation3], %s152
          %155 = vsyncadd %s150, 0
          %s156 = smul.addr %s16, 32
          %s157 = smul.addr %s156, 8
          %s158 = scalar_lea.hbm %s0, %s157
          %s159 = sshll.u32 %s158, 4
          %s160 = int_to_ptr.hbm [resolvable:$true] %s159
          %s161 = sshll.u32 %s153, 4
          %s162 = int_to_ptr.vmem [resolvable:$true] %s161
          %167 = dma.hbm_to_vmem [thread:$0]  %s160, 4096, %s162, %s150, 128, 128, 8
        $region28: #{tpu_custom_call.1} parent=23 // pred_fallthru
          _
      $region24: #{tpu_custom_call.1} parent=5 // pred_fallthru
        _
      %p168 = scmp.le.s32.totalorder 1, %s16
      %p169 = scmp.lt.s32.totalorder %s16, 3
      %p170 = pnand %p168, %p169
      %p171 = pneg %p170
      // Predicated region
      $region29: #{tpu_custom_call.1} parent=5 // pred_check
        _
      $region30: #{tpu_custom_call.1} parent=5 // pred_check_branch
        %173 = sbr.rel (%p170) target = $region32
      $region31: #{tpu_custom_call.1} parent=5 // pred_region
        %s174 = ssub.s32 %s16, 1
        %s175 = sand.u32 %s29, 1
        %s176 = scalar_lea.sflag [#allocation4], %s175
        %s177 = sand.u32 %s29, 1
        %s178 = smul.addr %s177, 256
        %s179 = scalar_lea.vmem [#allocation3], %s178
        // Predicated region
        $region33: #{tpu_custom_call.1} parent=31 // pred_check
          %p180 = pneg %p42
        $region34: #{tpu_custom_call.1} parent=31 // pred_check_branch
          %182 = sbr.rel (%p180) target = $region36
        $region35: #{tpu_custom_call.1} parent=31 // pred_region
          %184 = dma.done %s176, 4096
        $region36: #{tpu_custom_call.1} parent=31 // pred_fallthru
          _
        // Predicated region
        $region37: #{tpu_custom_call.1} parent=31 // pred_check
          %p185 = pneg %p63
        $region38: #{tpu_custom_call.1} parent=31 // pred_check_branch
          %187 = sbr.rel (%p185) target = $region40
        $region39: #{tpu_custom_call.1} parent=31 // pred_region
          %189 = dma.done [#allocation7], 9216
        $region40: #{tpu_custom_call.1} parent=31 // pred_fallthru
          _
        %s190 = sand.u32 %s29, 1
        %s191 = scalar_lea.sflag [#allocation4], %s190
        %s192 = sand.u32 %s29, 1
        %s193 = smul.addr %s192, 256
        %s194 = scalar_lea.vmem [#allocation3], %s193
        %p195 = pneg %p42
        %p196 = pneg %p39
        %p197 = pneg %p63
        %p198 = pneg %p60
        %p199 = pneg %p84
        %p200 = pneg %p81
        %p201 = pneg %p110
        %p202 = pneg %p107
        %s203 = sand.u32 %s97, 1
        %s204 = scalar_lea.sflag [#allocation5], %s203
        %s205 = sand.u32 %s97, 1
        %s206 = smul.addr %s205, 256
        %s207 = scalar_lea.vmem [#allocation8], %s206
        %v209 = vld [vmem:[%s179] sm:$0xff]
        %v210 = vld [vmem:[%s179 + $0x8] sm:$0xff]
        %v211 = vld [vmem:[%s179 + $0x10] sm:$0xff]
        %v212 = vld [vmem:[%s179 + $0x18] sm:$0xff]
        %v213 = vld [vmem:[%s179 + $0x20] sm:$0xff]
        %v214 = vld [vmem:[%s179 + $0x28] sm:$0xff]
        %v215 = vld [vmem:[%s179 + $0x30] sm:$0xff]
        %v216 = vld [vmem:[%s179 + $0x38] sm:$0xff]
        %v217 = vld [vmem:[%s179 + $0x40] sm:$0xff]
        %v218 = vld [vmem:[%s179 + $0x48] sm:$0xff]
        %v219 = vld [vmem:[%s179 + $0x50] sm:$0xff]
        %v220 = vld [vmem:[%s179 + $0x58] sm:$0xff]
        %v221 = vld [vmem:[%s179 + $0x60] sm:$0xff]
        %v222 = vld [vmem:[%s179 + $0x68] sm:$0xff]
        %v223 = vld [vmem:[%s179 + $0x70] sm:$0xff]
        %v224 = vld [vmem:[%s179 + $0x78] sm:$0xff]
        %v225 = vld [vmem:[%s179 + $0x80] sm:$0xff]
        %v226 = vld [vmem:[%s179 + $0x88] sm:$0xff]
        %v227 = vld [vmem:[%s179 + $0x90] sm:$0xff]
        %v228 = vld [vmem:[%s179 + $0x98] sm:$0xff]
        %v229 = vld [vmem:[%s179 + $0xa0] sm:$0xff]
        %v230 = vld [vmem:[%s179 + $0xa8] sm:$0xff]
        %v231 = vld [vmem:[%s179 + $0xb0] sm:$0xff]
        %v232 = vld [vmem:[%s179 + $0xb8] sm:$0xff]
        %v233 = vld [vmem:[%s179 + $0xc0] sm:$0xff]
        %v234 = vld [vmem:[%s179 + $0xc8] sm:$0xff]
        %v235 = vld [vmem:[%s179 + $0xd0] sm:$0xff]
        %v236 = vld [vmem:[%s179 + $0xd8] sm:$0xff]
        %v237 = vld [vmem:[%s179 + $0xe0] sm:$0xff]
        %v238 = vld [vmem:[%s179 + $0xe8] sm:$0xff]
        %v239 = vld [vmem:[%s179 + $0xf0] sm:$0xff]
        %v240 = vld [vmem:[%s179 + $0xf8] sm:$0xff]
        %v241 = vmax.f32 %v209, 0.0
        %v242 = vmax.f32 %v210, 0.0
        %v243 = vmax.f32 %v211, 0.0
        %v244 = vmax.f32 %v212, 0.0
        %v245 = vmax.f32 %v213, 0.0
        %v246 = vmax.f32 %v214, 0.0
        %v247 = vmax.f32 %v215, 0.0
        %v248 = vmax.f32 %v216, 0.0
        %v249 = vmax.f32 %v217, 0.0
        %v250 = vmax.f32 %v218, 0.0
        %v251 = vmax.f32 %v219, 0.0
        %v252 = vmax.f32 %v220, 0.0
        %v253 = vmax.f32 %v221, 0.0
        %v254 = vmax.f32 %v222, 0.0
        %v255 = vmax.f32 %v223, 0.0
        %v256 = vmax.f32 %v224, 0.0
        %v257 = vmax.f32 %v225, 0.0
        %v258 = vmax.f32 %v226, 0.0
        %v259 = vmax.f32 %v227, 0.0
        %v260 = vmax.f32 %v228, 0.0
        %v261 = vmax.f32 %v229, 0.0
        %v262 = vmax.f32 %v230, 0.0
        %v263 = vmax.f32 %v231, 0.0
        %v264 = vmax.f32 %v232, 0.0
        %v265 = vmax.f32 %v233, 0.0
        %v266 = vmax.f32 %v234, 0.0
        %v267 = vmax.f32 %v235, 0.0
        %v268 = vmax.f32 %v236, 0.0
        %v269 = vmax.f32 %v237, 0.0
        %v270 = vmax.f32 %v238, 0.0
        %v271 = vmax.f32 %v239, 0.0
        %v272 = vmax.f32 %v240, 0.0
        %v273 = vlaneseq
        %v274 = vshrl.u32 %v273, 7
        %v275 = vadd.s32 %v274, 8
        %v276 = vpack.c.bf16 %v241, %v241
        %v277 = vpack.c.bf16 %v242, %v242
        %v278 = vpack.c.bf16 %v243, %v243
        %v279 = vpack.c.bf16 %v244, %v244
        %v280 = vpack.c.bf16 %v245, %v245
        %v281 = vpack.c.bf16 %v246, %v246
        %v282 = vpack.c.bf16 %v247, %v247
        %v283 = vpack.c.bf16 %v248, %v248
        %v284 = vpack.c.bf16 %v249, %v249
        %v285 = vpack.c.bf16 %v250, %v250
        %v286 = vpack.c.bf16 %v251, %v251
        %v287 = vpack.c.bf16 %v252, %v252
        %v288 = vpack.c.bf16 %v253, %v253
        %v289 = vpack.c.bf16 %v254, %v254
        %v290 = vpack.c.bf16 %v255, %v255
        %v291 = vpack.c.bf16 %v256, %v256
        %v292 = vpack.c.bf16 %v257, %v257
        %v293 = vpack.c.bf16 %v258, %v258
        %v294 = vpack.c.bf16 %v259, %v259
        %v295 = vpack.c.bf16 %v260, %v260
        %v296 = vpack.c.bf16 %v261, %v261
        %v297 = vpack.c.bf16 %v262, %v262
        %v298 = vpack.c.bf16 %v263, %v263
        %v299 = vpack.c.bf16 %v264, %v264
        %v300 = vpack.c.bf16 %v265, %v265
        %v301 = vpack.c.bf16 %v266, %v266
        %v302 = vpack.c.bf16 %v267, %v267
        %v303 = vpack.c.bf16 %v268, %v268
        %v304 = vpack.c.bf16 %v269, %v269
        %v305 = vpack.c.bf16 %v270, %v270
        %v306 = vpack.c.bf16 %v271, %v271
        %v307 = vpack.c.bf16 %v272, %v272
        %s308 = scalar_lea.vmem [#allocation2], 152
        %309 = vst [vmem:[%s308] sm:$0xf] %v276
        %310 = vst [vmem:[%s308 + $0x4] sm:$0xf] %v277
        %311 = vst [vmem:[%s308 + $0x8] sm:$0xf] %v278
        %312 = vst [vmem:[%s308 + $0xc] sm:$0xf] %v279
        %313 = vst [vmem:[%s308 + $0x10] sm:$0xf] %v280
        %314 = vst [vmem:[%s308 + $0x14] sm:$0xf] %v281
        %315 = vst [vmem:[%s308 + $0x18] sm:$0xf] %v282
        %316 = vst [vmem:[%s308 + $0x1c] sm:$0xf] %v283
        %317 = vst [vmem:[%s308 + $0x20] sm:$0xf] %v284
        %318 = vst [vmem:[%s308 + $0x24] sm:$0xf] %v285
        %319 = vst [vmem:[%s308 + $0x28] sm:$0xf] %v286
        %320 = vst [vmem:[%s308 + $0x2c] sm:$0xf] %v287
        %321 = vst [vmem:[%s308 + $0x30] sm:$0xf] %v288
        %322 = vst [vmem:[%s308 + $0x34] sm:$0xf] %v289
        %323 = vst [vmem:[%s308 + $0x38] sm:$0xf] %v290
        %324 = vst [vmem:[%s308 + $0x3c] sm:$0xf] %v291
        %325 = vst [vmem:[%s308 + $0x40] sm:$0xf] %v292
        %326 = vst [vmem:[%s308 + $0x44] sm:$0xf] %v293
        %327 = vst [vmem:[%s308 + $0x48] sm:$0xf] %v294
        %328 = vst [vmem:[%s308 + $0x4c] sm:$0xf] %v295
        %329 = vst [vmem:[%s308 + $0x50] sm:$0xf] %v296
        %330 = vst [vmem:[%s308 + $0x54] sm:$0xf] %v297
        %331 = vst [vmem:[%s308 + $0x58] sm:$0xf] %v298
        %332 = vst [vmem:[%s308 + $0x5c] sm:$0xf] %v299
        %333 = vst [vmem:[%s308 + $0x60] sm:$0xf] %v300
        %334 = vst [vmem:[%s308 + $0x64] sm:$0xf] %v301
        %335 = vst [vmem:[%s308 + $0x68] sm:$0xf] %v302
        %336 = vst [vmem:[%s308 + $0x6c] sm:$0xf] %v303
        %337 = vst [vmem:[%s308 + $0x70] sm:$0xf] %v304
        %338 = vst [vmem:[%s308 + $0x74] sm:$0xf] %v305
        %339 = vst [vmem:[%s308 + $0x78] sm:$0xf] %v306
        %340 = vst [vmem:[%s308 + $0x7c] sm:$0xf] %v307
        %vm341 = vcmp.ge.s32.totalorder %v274, 1
        %vm342 = vcmp.ge.s32.totalorder %v275, 1
        %v343 = vrot.slane %v241, 7
        %v344 = vrot.slane %v243, 7
        %v345 = vrot.slane %v245, 7
        %v346 = vrot.slane %v247, 7
        %v347 = vrot.slane %v249, 7
        %v348 = vrot.slane %v251, 7
        %v349 = vrot.slane %v253, 7
        %v350 = vrot.slane %v255, 7
        %v351 = vrot.slane %v257, 7
        %v352 = vrot.slane %v259, 7
        %v353 = vrot.slane %v261, 7
        %v354 = vrot.slane %v263, 7
        %v355 = vrot.slane %v265, 7
        %v356 = vrot.slane %v267, 7
        %v357 = vrot.slane %v269, 7
        %v358 = vrot.slane %v271, 7
        %v359 = vrot.slane %v242, 7
        %v360 = vrot.slane %v244, 7
        %v361 = vrot.slane %v246, 7
        %v362 = vrot.slane %v248, 7
        %v363 = vrot.slane %v250, 7
        %v364 = vrot.slane %v252, 7
        %v365 = vrot.slane %v254, 7
        %v366 = vrot.slane %v256, 7
        %v367 = vrot.slane %v258, 7
        %v368 = vrot.slane %v260, 7
        %v369 = vrot.slane %v262, 7
        %v370 = vrot.slane %v264, 7
        %v371 = vrot.slane %v266, 7
        %v372 = vrot.slane %v268, 7
        %v373 = vrot.slane %v270, 7
        %v374 = vrot.slane %v272, 7
        %vm375 = vcmp.lt.s32.totalorder %v274, 1
        %v376 = vsel %vm375, %v343, %v359
        %v377 = vsel %vm375, %v344, %v360
        %v378 = vsel %vm375, %v345, %v361
        %v379 = vsel %vm375, %v346, %v362
        %v380 = vsel %vm375, %v347, %v363
        %v381 = vsel %vm375, %v348, %v364
        %v382 = vsel %vm375, %v349, %v365
        %v383 = vsel %vm375, %v350, %v366
        %v384 = vsel %vm375, %v351, %v367
        %v385 = vsel %vm375, %v352, %v368
        %v386 = vsel %vm375, %v353, %v369
        %v387 = vsel %vm375, %v354, %v370
        %v388 = vsel %vm375, %v355, %v371
        %v389 = vsel %vm375, %v356, %v372
        %v390 = vsel %vm375, %v357, %v373
        %v391 = vsel %vm375, %v358, %v374
        %v392 = vsel %vm375, %v359, %v343
        %v393 = vsel %vm375, %v360, %v344
        %v394 = vsel %vm375, %v361, %v345
        %v395 = vsel %vm375, %v362, %v346
        %v396 = vsel %vm375, %v363, %v347
        %v397 = vsel %vm375, %v364, %v348
        %v398 = vsel %vm375, %v365, %v349
        %v399 = vsel %vm375, %v366, %v350
        %v400 = vsel %vm375, %v367, %v351
        %v401 = vsel %vm375, %v368, %v352
        %v402 = vsel %vm375, %v369, %v353
        %v403 = vsel %vm375, %v370, %v354
        %v404 = vsel %vm375, %v371, %v355
        %v405 = vsel %vm375, %v372, %v356
        %v406 = vsel %vm375, %v373, %v357
        %v407 = vsel %vm375, %v374, %v358
        %v408 = vsel %vm341, 1, 0
        %v409 = vsel %vm342, 1, 0
        %vm410 = vcmp.eq.s32.totalorder %v408, 1
        %vm411 = vcmp.eq.s32.totalorder %v409, 1
        %v412 = vsel %vm410, %v392, 0.0
        %v413 = vsel %vm411, %v376, 0.0
        %v414 = vsel %vm410, %v393, 0.0
        %v415 = vsel %vm411, %v377, 0.0
        %v416 = vsel %vm410, %v394, 0.0
        %v417 = vsel %vm411, %v378, 0.0
        %v418 = vsel %vm410, %v395, 0.0
        %v419 = vsel %vm411, %v379, 0.0
        %v420 = vsel %vm410, %v396, 0.0
        %v421 = vsel %vm411, %v380, 0.0
        %v422 = vsel %vm410, %v397, 0.0
        %v423 = vsel %vm411, %v381, 0.0
        %v424 = vsel %vm410, %v398, 0.0
        %v425 = vsel %vm411, %v382, 0.0
        %v426 = vsel %vm410, %v399, 0.0
        %v427 = vsel %vm411, %v383, 0.0
        %v428 = vsel %vm410, %v400, 0.0
        %v429 = vsel %vm411, %v384, 0.0
        %v430 = vsel %vm410, %v401, 0.0
        %v431 = vsel %vm411, %v385, 0.0
        %v432 = vsel %vm410, %v402, 0.0
        %v433 = vsel %vm411, %v386, 0.0
        %v434 = vsel %vm410, %v403, 0.0
        %v435 = vsel %vm411, %v387, 0.0
        %v436 = vsel %vm410, %v404, 0.0
        %v437 = vsel %vm411, %v388, 0.0
        %v438 = vsel %vm410, %v405, 0.0
        %v439 = vsel %vm411, %v389, 0.0
        %v440 = vsel %vm410, %v406, 0.0
        %v441 = vsel %vm411, %v390, 0.0
        %v442 = vsel %vm410, %v407, 0.0
        %v443 = vsel %vm411, %v391, 0.0
        %v444 = vpack.c.bf16 %v412, %v412
        %v445 = vpack.c.bf16 %v413, %v413
        %v446 = vpack.c.bf16 %v414, %v414
        %v447 = vpack.c.bf16 %v415, %v415
        %v448 = vpack.c.bf16 %v416, %v416
        %v449 = vpack.c.bf16 %v417, %v417
        %v450 = vpack.c.bf16 %v418, %v418
        %v451 = vpack.c.bf16 %v419, %v419
        %v452 = vpack.c.bf16 %v420, %v420
        %v453 = vpack.c.bf16 %v421, %v421
        %v454 = vpack.c.bf16 %v422, %v422
        %v455 = vpack.c.bf16 %v423, %v423
        %v456 = vpack.c.bf16 %v424, %v424
        %v457 = vpack.c.bf16 %v425, %v425
        %v458 = vpack.c.bf16 %v426, %v426
        %v459 = vpack.c.bf16 %v427, %v427
        %v460 = vpack.c.bf16 %v428, %v428
        %v461 = vpack.c.bf16 %v429, %v429
        %v462 = vpack.c.bf16 %v430, %v430
        %v463 = vpack.c.bf16 %v431, %v431
        %v464 = vpack.c.bf16 %v432, %v432
        %v465 = vpack.c.bf16 %v433, %v433
        %v466 = vpack.c.bf16 %v434, %v434
        %v467 = vpack.c.bf16 %v435, %v435
        %v468 = vpack.c.bf16 %v436, %v436
        %v469 = vpack.c.bf16 %v437, %v437
        %v470 = vpack.c.bf16 %v438, %v438
        %v471 = vpack.c.bf16 %v439, %v439
        %v472 = vpack.c.bf16 %v440, %v440
        %v473 = vpack.c.bf16 %v441, %v441
        %v474 = vpack.c.bf16 %v442, %v442
        %v475 = vpack.c.bf16 %v443, %v443
        %s476 = scalar_lea.vmem [#allocation2], 8
        %477 = vst [vmem:[%s476] sm:$0xf] %v444
        %478 = vst [vmem:[%s476 + $0x4] sm:$0xf] %v445
        %479 = vst [vmem:[%s476 + $0x8] sm:$0xf] %v446
        %480 = vst [vmem:[%s476 + $0xc] sm:$0xf] %v447
        %481 = vst [vmem:[%s476 + $0x10] sm:$0xf] %v448
        %482 = vst [vmem:[%s476 + $0x14] sm:$0xf] %v449
        %483 = vst [vmem:[%s476 + $0x18] sm:$0xf] %v450
        %484 = vst [vmem:[%s476 + $0x1c] sm:$0xf] %v451
        %485 = vst [vmem:[%s476 + $0x20] sm:$0xf] %v452
        %486 = vst [vmem:[%s476 + $0x24] sm:$0xf] %v453
        %487 = vst [vmem:[%s476 + $0x28] sm:$0xf] %v454
        %488 = vst [vmem:[%s476 + $0x2c] sm:$0xf] %v455
        %489 = vst [vmem:[%s476 + $0x30] sm:$0xf] %v456
        %490 = vst [vmem:[%s476 + $0x34] sm:$0xf] %v457
        %491 = vst [vmem:[%s476 + $0x38] sm:$0xf] %v458
        %492 = vst [vmem:[%s476 + $0x3c] sm:$0xf] %v459
        %493 = vst [vmem:[%s476 + $0x40] sm:$0xf] %v460
        %494 = vst [vmem:[%s476 + $0x44] sm:$0xf] %v461
        %495 = vst [vmem:[%s476 + $0x48] sm:$0xf] %v462
        %496 = vst [vmem:[%s476 + $0x4c] sm:$0xf] %v463
        %497 = vst [vmem:[%s476 + $0x50] sm:$0xf] %v464
        %498 = vst [vmem:[%s476 + $0x54] sm:$0xf] %v465
        %499 = vst [vmem:[%s476 + $0x58] sm:$0xf] %v466
        %500 = vst [vmem:[%s476 + $0x5c] sm:$0xf] %v467
        %501 = vst [vmem:[%s476 + $0x60] sm:$0xf] %v468
        %502 = vst [vmem:[%s476 + $0x64] sm:$0xf] %v469
        %503 = vst [vmem:[%s476 + $0x68] sm:$0xf] %v470
        %504 = vst [vmem:[%s476 + $0x6c] sm:$0xf] %v471
        %505 = vst [vmem:[%s476 + $0x70] sm:$0xf] %v472
        %506 = vst [vmem:[%s476 + $0x74] sm:$0xf] %v473
        %507 = vst [vmem:[%s476 + $0x78] sm:$0xf] %v474
        %508 = vst [vmem:[%s476 + $0x7c] sm:$0xf] %v475
        %vm509 = vcmp.le.s32.totalorder %v274, 14
        %vm510 = vcmp.le.s32.totalorder %v275, 14
        %v511 = vrot.slane %v241, 1
        %v512 = vrot.slane %v243, 1
        %v513 = vrot.slane %v245, 1
        %v514 = vrot.slane %v247, 1
        %v515 = vrot.slane %v249, 1
        %v516 = vrot.slane %v251, 1
        %v517 = vrot.slane %v253, 1
        %v518 = vrot.slane %v255, 1
        %v519 = vrot.slane %v257, 1
        %v520 = vrot.slane %v259, 1
        %v521 = vrot.slane %v261, 1
        %v522 = vrot.slane %v263, 1
        %v523 = vrot.slane %v265, 1
        %v524 = vrot.slane %v267, 1
        %v525 = vrot.slane %v269, 1
        %v526 = vrot.slane %v271, 1
        %v527 = vrot.slane %v242, 1
        %v528 = vrot.slane %v244, 1
        %v529 = vrot.slane %v246, 1
        %v530 = vrot.slane %v248, 1
        %v531 = vrot.slane %v250, 1
        %v532 = vrot.slane %v252, 1
        %v533 = vrot.slane %v254, 1
        %v534 = vrot.slane %v256, 1
        %v535 = vrot.slane %v258, 1
        %v536 = vrot.slane %v260, 1
        %v537 = vrot.slane %v262, 1
        %v538 = vrot.slane %v264, 1
        %v539 = vrot.slane %v266, 1
        %v540 = vrot.slane %v268, 1
        %v541 = vrot.slane %v270, 1
        %v542 = vrot.slane %v272, 1
        %vm543 = vcmp.lt.s32.totalorder %v274, 7
        %v544 = vsel %vm543, %v511, %v527
        %v545 = vsel %vm543, %v512, %v528
        %v546 = vsel %vm543, %v513, %v529
        %v547 = vsel %vm543, %v514, %v530
        %v548 = vsel %vm543, %v515, %v531
        %v549 = vsel %vm543, %v516, %v532
        %v550 = vsel %vm543, %v517, %v533
        %v551 = vsel %vm543, %v518, %v534
        %v552 = vsel %vm543, %v519, %v535
        %v553 = vsel %vm543, %v520, %v536
        %v554 = vsel %vm543, %v521, %v537
        %v555 = vsel %vm543, %v522, %v538
        %v556 = vsel %vm543, %v523, %v539
        %v557 = vsel %vm543, %v524, %v540
        %v558 = vsel %vm543, %v525, %v541
        %v559 = vsel %vm543, %v526, %v542
        %v560 = vsel %vm543, %v527, %v511
        %v561 = vsel %vm543, %v528, %v512
        %v562 = vsel %vm543, %v529, %v513
        %v563 = vsel %vm543, %v530, %v514
        %v564 = vsel %vm543, %v531, %v515
        %v565 = vsel %vm543, %v532, %v516
        %v566 = vsel %vm543, %v533, %v517
        %v567 = vsel %vm543, %v534, %v518
        %v568 = vsel %vm543, %v535, %v519
        %v569 = vsel %vm543, %v536, %v520
        %v570 = vsel %vm543, %v537, %v521
        %v571 = vsel %vm543, %v538, %v522
        %v572 = vsel %vm543, %v539, %v523
        %v573 = vsel %vm543, %v540, %v524
        %v574 = vsel %vm543, %v541, %v525
        %v575 = vsel %vm543, %v542, %v526
        %v576 = vsel %vm509, 1, 0
        %v577 = vsel %vm510, 1, 0
        %vm578 = vcmp.eq.s32.totalorder %v576, 1
        %vm579 = vcmp.eq.s32.totalorder %v577, 1
        %v580 = vsel %vm578, %v544, 0.0
        %v581 = vsel %vm579, %v560, 0.0
        %v582 = vsel %vm578, %v545, 0.0
        %v583 = vsel %vm579, %v561, 0.0
        %v584 = vsel %vm578, %v546, 0.0
        %v585 = vsel %vm579, %v562, 0.0
        %v586 = vsel %vm578, %v547, 0.0
        %v587 = vsel %vm579, %v563, 0.0
        %v588 = vsel %vm578, %v548, 0.0
        %v589 = vsel %vm579, %v564, 0.0
        %v590 = vsel %vm578, %v549, 0.0
        %v591 = vsel %vm579, %v565, 0.0
        %v592 = vsel %vm578, %v550, 0.0
        %v593 = vsel %vm579, %v566, 0.0
        %v594 = vsel %vm578, %v551, 0.0
        %v595 = vsel %vm579, %v567, 0.0
        %v596 = vsel %vm578, %v552, 0.0
        %v597 = vsel %vm579, %v568, 0.0
        %v598 = vsel %vm578, %v553, 0.0
        %v599 = vsel %vm579, %v569, 0.0
        %v600 = vsel %vm578, %v554, 0.0
        %v601 = vsel %vm579, %v570, 0.0
        %v602 = vsel %vm578, %v555, 0.0
        %v603 = vsel %vm579, %v571, 0.0
        %v604 = vsel %vm578, %v556, 0.0
        %v605 = vsel %vm579, %v572, 0.0
        %v606 = vsel %vm578, %v557, 0.0
        %v607 = vsel %vm579, %v573, 0.0
        %v608 = vsel %vm578, %v558, 0.0
        %v609 = vsel %vm579, %v574, 0.0
        %v610 = vsel %vm578, %v559, 0.0
        %v611 = vsel %vm579, %v575, 0.0
        %v612 = vpack.c.bf16 %v580, %v580
        %v613 = vpack.c.bf16 %v581, %v581
        %v614 = vpack.c.bf16 %v582, %v582
        %v615 = vpack.c.bf16 %v583, %v583
        %v616 = vpack.c.bf16 %v584, %v584
        %v617 = vpack.c.bf16 %v585, %v585
        %v618 = vpack.c.bf16 %v586, %v586
        %v619 = vpack.c.bf16 %v587, %v587
        %v620 = vpack.c.bf16 %v588, %v588
        %v621 = vpack.c.bf16 %v589, %v589
        %v622 = vpack.c.bf16 %v590, %v590
        %v623 = vpack.c.bf16 %v591, %v591
        %v624 = vpack.c.bf16 %v592, %v592
        %v625 = vpack.c.bf16 %v593, %v593
        %v626 = vpack.c.bf16 %v594, %v594
        %v627 = vpack.c.bf16 %v595, %v595
        %v628 = vpack.c.bf16 %v596, %v596
        %v629 = vpack.c.bf16 %v597, %v597
        %v630 = vpack.c.bf16 %v598, %v598
        %v631 = vpack.c.bf16 %v599, %v599
        %v632 = vpack.c.bf16 %v600, %v600
        %v633 = vpack.c.bf16 %v601, %v601
        %v634 = vpack.c.bf16 %v602, %v602
        %v635 = vpack.c.bf16 %v603, %v603
        %v636 = vpack.c.bf16 %v604, %v604
        %v637 = vpack.c.bf16 %v605, %v605
        %v638 = vpack.c.bf16 %v606, %v606
        %v639 = vpack.c.bf16 %v607, %v607
        %v640 = vpack.c.bf16 %v608, %v608
        %v641 = vpack.c.bf16 %v609, %v609
        %v642 = vpack.c.bf16 %v610, %v610
        %v643 = vpack.c.bf16 %v611, %v611
        %s644 = scalar_lea.vmem [#allocation2], 296
        %645 = vst [vmem:[%s644] sm:$0xf] %v612
        %646 = vst [vmem:[%s644 + $0x4] sm:$0xf] %v613
        %647 = vst [vmem:[%s644 + $0x8] sm:$0xf] %v614
        %648 = vst [vmem:[%s644 + $0xc] sm:$0xf] %v615
        %649 = vst [vmem:[%s644 + $0x10] sm:$0xf] %v616
        %650 = vst [vmem:[%s644 + $0x14] sm:$0xf] %v617
        %651 = vst [vmem:[%s644 + $0x18] sm:$0xf] %v618
        %652 = vst [vmem:[%s644 + $0x1c] sm:$0xf] %v619
        %653 = vst [vmem:[%s644 + $0x20] sm:$0xf] %v620
        %654 = vst [vmem:[%s644 + $0x24] sm:$0xf] %v621
        %655 = vst [vmem:[%s644 + $0x28] sm:$0xf] %v622
        %656 = vst [vmem:[%s644 + $0x2c] sm:$0xf] %v623
        %657 = vst [vmem:[%s644 + $0x30] sm:$0xf] %v624
        %658 = vst [vmem:[%s644 + $0x34] sm:$0xf] %v625
        %659 = vst [vmem:[%s644 + $0x38] sm:$0xf] %v626
        %660 = vst [vmem:[%s644 + $0x3c] sm:$0xf] %v627
        %661 = vst [vmem:[%s644 + $0x40] sm:$0xf] %v628
        %662 = vst [vmem:[%s644 + $0x44] sm:$0xf] %v629
        %663 = vst [vmem:[%s644 + $0x48] sm:$0xf] %v630
        %664 = vst [vmem:[%s644 + $0x4c] sm:$0xf] %v631
        %665 = vst [vmem:[%s644 + $0x50] sm:$0xf] %v632
        %666 = vst [vmem:[%s644 + $0x54] sm:$0xf] %v633
        %667 = vst [vmem:[%s644 + $0x58] sm:$0xf] %v634
        %668 = vst [vmem:[%s644 + $0x5c] sm:$0xf] %v635
        %669 = vst [vmem:[%s644 + $0x60] sm:$0xf] %v636
        %670 = vst [vmem:[%s644 + $0x64] sm:$0xf] %v637
        %671 = vst [vmem:[%s644 + $0x68] sm:$0xf] %v638
        %672 = vst [vmem:[%s644 + $0x6c] sm:$0xf] %v639
        %673 = vst [vmem:[%s644 + $0x70] sm:$0xf] %v640
        %674 = vst [vmem:[%s644 + $0x74] sm:$0xf] %v641
        %675 = vst [vmem:[%s644 + $0x78] sm:$0xf] %v642
        %676 = vst [vmem:[%s644 + $0x7c] sm:$0xf] %v643
        %677 = vst [vmem:[#allocation2] sm:$0xf] 0
        %678 = vst [vmem:[#allocation2 + $0x4] sm:$0xf] 0
        %679 = vst [vmem:[#allocation2 + $0x90] sm:$0xf] 0
        %680 = vst [vmem:[#allocation2 + $0x94] sm:$0xf] 0
        %681 = vst [vmem:[#allocation2 + $0x120] sm:$0xf] 0
        %682 = vst [vmem:[#allocation2 + $0x124] sm:$0xf] 0
        %s683 = scalar_lea.vmem [#allocation2], 136
        %684 = vst [vmem:[%s683] sm:$0xf] 0
        %685 = vst [vmem:[%s683 + $0x4] sm:$0xf] 0
        %686 = vst [vmem:[%s683 + $0x90] sm:$0xf] 0
        %687 = vst [vmem:[%s683 + $0x94] sm:$0xf] 0
        %688 = vst [vmem:[%s683 + $0x120] sm:$0xf] 0
        %689 = vst [vmem:[%s683 + $0x124] sm:$0xf] 0
        %v690 = vld [vmem:[#allocation2] sm:$0xf]
        %v691 = vld [vmem:[#allocation2 + $0x4] sm:$0xf]
        %v692 = vld [vmem:[#allocation2 + $0x8] sm:$0xf]
        %v693 = vld [vmem:[#allocation2 + $0xc] sm:$0xf]
        %v694 = vld [vmem:[#allocation2 + $0x10] sm:$0xf]
        %v695 = vld [vmem:[#allocation2 + $0x14] sm:$0xf]
        %v696 = vld [vmem:[#allocation2 + $0x18] sm:$0xf]
        %v697 = vld [vmem:[#allocation2 + $0x1c] sm:$0xf]
        %v698 = vld [vmem:[#allocation2 + $0x20] sm:$0xf]
        %v699 = vld [vmem:[#allocation2 + $0x24] sm:$0xf]
        %v700 = vld [vmem:[#allocation2 + $0x28] sm:$0xf]
        %v701 = vld [vmem:[#allocation2 + $0x2c] sm:$0xf]
        %v702 = vld [vmem:[#allocation2 + $0x30] sm:$0xf]
        %v703 = vld [vmem:[#allocation2 + $0x34] sm:$0xf]
        %v704 = vld [vmem:[#allocation2 + $0x38] sm:$0xf]
        %v705 = vld [vmem:[#allocation2 + $0x3c] sm:$0xf]
        %v706 = vld [vmem:[#allocation6] sm:$0xf]
        %v707 = vld [vmem:[#allocation6 + $0x4] sm:$0xf]
        %v708 = vld [vmem:[#allocation6 + $0x8] sm:$0xf]
        %v709 = vld [vmem:[#allocation6 + $0xc] sm:$0xf]
        %v710 = vld [vmem:[#allocation6 + $0x10] sm:$0xf]
        %v711 = vld [vmem:[#allocation6 + $0x14] sm:$0xf]
        %v712 = vld [vmem:[#allocation6 + $0x18] sm:$0xf]
        %v713 = vld [vmem:[#allocation6 + $0x1c] sm:$0xf]
        %v714 = vld [vmem:[#allocation6 + $0x20] sm:$0xf]
        %v715 = vld [vmem:[#allocation6 + $0x24] sm:$0xf]
        %v716 = vld [vmem:[#allocation6 + $0x28] sm:$0xf]
        %v717 = vld [vmem:[#allocation6 + $0x2c] sm:$0xf]
        %v718 = vld [vmem:[#allocation6 + $0x30] sm:$0xf]
        %v719 = vld [vmem:[#allocation6 + $0x34] sm:$0xf]
        %v720 = vld [vmem:[#allocation6 + $0x38] sm:$0xf]
        %v721 = vld [vmem:[#allocation6 + $0x3c] sm:$0xf]
        %s722 = scalar_lea.vmem [#allocation2], 144
        %v723 = vld [vmem:[%s722] sm:$0xf]
        %v724 = vld [vmem:[%s722 + $0x4] sm:$0xf]
        %v725 = vld [vmem:[%s722 + $0x8] sm:$0xf]
        %v726 = vld [vmem:[%s722 + $0xc] sm:$0xf]
        %v727 = vld [vmem:[%s722 + $0x10] sm:$0xf]
        %v728 = vld [vmem:[%s722 + $0x14] sm:$0xf]
        %v729 = vld [vmem:[%s722 + $0x18] sm:$0xf]
        %v730 = vld [vmem:[%s722 + $0x1c] sm:$0xf]
        %v731 = vld [vmem:[%s722 + $0x20] sm:$0xf]
        %v732 = vld [vmem:[%s722 + $0x24] sm:$0xf]
        %v733 = vld [vmem:[%s722 + $0x28] sm:$0xf]
        %v734 = vld [vmem:[%s722 + $0x2c] sm:$0xf]
        %v735 = vld [vmem:[%s722 + $0x30] sm:$0xf]
        %v736 = vld [vmem:[%s722 + $0x34] sm:$0xf]
        %v737 = vld [vmem:[%s722 + $0x38] sm:$0xf]
        %v738 = vld [vmem:[%s722 + $0x3c] sm:$0xf]
        %s739 = scalar_lea.vmem [#allocation6], 64
        %v740 = vld [vmem:[%s739] sm:$0xf]
        %v741 = vld [vmem:[%s739 + $0x4] sm:$0xf]
        %v742 = vld [vmem:[%s739 + $0x8] sm:$0xf]
        %v743 = vld [vmem:[%s739 + $0xc] sm:$0xf]
        %v744 = vld [vmem:[%s739 + $0x10] sm:$0xf]
        %v745 = vld [vmem:[%s739 + $0x14] sm:$0xf]
        %v746 = vld [vmem:[%s739 + $0x18] sm:$0xf]
        %v747 = vld [vmem:[%s739 + $0x1c] sm:$0xf]
        %v748 = vld [vmem:[%s739 + $0x20] sm:$0xf]
        %v749 = vld [vmem:[%s739 + $0x24] sm:$0xf]
        %v750 = vld [vmem:[%s739 + $0x28] sm:$0xf]
        %v751 = vld [vmem:[%s739 + $0x2c] sm:$0xf]
        %v752 = vld [vmem:[%s739 + $0x30] sm:$0xf]
        %v753 = vld [vmem:[%s739 + $0x34] sm:$0xf]
        %v754 = vld [vmem:[%s739 + $0x38] sm:$0xf]
        %v755 = vld [vmem:[%s739 + $0x3c] sm:$0xf]
        %v772 = vunpack.c.l.b16 %v723
        %v773 = vunpack.c.l.b16 %v724
        %v774 = vunpack.c.l.b16 %v725
        %v775 = vunpack.c.l.b16 %v726
        %v776 = vunpack.c.l.b16 %v727
        %v777 = vunpack.c.l.b16 %v728
        %v778 = vunpack.c.l.b16 %v729
        %v779 = vunpack.c.l.b16 %v730
        %v780 = vunpack.c.l.b16 %v731
        %v781 = vunpack.c.l.b16 %v732
        %v782 = vunpack.c.l.b16 %v733
        %v783 = vunpack.c.l.b16 %v734
        %v784 = vunpack.c.l.b16 %v735
        %v785 = vunpack.c.l.b16 %v736
        %v786 = vunpack.c.l.b16 %v737
        %v787 = vunpack.c.l.b16 %v738
        %v788 = vpack.c.b16 %v773, %v772
        %v789 = vpack.c.b16 %v775, %v774
        %v790 = vpack.c.b16 %v777, %v776
        %v791 = vpack.c.b16 %v779, %v778
        %v792 = vpack.c.b16 %v781, %v780
        %v793 = vpack.c.b16 %v783, %v782
        %v794 = vpack.c.b16 %v785, %v784
        %v795 = vpack.c.b16 %v787, %v786
        %v820 = vunpack.c.l.b16 %v740
        %v821 = vunpack.c.l.b16 %v741
        %v822 = vunpack.c.l.b16 %v742
        %v823 = vunpack.c.l.b16 %v743
        %v824 = vunpack.c.l.b16 %v744
        %v825 = vunpack.c.l.b16 %v745
        %v826 = vunpack.c.l.b16 %v746
        %v827 = vunpack.c.l.b16 %v747
        %v828 = vunpack.c.l.b16 %v748
        %v829 = vunpack.c.l.b16 %v749
        %v830 = vunpack.c.l.b16 %v750
        %v831 = vunpack.c.l.b16 %v751
        %v832 = vunpack.c.l.b16 %v752
        %v833 = vunpack.c.l.b16 %v753
        %v834 = vunpack.c.l.b16 %v754
        %v835 = vunpack.c.l.b16 %v755
        %v836 = vpack.c.b16 %v821, %v820
        %v837 = vpack.c.b16 %v823, %v822
        %v838 = vpack.c.b16 %v825, %v824
        %v839 = vpack.c.b16 %v827, %v826
        %v840 = vpack.c.b16 %v829, %v828
        %v841 = vpack.c.b16 %v831, %v830
        %v842 = vpack.c.b16 %v833, %v832
        %v843 = vpack.c.b16 %v835, %v834
        %852 = vmatpush.bf16.msra.mxu0 %v843
        %853 = vmatpush.bf16.msra.mxu0 %v842
        %854 = vmatpush.bf16.msra.mxu0 %v841
        %855 = vmatpush.bf16.msra.mxu0 %v840
        %856 = vmatpush.bf16.msra.mxu0 %v839
        %857 = vmatpush.bf16.msra.mxu0 %v838
        %858 = vmatpush.bf16.msra.mxu0 %v837
        %859 = vmatpush.bf16.msra.mxu0 %v836
        %860 = vmatmul.bf16.gmra.mxu0 %v788
        %v861 = vpop.f32.mrf.mxu0
        %v862 = vadd.f32 0.0, %v861
        %v863 = vpop.f32.mrf.mxu0
        %v864 = vadd.f32 0.0, %v863
        %865 = vmatmul.bf16.gmra.mxu0 %v789
        %v866 = vpop.f32.mrf.mxu0
        %v867 = vadd.f32 0.0, %v866
        %v868 = vpop.f32.mrf.mxu0
        %v869 = vadd.f32 0.0, %v868
        %870 = vmatmul.bf16.gmra.mxu0 %v790
        %v871 = vpop.f32.mrf.mxu0
        %v872 = vadd.f32 0.0, %v871
        %v873 = vpop.f32.mrf.mxu0
        %v874 = vadd.f32 0.0, %v873
        %875 = vmatmul.bf16.gmra.mxu0 %v791
        %v876 = vpop.f32.mrf.mxu0
        %v877 = vadd.f32 0.0, %v876
        %v878 = vpop.f32.mrf.mxu0
        %v879 = vadd.f32 0.0, %v878
        %880 = vmatmul.bf16.gmra.mxu0 %v792
        %v881 = vpop.f32.mrf.mxu0
        %v882 = vadd.f32 0.0, %v881
        %v883 = vpop.f32.mrf.mxu0
        %v884 = vadd.f32 0.0, %v883
        %885 = vmatmul.bf16.gmra.mxu0 %v793
        %v886 = vpop.f32.mrf.mxu0
        %v887 = vadd.f32 0.0, %v886
        %v888 = vpop.f32.mrf.mxu0
        %v889 = vadd.f32 0.0, %v888
        %890 = vmatmul.bf16.gmra.mxu0 %v794
        %v891 = vpop.f32.mrf.mxu0
        %v892 = vadd.f32 0.0, %v891
        %v893 = vpop.f32.mrf.mxu0
        %v894 = vadd.f32 0.0, %v893
        %895 = vmatmul.bf16.gmra.mxu0 %v795
        %v896 = vpop.f32.mrf.mxu0
        %v897 = vadd.f32 0.0, %v896
        %v898 = vpop.f32.mrf.mxu0
        %v899 = vadd.f32 0.0, %v898
        %900 = vdwg.mxu0
        %v917 = vunpack.c.l.b16 %v690
        %v918 = vunpack.c.l.b16 %v691
        %v919 = vunpack.c.l.b16 %v692
        %v920 = vunpack.c.l.b16 %v693
        %v921 = vunpack.c.l.b16 %v694
        %v922 = vunpack.c.l.b16 %v695
        %v923 = vunpack.c.l.b16 %v696
        %v924 = vunpack.c.l.b16 %v697
        %v925 = vunpack.c.l.b16 %v698
        %v926 = vunpack.c.l.b16 %v699
        %v927 = vunpack.c.l.b16 %v700
        %v928 = vunpack.c.l.b16 %v701
        %v929 = vunpack.c.l.b16 %v702
        %v930 = vunpack.c.l.b16 %v703
        %v931 = vunpack.c.l.b16 %v704
        %v932 = vunpack.c.l.b16 %v705
        %v933 = vpack.c.b16 %v918, %v917
        %v934 = vpack.c.b16 %v920, %v919
        %v935 = vpack.c.b16 %v922, %v921
        %v936 = vpack.c.b16 %v924, %v923
        %v937 = vpack.c.b16 %v926, %v925
        %v938 = vpack.c.b16 %v928, %v927
        %v939 = vpack.c.b16 %v930, %v929
        %v940 = vpack.c.b16 %v932, %v931
        %v965 = vunpack.c.l.b16 %v706
        %v966 = vunpack.c.l.b16 %v707
        %v967 = vunpack.c.l.b16 %v708
        %v968 = vunpack.c.l.b16 %v709
        %v969 = vunpack.c.l.b16 %v710
        %v970 = vunpack.c.l.b16 %v711
        %v971 = vunpack.c.l.b16 %v712
        %v972 = vunpack.c.l.b16 %v713
        %v973 = vunpack.c.l.b16 %v714
        %v974 = vunpack.c.l.b16 %v715
        %v975 = vunpack.c.l.b16 %v716
        %v976 = vunpack.c.l.b16 %v717
        %v977 = vunpack.c.l.b16 %v718
        %v978 = vunpack.c.l.b16 %v719
        %v979 = vunpack.c.l.b16 %v720
        %v980 = vunpack.c.l.b16 %v721
        %v981 = vpack.c.b16 %v966, %v965
        %v982 = vpack.c.b16 %v968, %v967
        %v983 = vpack.c.b16 %v970, %v969
        %v984 = vpack.c.b16 %v972, %v971
        %v985 = vpack.c.b16 %v974, %v973
        %v986 = vpack.c.b16 %v976, %v975
        %v987 = vpack.c.b16 %v978, %v977
        %v988 = vpack.c.b16 %v980, %v979
        %997 = vmatpush.bf16.msra.mxu0 %v988
        %998 = vmatpush.bf16.msra.mxu0 %v987
        %999 = vmatpush.bf16.msra.mxu0 %v986
        %1000 = vmatpush.bf16.msra.mxu0 %v985
        %1001 = vmatpush.bf16.msra.mxu0 %v984
        %1002 = vmatpush.bf16.msra.mxu0 %v983
        %1003 = vmatpush.bf16.msra.mxu0 %v982
        %1004 = vmatpush.bf16.msra.mxu0 %v981
        %1005 = vmatmul.bf16.gmra.mxu0 %v933
        %v1006 = vpop.f32.mrf.mxu0
        %v1007 = vadd.f32 %v862, %v1006
        %v1008 = vpop.f32.mrf.mxu0
        %v1009 = vadd.f32 %v864, %v1008
        %1010 = vmatmul.bf16.gmra.mxu0 %v934
        %v1011 = vpop.f32.mrf.mxu0
        %v1012 = vadd.f32 %v867, %v1011
        %v1013 = vpop.f32.mrf.mxu0
        %v1014 = vadd.f32 %v869, %v1013
        %1015 = vmatmul.bf16.gmra.mxu0 %v935
        %v1016 = vpop.f32.mrf.mxu0
        %v1017 = vadd.f32 %v872, %v1016
        %v1018 = vpop.f32.mrf.mxu0
        %v1019 = vadd.f32 %v874, %v1018
        %1020 = vmatmul.bf16.gmra.mxu0 %v936
        %v1021 = vpop.f32.mrf.mxu0
        %v1022 = vadd.f32 %v877, %v1021
        %v1023 = vpop.f32.mrf.mxu0
        %v1024 = vadd.f32 %v879, %v1023
        %1025 = vmatmul.bf16.gmra.mxu0 %v937
        %v1026 = vpop.f32.mrf.mxu0
        %v1027 = vadd.f32 %v882, %v1026
        %v1028 = vpop.f32.mrf.mxu0
        %v1029 = vadd.f32 %v884, %v1028
        %1030 = vmatmul.bf16.gmra.mxu0 %v938
        %v1031 = vpop.f32.mrf.mxu0
        %v1032 = vadd.f32 %v887, %v1031
        %v1033 = vpop.f32.mrf.mxu0
        %v1034 = vadd.f32 %v889, %v1033
        %1035 = vmatmul.bf16.gmra.mxu0 %v939
        %v1036 = vpop.f32.mrf.mxu0
        %v1037 = vadd.f32 %v892, %v1036
        %v1038 = vpop.f32.mrf.mxu0
        %v1039 = vadd.f32 %v894, %v1038
        %1040 = vmatmul.bf16.gmra.mxu0 %v940
        %v1041 = vpop.f32.mrf.mxu0
        %v1042 = vadd.f32 %v897, %v1041
        %v1043 = vpop.f32.mrf.mxu0
        %v1044 = vadd.f32 %v899, %v1043
        %1045 = vdwg.mxu0
        %s1046 = scalar_lea.vmem [#allocation2], 288
        %v1047 = vld [vmem:[%s1046] sm:$0xf]
        %v1048 = vld [vmem:[%s1046 + $0x4] sm:$0xf]
        %v1049 = vld [vmem:[%s1046 + $0x8] sm:$0xf]
        %v1050 = vld [vmem:[%s1046 + $0xc] sm:$0xf]
        %v1051 = vld [vmem:[%s1046 + $0x10] sm:$0xf]
        %v1052 = vld [vmem:[%s1046 + $0x14] sm:$0xf]
        %v1053 = vld [vmem:[%s1046 + $0x18] sm:$0xf]
        %v1054 = vld [vmem:[%s1046 + $0x1c] sm:$0xf]
        %v1055 = vld [vmem:[%s1046 + $0x20] sm:$0xf]
        %v1056 = vld [vmem:[%s1046 + $0x24] sm:$0xf]
        %v1057 = vld [vmem:[%s1046 + $0x28] sm:$0xf]
        %v1058 = vld [vmem:[%s1046 + $0x2c] sm:$0xf]
        %v1059 = vld [vmem:[%s1046 + $0x30] sm:$0xf]
        %v1060 = vld [vmem:[%s1046 + $0x34] sm:$0xf]
        %v1061 = vld [vmem:[%s1046 + $0x38] sm:$0xf]
        %v1062 = vld [vmem:[%s1046 + $0x3c] sm:$0xf]
        %s1063 = scalar_lea.vmem [#allocation6], 128
        %v1064 = vld [vmem:[%s1063] sm:$0xf]
        %v1065 = vld [vmem:[%s1063 + $0x4] sm:$0xf]
        %v1066 = vld [vmem:[%s1063 + $0x8] sm:$0xf]
        %v1067 = vld [vmem:[%s1063 + $0xc] sm:$0xf]
        %v1068 = vld [vmem:[%s1063 + $0x10] sm:$0xf]
        %v1069 = vld [vmem:[%s1063 + $0x14] sm:$0xf]
        %v1070 = vld [vmem:[%s1063 + $0x18] sm:$0xf]
        %v1071 = vld [vmem:[%s1063 + $0x1c] sm:$0xf]
        %v1072 = vld [vmem:[%s1063 + $0x20] sm:$0xf]
        %v1073 = vld [vmem:[%s1063 + $0x24] sm:$0xf]
        %v1074 = vld [vmem:[%s1063 + $0x28] sm:$0xf]
        %v1075 = vld [vmem:[%s1063 + $0x2c] sm:$0xf]
        %v1076 = vld [vmem:[%s1063 + $0x30] sm:$0xf]
        %v1077 = vld [vmem:[%s1063 + $0x34] sm:$0xf]
        %v1078 = vld [vmem:[%s1063 + $0x38] sm:$0xf]
        %v1079 = vld [vmem:[%s1063 + $0x3c] sm:$0xf]
        %v1096 = vunpack.c.l.b16 %v1047
        %v1097 = vunpack.c.l.b16 %v1048
        %v1098 = vunpack.c.l.b16 %v1049
        %v1099 = vunpack.c.l.b16 %v1050
        %v1100 = vunpack.c.l.b16 %v1051
        %v1101 = vunpack.c.l.b16 %v1052
        %v1102 = vunpack.c.l.b16 %v1053
        %v1103 = vunpack.c.l.b16 %v1054
        %v1104 = vunpack.c.l.b16 %v1055
        %v1105 = vunpack.c.l.b16 %v1056
        %v1106 = vunpack.c.l.b16 %v1057
        %v1107 = vunpack.c.l.b16 %v1058
        %v1108 = vunpack.c.l.b16 %v1059
        %v1109 = vunpack.c.l.b16 %v1060
        %v1110 = vunpack.c.l.b16 %v1061
        %v1111 = vunpack.c.l.b16 %v1062
        %v1112 = vpack.c.b16 %v1097, %v1096
        %v1113 = vpack.c.b16 %v1099, %v1098
        %v1114 = vpack.c.b16 %v1101, %v1100
        %v1115 = vpack.c.b16 %v1103, %v1102
        %v1116 = vpack.c.b16 %v1105, %v1104
        %v1117 = vpack.c.b16 %v1107, %v1106
        %v1118 = vpack.c.b16 %v1109, %v1108
        %v1119 = vpack.c.b16 %v1111, %v1110
        %v1144 = vunpack.c.l.b16 %v1064
        %v1145 = vunpack.c.l.b16 %v1065
        %v1146 = vunpack.c.l.b16 %v1066
        %v1147 = vunpack.c.l.b16 %v1067
        %v1148 = vunpack.c.l.b16 %v1068
        %v1149 = vunpack.c.l.b16 %v1069
        %v1150 = vunpack.c.l.b16 %v1070
        %v1151 = vunpack.c.l.b16 %v1071
        %v1152 = vunpack.c.l.b16 %v1072
        %v1153 = vunpack.c.l.b16 %v1073
        %v1154 = vunpack.c.l.b16 %v1074
        %v1155 = vunpack.c.l.b16 %v1075
        %v1156 = vunpack.c.l.b16 %v1076
        %v1157 = vunpack.c.l.b16 %v1077
        %v1158 = vunpack.c.l.b16 %v1078
        %v1159 = vunpack.c.l.b16 %v1079
        %v1160 = vpack.c.b16 %v1145, %v1144
        %v1161 = vpack.c.b16 %v1147, %v1146
        %v1162 = vpack.c.b16 %v1149, %v1148
        %v1163 = vpack.c.b16 %v1151, %v1150
        %v1164 = vpack.c.b16 %v1153, %v1152
        %v1165 = vpack.c.b16 %v1155, %v1154
        %v1166 = vpack.c.b16 %v1157, %v1156
        %v1167 = vpack.c.b16 %v1159, %v1158
        %1176 = vmatpush.bf16.msra.mxu0 %v1167
        %1177 = vmatpush.bf16.msra.mxu0 %v1166
        %1178 = vmatpush.bf16.msra.mxu0 %v1165
        %1179 = vmatpush.bf16.msra.mxu0 %v1164
        %1180 = vmatpush.bf16.msra.mxu0 %v1163
        %1181 = vmatpush.bf16.msra.mxu0 %v1162
        %1182 = vmatpush.bf16.msra.mxu0 %v1161
        %1183 = vmatpush.bf16.msra.mxu0 %v1160
        %1184 = vmatmul.bf16.gmra.mxu0 %v1112
        %v1185 = vpop.f32.mrf.mxu0
        %v1186 = vadd.f32 0.0, %v1185
        %v1187 = vpop.f32.mrf.mxu0
        %v1188 = vadd.f32 0.0, %v1187
        %1189 = vmatmul.bf16.gmra.mxu0 %v1113
        %v1190 = vpop.f32.mrf.mxu0
        %v1191 = vadd.f32 0.0, %v1190
        %v1192 = vpop.f32.mrf.mxu0
        %v1193 = vadd.f32 0.0, %v1192
        %1194 = vmatmul.bf16.gmra.mxu0 %v1114
        %v1195 = vpop.f32.mrf.mxu0
        %v1196 = vadd.f32 0.0, %v1195
        %v1197 = vpop.f32.mrf.mxu0
        %v1198 = vadd.f32 0.0, %v1197
        %1199 = vmatmul.bf16.gmra.mxu0 %v1115
        %v1200 = vpop.f32.mrf.mxu0
        %v1201 = vadd.f32 0.0, %v1200
        %v1202 = vpop.f32.mrf.mxu0
        %v1203 = vadd.f32 0.0, %v1202
        %1204 = vmatmul.bf16.gmra.mxu0 %v1116
        %v1205 = vpop.f32.mrf.mxu0
        %v1206 = vadd.f32 0.0, %v1205
        %v1207 = vpop.f32.mrf.mxu0
        %v1208 = vadd.f32 0.0, %v1207
        %1209 = vmatmul.bf16.gmra.mxu0 %v1117
        %v1210 = vpop.f32.mrf.mxu0
        %v1211 = vadd.f32 0.0, %v1210
        %v1212 = vpop.f32.mrf.mxu0
        %v1213 = vadd.f32 0.0, %v1212
        %1214 = vmatmul.bf16.gmra.mxu0 %v1118
        %v1215 = vpop.f32.mrf.mxu0
        %v1216 = vadd.f32 0.0, %v1215
        %v1217 = vpop.f32.mrf.mxu0
        %v1218 = vadd.f32 0.0, %v1217
        %1219 = vmatmul.bf16.gmra.mxu0 %v1119
        %v1220 = vpop.f32.mrf.mxu0
        %v1221 = vadd.f32 0.0, %v1220
        %v1222 = vpop.f32.mrf.mxu0
        %v1223 = vadd.f32 0.0, %v1222
        %1224 = vdwg.mxu0
        %v1225 = vadd.f32 %v1007, %v1186
        %v1226 = vadd.f32 %v1009, %v1188
        %v1227 = vadd.f32 %v1012, %v1191
        %v1228 = vadd.f32 %v1014, %v1193
        %v1229 = vadd.f32 %v1017, %v1196
        %v1230 = vadd.f32 %v1019, %v1198
        %v1231 = vadd.f32 %v1022, %v1201
        %v1232 = vadd.f32 %v1024, %v1203
        %v1233 = vadd.f32 %v1027, %v1206
        %v1234 = vadd.f32 %v1029, %v1208
        %v1235 = vadd.f32 %v1032, %v1211
        %v1236 = vadd.f32 %v1034, %v1213
        %v1237 = vadd.f32 %v1037, %v1216
        %v1238 = vadd.f32 %v1039, %v1218
        %v1239 = vadd.f32 %v1042, %v1221
        %v1240 = vadd.f32 %v1044, %v1223
        %v1241 = vld [vmem:[%s476] sm:$0xf]
        %v1242 = vld [vmem:[%s476 + $0x4] sm:$0xf]
        %v1243 = vld [vmem:[%s476 + $0x8] sm:$0xf]
        %v1244 = vld [vmem:[%s476 + $0xc] sm:$0xf]
        %v1245 = vld [vmem:[%s476 + $0x10] sm:$0xf]
        %v1246 = vld [vmem:[%s476 + $0x14] sm:$0xf]
        %v1247 = vld [vmem:[%s476 + $0x18] sm:$0xf]
        %v1248 = vld [vmem:[%s476 + $0x1c] sm:$0xf]
        %v1249 = vld [vmem:[%s476 + $0x20] sm:$0xf]
        %v1250 = vld [vmem:[%s476 + $0x24] sm:$0xf]
        %v1251 = vld [vmem:[%s476 + $0x28] sm:$0xf]
        %v1252 = vld [vmem:[%s476 + $0x2c] sm:$0xf]
        %v1253 = vld [vmem:[%s476 + $0x30] sm:$0xf]
        %v1254 = vld [vmem:[%s476 + $0x34] sm:$0xf]
        %v1255 = vld [vmem:[%s476 + $0x38] sm:$0xf]
        %v1256 = vld [vmem:[%s476 + $0x3c] sm:$0xf]
        %s1257 = scalar_lea.vmem [#allocation6], 192
        %v1258 = vld [vmem:[%s1257] sm:$0xf]
        %v1259 = vld [vmem:[%s1257 + $0x4] sm:$0xf]
        %v1260 = vld [vmem:[%s1257 + $0x8] sm:$0xf]
        %v1261 = vld [vmem:[%s1257 + $0xc] sm:$0xf]
        %v1262 = vld [vmem:[%s1257 + $0x10] sm:$0xf]
        %v1263 = vld [vmem:[%s1257 + $0x14] sm:$0xf]
        %v1264 = vld [vmem:[%s1257 + $0x18] sm:$0xf]
        %v1265 = vld [vmem:[%s1257 + $0x1c] sm:$0xf]
        %v1266 = vld [vmem:[%s1257 + $0x20] sm:$0xf]
        %v1267 = vld [vmem:[%s1257 + $0x24] sm:$0xf]
        %v1268 = vld [vmem:[%s1257 + $0x28] sm:$0xf]
        %v1269 = vld [vmem:[%s1257 + $0x2c] sm:$0xf]
        %v1270 = vld [vmem:[%s1257 + $0x30] sm:$0xf]
        %v1271 = vld [vmem:[%s1257 + $0x34] sm:$0xf]
        %v1272 = vld [vmem:[%s1257 + $0x38] sm:$0xf]
        %v1273 = vld [vmem:[%s1257 + $0x3c] sm:$0xf]
        %v1290 = vunpack.c.l.b16 %v1241
        %v1291 = vunpack.c.l.b16 %v1242
        %v1292 = vunpack.c.l.b16 %v1243
        %v1293 = vunpack.c.l.b16 %v1244
        %v1294 = vunpack.c.l.b16 %v1245
        %v1295 = vunpack.c.l.b16 %v1246
        %v1296 = vunpack.c.l.b16 %v1247
        %v1297 = vunpack.c.l.b16 %v1248
        %v1298 = vunpack.c.l.b16 %v1249
        %v1299 = vunpack.c.l.b16 %v1250
        %v1300 = vunpack.c.l.b16 %v1251
        %v1301 = vunpack.c.l.b16 %v1252
        %v1302 = vunpack.c.l.b16 %v1253
        %v1303 = vunpack.c.l.b16 %v1254
        %v1304 = vunpack.c.l.b16 %v1255
        %v1305 = vunpack.c.l.b16 %v1256
        %v1306 = vpack.c.b16 %v1291, %v1290
        %v1307 = vpack.c.b16 %v1293, %v1292
        %v1308 = vpack.c.b16 %v1295, %v1294
        %v1309 = vpack.c.b16 %v1297, %v1296
        %v1310 = vpack.c.b16 %v1299, %v1298
        %v1311 = vpack.c.b16 %v1301, %v1300
        %v1312 = vpack.c.b16 %v1303, %v1302
        %v1313 = vpack.c.b16 %v1305, %v1304
        %v1338 = vunpack.c.l.b16 %v1258
        %v1339 = vunpack.c.l.b16 %v1259
        %v1340 = vunpack.c.l.b16 %v1260
        %v1341 = vunpack.c.l.b16 %v1261
        %v1342 = vunpack.c.l.b16 %v1262
        %v1343 = vunpack.c.l.b16 %v1263
        %v1344 = vunpack.c.l.b16 %v1264
        %v1345 = vunpack.c.l.b16 %v1265
        %v1346 = vunpack.c.l.b16 %v1266
        %v1347 = vunpack.c.l.b16 %v1267
        %v1348 = vunpack.c.l.b16 %v1268
        %v1349 = vunpack.c.l.b16 %v1269
        %v1350 = vunpack.c.l.b16 %v1270
        %v1351 = vunpack.c.l.b16 %v1271
        %v1352 = vunpack.c.l.b16 %v1272
        %v1353 = vunpack.c.l.b16 %v1273
        %v1354 = vpack.c.b16 %v1339, %v1338
        %v1355 = vpack.c.b16 %v1341, %v1340
        %v1356 = vpack.c.b16 %v1343, %v1342
        %v1357 = vpack.c.b16 %v1345, %v1344
        %v1358 = vpack.c.b16 %v1347, %v1346
        %v1359 = vpack.c.b16 %v1349, %v1348
        %v1360 = vpack.c.b16 %v1351, %v1350
        %v1361 = vpack.c.b16 %v1353, %v1352
        %1370 = vmatpush.bf16.msra.mxu0 %v1361
        %1371 = vmatpush.bf16.msra.mxu0 %v1360
        %1372 = vmatpush.bf16.msra.mxu0 %v1359
        %1373 = vmatpush.bf16.msra.mxu0 %v1358
        %1374 = vmatpush.bf16.msra.mxu0 %v1357
        %1375 = vmatpush.bf16.msra.mxu0 %v1356
        %1376 = vmatpush.bf16.msra.mxu0 %v1355
        %1377 = vmatpush.bf16.msra.mxu0 %v1354
        %1378 = vmatmul.bf16.gmra.mxu0 %v1306
        %v1379 = vpop.f32.mrf.mxu0
        %v1380 = vadd.f32 0.0, %v1379
        %v1381 = vpop.f32.mrf.mxu0
        %v1382 = vadd.f32 0.0, %v1381
        %1383 = vmatmul.bf16.gmra.mxu0 %v1307
        %v1384 = vpop.f32.mrf.mxu0
        %v1385 = vadd.f32 0.0, %v1384
        %v1386 = vpop.f32.mrf.mxu0
        %v1387 = vadd.f32 0.0, %v1386
        %1388 = vmatmul.bf16.gmra.mxu0 %v1308
        %v1389 = vpop.f32.mrf.mxu0
        %v1390 = vadd.f32 0.0, %v1389
        %v1391 = vpop.f32.mrf.mxu0
        %v1392 = vadd.f32 0.0, %v1391
        %1393 = vmatmul.bf16.gmra.mxu0 %v1309
        %v1394 = vpop.f32.mrf.mxu0
        %v1395 = vadd.f32 0.0, %v1394
        %v1396 = vpop.f32.mrf.mxu0
        %v1397 = vadd.f32 0.0, %v1396
        %1398 = vmatmul.bf16.gmra.mxu0 %v1310
        %v1399 = vpop.f32.mrf.mxu0
        %v1400 = vadd.f32 0.0, %v1399
        %v1401 = vpop.f32.mrf.mxu0
        %v1402 = vadd.f32 0.0, %v1401
        %1403 = vmatmul.bf16.gmra.mxu0 %v1311
        %v1404 = vpop.f32.mrf.mxu0
        %v1405 = vadd.f32 0.0, %v1404
        %v1406 = vpop.f32.mrf.mxu0
        %v1407 = vadd.f32 0.0, %v1406
        %1408 = vmatmul.bf16.gmra.mxu0 %v1312
        %v1409 = vpop.f32.mrf.mxu0
        %v1410 = vadd.f32 0.0, %v1409
        %v1411 = vpop.f32.mrf.mxu0
        %v1412 = vadd.f32 0.0, %v1411
        %1413 = vmatmul.bf16.gmra.mxu0 %v1313
        %v1414 = vpop.f32.mrf.mxu0
        %v1415 = vadd.f32 0.0, %v1414
        %v1416 = vpop.f32.mrf.mxu0
        %v1417 = vadd.f32 0.0, %v1416
        %1418 = vdwg.mxu0
        %v1419 = vadd.f32 %v1225, %v1380
        %v1420 = vadd.f32 %v1226, %v1382
        %v1421 = vadd.f32 %v1227, %v1385
        %v1422 = vadd.f32 %v1228, %v1387
        %v1423 = vadd.f32 %v1229, %v1390
        %v1424 = vadd.f32 %v1230, %v1392
        %v1425 = vadd.f32 %v1231, %v1395
        %v1426 = vadd.f32 %v1232, %v1397
        %v1427 = vadd.f32 %v1233, %v1400
        %v1428 = vadd.f32 %v1234, %v1402
        %v1429 = vadd.f32 %v1235, %v1405
        %v1430 = vadd.f32 %v1236, %v1407
        %v1431 = vadd.f32 %v1237, %v1410
        %v1432 = vadd.f32 %v1238, %v1412
        %v1433 = vadd.f32 %v1239, %v1415
        %v1434 = vadd.f32 %v1240, %v1417
        %v1435 = vld [vmem:[%s308] sm:$0xf]
        %v1436 = vld [vmem:[%s308 + $0x4] sm:$0xf]
        %v1437 = vld [vmem:[%s308 + $0x8] sm:$0xf]
        %v1438 = vld [vmem:[%s308 + $0xc] sm:$0xf]
        %v1439 = vld [vmem:[%s308 + $0x10] sm:$0xf]
        %v1440 = vld [vmem:[%s308 + $0x14] sm:$0xf]
        %v1441 = vld [vmem:[%s308 + $0x18] sm:$0xf]
        %v1442 = vld [vmem:[%s308 + $0x1c] sm:$0xf]
        %v1443 = vld [vmem:[%s308 + $0x20] sm:$0xf]
        %v1444 = vld [vmem:[%s308 + $0x24] sm:$0xf]
        %v1445 = vld [vmem:[%s308 + $0x28] sm:$0xf]
        %v1446 = vld [vmem:[%s308 + $0x2c] sm:$0xf]
        %v1447 = vld [vmem:[%s308 + $0x30] sm:$0xf]
        %v1448 = vld [vmem:[%s308 + $0x34] sm:$0xf]
        %v1449 = vld [vmem:[%s308 + $0x38] sm:$0xf]
        %v1450 = vld [vmem:[%s308 + $0x3c] sm:$0xf]
        %s1451 = scalar_lea.vmem [#allocation6], 256
        %v1452 = vld [vmem:[%s1451] sm:$0xf]
        %v1453 = vld [vmem:[%s1451 + $0x4] sm:$0xf]
        %v1454 = vld [vmem:[%s1451 + $0x8] sm:$0xf]
        %v1455 = vld [vmem:[%s1451 + $0xc] sm:$0xf]
        %v1456 = vld [vmem:[%s1451 + $0x10] sm:$0xf]
        %v1457 = vld [vmem:[%s1451 + $0x14] sm:$0xf]
        %v1458 = vld [vmem:[%s1451 + $0x18] sm:$0xf]
        %v1459 = vld [vmem:[%s1451 + $0x1c] sm:$0xf]
        %v1460 = vld [vmem:[%s1451 + $0x20] sm:$0xf]
        %v1461 = vld [vmem:[%s1451 + $0x24] sm:$0xf]
        %v1462 = vld [vmem:[%s1451 + $0x28] sm:$0xf]
        %v1463 = vld [vmem:[%s1451 + $0x2c] sm:$0xf]
        %v1464 = vld [vmem:[%s1451 + $0x30] sm:$0xf]
        %v1465 = vld [vmem:[%s1451 + $0x34] sm:$0xf]
        %v1466 = vld [vmem:[%s1451 + $0x38] sm:$0xf]
        %v1467 = vld [vmem:[%s1451 + $0x3c] sm:$0xf]
        %v1484 = vunpack.c.l.b16 %v1435
        %v1485 = vunpack.c.l.b16 %v1436
        %v1486 = vunpack.c.l.b16 %v1437
        %v1487 = vunpack.c.l.b16 %v1438
        %v1488 = vunpack.c.l.b16 %v1439
        %v1489 = vunpack.c.l.b16 %v1440
        %v1490 = vunpack.c.l.b16 %v1441
        %v1491 = vunpack.c.l.b16 %v1442
        %v1492 = vunpack.c.l.b16 %v1443
        %v1493 = vunpack.c.l.b16 %v1444
        %v1494 = vunpack.c.l.b16 %v1445
        %v1495 = vunpack.c.l.b16 %v1446
        %v1496 = vunpack.c.l.b16 %v1447
        %v1497 = vunpack.c.l.b16 %v1448
        %v1498 = vunpack.c.l.b16 %v1449
        %v1499 = vunpack.c.l.b16 %v1450
        %v1500 = vpack.c.b16 %v1485, %v1484
        %v1501 = vpack.c.b16 %v1487, %v1486
        %v1502 = vpack.c.b16 %v1489, %v1488
        %v1503 = vpack.c.b16 %v1491, %v1490
        %v1504 = vpack.c.b16 %v1493, %v1492
        %v1505 = vpack.c.b16 %v1495, %v1494
        %v1506 = vpack.c.b16 %v1497, %v1496
        %v1507 = vpack.c.b16 %v1499, %v1498
        %v1532 = vunpack.c.l.b16 %v1452
        %v1533 = vunpack.c.l.b16 %v1453
        %v1534 = vunpack.c.l.b16 %v1454
        %v1535 = vunpack.c.l.b16 %v1455
        %v1536 = vunpack.c.l.b16 %v1456
        %v1537 = vunpack.c.l.b16 %v1457
        %v1538 = vunpack.c.l.b16 %v1458
        %v1539 = vunpack.c.l.b16 %v1459
        %v1540 = vunpack.c.l.b16 %v1460
        %v1541 = vunpack.c.l.b16 %v1461
        %v1542 = vunpack.c.l.b16 %v1462
        %v1543 = vunpack.c.l.b16 %v1463
        %v1544 = vunpack.c.l.b16 %v1464
        %v1545 = vunpack.c.l.b16 %v1465
        %v1546 = vunpack.c.l.b16 %v1466
        %v1547 = vunpack.c.l.b16 %v1467
        %v1548 = vpack.c.b16 %v1533, %v1532
        %v1549 = vpack.c.b16 %v1535, %v1534
        %v1550 = vpack.c.b16 %v1537, %v1536
        %v1551 = vpack.c.b16 %v1539, %v1538
        %v1552 = vpack.c.b16 %v1541, %v1540
        %v1553 = vpack.c.b16 %v1543, %v1542
        %v1554 = vpack.c.b16 %v1545, %v1544
        %v1555 = vpack.c.b16 %v1547, %v1546
        %1564 = vmatpush.bf16.msra.mxu0 %v1555
        %1565 = vmatpush.bf16.msra.mxu0 %v1554
        %1566 = vmatpush.bf16.msra.mxu0 %v1553
        %1567 = vmatpush.bf16.msra.mxu0 %v1552
        %1568 = vmatpush.bf16.msra.mxu0 %v1551
        %1569 = vmatpush.bf16.msra.mxu0 %v1550
        %1570 = vmatpush.bf16.msra.mxu0 %v1549
        %1571 = vmatpush.bf16.msra.mxu0 %v1548
        %1572 = vmatmul.bf16.gmra.mxu0 %v1500
        %v1573 = vpop.f32.mrf.mxu0
        %v1574 = vadd.f32 0.0, %v1573
        %v1575 = vpop.f32.mrf.mxu0
        %v1576 = vadd.f32 0.0, %v1575
        %1577 = vmatmul.bf16.gmra.mxu0 %v1501
        %v1578 = vpop.f32.mrf.mxu0
        %v1579 = vadd.f32 0.0, %v1578
        %v1580 = vpop.f32.mrf.mxu0
        %v1581 = vadd.f32 0.0, %v1580
        %1582 = vmatmul.bf16.gmra.mxu0 %v1502
        %v1583 = vpop.f32.mrf.mxu0
        %v1584 = vadd.f32 0.0, %v1583
        %v1585 = vpop.f32.mrf.mxu0
        %v1586 = vadd.f32 0.0, %v1585
        %1587 = vmatmul.bf16.gmra.mxu0 %v1503
        %v1588 = vpop.f32.mrf.mxu0
        %v1589 = vadd.f32 0.0, %v1588
        %v1590 = vpop.f32.mrf.mxu0
        %v1591 = vadd.f32 0.0, %v1590
        %1592 = vmatmul.bf16.gmra.mxu0 %v1504
        %v1593 = vpop.f32.mrf.mxu0
        %v1594 = vadd.f32 0.0, %v1593
        %v1595 = vpop.f32.mrf.mxu0
        %v1596 = vadd.f32 0.0, %v1595
        %1597 = vmatmul.bf16.gmra.mxu0 %v1505
        %v1598 = vpop.f32.mrf.mxu0
        %v1599 = vadd.f32 0.0, %v1598
        %v1600 = vpop.f32.mrf.mxu0
        %v1601 = vadd.f32 0.0, %v1600
        %1602 = vmatmul.bf16.gmra.mxu0 %v1506
        %v1603 = vpop.f32.mrf.mxu0
        %v1604 = vadd.f32 0.0, %v1603
        %v1605 = vpop.f32.mrf.mxu0
        %v1606 = vadd.f32 0.0, %v1605
        %1607 = vmatmul.bf16.gmra.mxu0 %v1507
        %v1608 = vpop.f32.mrf.mxu0
        %v1609 = vadd.f32 0.0, %v1608
        %v1610 = vpop.f32.mrf.mxu0
        %v1611 = vadd.f32 0.0, %v1610
        %1612 = vdwg.mxu0
        %v1613 = vadd.f32 %v1419, %v1574
        %v1614 = vadd.f32 %v1420, %v1576
        %v1615 = vadd.f32 %v1421, %v1579
        %v1616 = vadd.f32 %v1422, %v1581
        %v1617 = vadd.f32 %v1423, %v1584
        %v1618 = vadd.f32 %v1424, %v1586
        %v1619 = vadd.f32 %v1425, %v1589
        %v1620 = vadd.f32 %v1426, %v1591
        %v1621 = vadd.f32 %v1427, %v1594
        %v1622 = vadd.f32 %v1428, %v1596
        %v1623 = vadd.f32 %v1429, %v1599
        %v1624 = vadd.f32 %v1430, %v1601
        %v1625 = vadd.f32 %v1431, %v1604
        %v1626 = vadd.f32 %v1432, %v1606
        %v1627 = vadd.f32 %v1433, %v1609
        %v1628 = vadd.f32 %v1434, %v1611
        %v1629 = vld [vmem:[%s644] sm:$0xf]
        %v1630 = vld [vmem:[%s644 + $0x4] sm:$0xf]
        %v1631 = vld [vmem:[%s644 + $0x8] sm:$0xf]
        %v1632 = vld [vmem:[%s644 + $0xc] sm:$0xf]
        %v1633 = vld [vmem:[%s644 + $0x10] sm:$0xf]
        %v1634 = vld [vmem:[%s644 + $0x14] sm:$0xf]
        %v1635 = vld [vmem:[%s644 + $0x18] sm:$0xf]
        %v1636 = vld [vmem:[%s644 + $0x1c] sm:$0xf]
        %v1637 = vld [vmem:[%s644 + $0x20] sm:$0xf]
        %v1638 = vld [vmem:[%s644 + $0x24] sm:$0xf]
        %v1639 = vld [vmem:[%s644 + $0x28] sm:$0xf]
        %v1640 = vld [vmem:[%s644 + $0x2c] sm:$0xf]
        %v1641 = vld [vmem:[%s644 + $0x30] sm:$0xf]
        %v1642 = vld [vmem:[%s644 + $0x34] sm:$0xf]
        %v1643 = vld [vmem:[%s644 + $0x38] sm:$0xf]
        %v1644 = vld [vmem:[%s644 + $0x3c] sm:$0xf]
        %s1645 = scalar_lea.vmem [#allocation6], 320
        %v1646 = vld [vmem:[%s1645] sm:$0xf]
        %v1647 = vld [vmem:[%s1645 + $0x4] sm:$0xf]
        %v1648 = vld [vmem:[%s1645 + $0x8] sm:$0xf]
        %v1649 = vld [vmem:[%s1645 + $0xc] sm:$0xf]
        %v1650 = vld [vmem:[%s1645 + $0x10] sm:$0xf]
        %v1651 = vld [vmem:[%s1645 + $0x14] sm:$0xf]
        %v1652 = vld [vmem:[%s1645 + $0x18] sm:$0xf]
        %v1653 = vld [vmem:[%s1645 + $0x1c] sm:$0xf]
        %v1654 = vld [vmem:[%s1645 + $0x20] sm:$0xf]
        %v1655 = vld [vmem:[%s1645 + $0x24] sm:$0xf]
        %v1656 = vld [vmem:[%s1645 + $0x28] sm:$0xf]
        %v1657 = vld [vmem:[%s1645 + $0x2c] sm:$0xf]
        %v1658 = vld [vmem:[%s1645 + $0x30] sm:$0xf]
        %v1659 = vld [vmem:[%s1645 + $0x34] sm:$0xf]
        %v1660 = vld [vmem:[%s1645 + $0x38] sm:$0xf]
        %v1661 = vld [vmem:[%s1645 + $0x3c] sm:$0xf]
        %v1678 = vunpack.c.l.b16 %v1629
        %v1679 = vunpack.c.l.b16 %v1630
        %v1680 = vunpack.c.l.b16 %v1631
        %v1681 = vunpack.c.l.b16 %v1632
        %v1682 = vunpack.c.l.b16 %v1633
        %v1683 = vunpack.c.l.b16 %v1634
        %v1684 = vunpack.c.l.b16 %v1635
        %v1685 = vunpack.c.l.b16 %v1636
        %v1686 = vunpack.c.l.b16 %v1637
        %v1687 = vunpack.c.l.b16 %v1638
        %v1688 = vunpack.c.l.b16 %v1639
        %v1689 = vunpack.c.l.b16 %v1640
        %v1690 = vunpack.c.l.b16 %v1641
        %v1691 = vunpack.c.l.b16 %v1642
        %v1692 = vunpack.c.l.b16 %v1643
        %v1693 = vunpack.c.l.b16 %v1644
        %v1694 = vpack.c.b16 %v1679, %v1678
        %v1695 = vpack.c.b16 %v1681, %v1680
        %v1696 = vpack.c.b16 %v1683, %v1682
        %v1697 = vpack.c.b16 %v1685, %v1684
        %v1698 = vpack.c.b16 %v1687, %v1686
        %v1699 = vpack.c.b16 %v1689, %v1688
        %v1700 = vpack.c.b16 %v1691, %v1690
        %v1701 = vpack.c.b16 %v1693, %v1692
        %v1726 = vunpack.c.l.b16 %v1646
        %v1727 = vunpack.c.l.b16 %v1647
        %v1728 = vunpack.c.l.b16 %v1648
        %v1729 = vunpack.c.l.b16 %v1649
        %v1730 = vunpack.c.l.b16 %v1650
        %v1731 = vunpack.c.l.b16 %v1651
        %v1732 = vunpack.c.l.b16 %v1652
        %v1733 = vunpack.c.l.b16 %v1653
        %v1734 = vunpack.c.l.b16 %v1654
        %v1735 = vunpack.c.l.b16 %v1655
        %v1736 = vunpack.c.l.b16 %v1656
        %v1737 = vunpack.c.l.b16 %v1657
        %v1738 = vunpack.c.l.b16 %v1658
        %v1739 = vunpack.c.l.b16 %v1659
        %v1740 = vunpack.c.l.b16 %v1660
        %v1741 = vunpack.c.l.b16 %v1661
        %v1742 = vpack.c.b16 %v1727, %v1726
        %v1743 = vpack.c.b16 %v1729, %v1728
        %v1744 = vpack.c.b16 %v1731, %v1730
        %v1745 = vpack.c.b16 %v1733, %v1732
        %v1746 = vpack.c.b16 %v1735, %v1734
        %v1747 = vpack.c.b16 %v1737, %v1736
        %v1748 = vpack.c.b16 %v1739, %v1738
        %v1749 = vpack.c.b16 %v1741, %v1740
        %1758 = vmatpush.bf16.msra.mxu0 %v1749
        %1759 = vmatpush.bf16.msra.mxu0 %v1748
        %1760 = vmatpush.bf16.msra.mxu0 %v1747
        %1761 = vmatpush.bf16.msra.mxu0 %v1746
        %1762 = vmatpush.bf16.msra.mxu0 %v1745
        %1763 = vmatpush.bf16.msra.mxu0 %v1744
        %1764 = vmatpush.bf16.msra.mxu0 %v1743
        %1765 = vmatpush.bf16.msra.mxu0 %v1742
        %1766 = vmatmul.bf16.gmra.mxu0 %v1694
        %v1767 = vpop.f32.mrf.mxu0
        %v1768 = vadd.f32 0.0, %v1767
        %v1769 = vpop.f32.mrf.mxu0
        %v1770 = vadd.f32 0.0, %v1769
        %1771 = vmatmul.bf16.gmra.mxu0 %v1695
        %v1772 = vpop.f32.mrf.mxu0
        %v1773 = vadd.f32 0.0, %v1772
        %v1774 = vpop.f32.mrf.mxu0
        %v1775 = vadd.f32 0.0, %v1774
        %1776 = vmatmul.bf16.gmra.mxu0 %v1696
        %v1777 = vpop.f32.mrf.mxu0
        %v1778 = vadd.f32 0.0, %v1777
        %v1779 = vpop.f32.mrf.mxu0
        %v1780 = vadd.f32 0.0, %v1779
        %1781 = vmatmul.bf16.gmra.mxu0 %v1697
        %v1782 = vpop.f32.mrf.mxu0
        %v1783 = vadd.f32 0.0, %v1782
        %v1784 = vpop.f32.mrf.mxu0
        %v1785 = vadd.f32 0.0, %v1784
        %1786 = vmatmul.bf16.gmra.mxu0 %v1698
        %v1787 = vpop.f32.mrf.mxu0
        %v1788 = vadd.f32 0.0, %v1787
        %v1789 = vpop.f32.mrf.mxu0
        %v1790 = vadd.f32 0.0, %v1789
        %1791 = vmatmul.bf16.gmra.mxu0 %v1699
        %v1792 = vpop.f32.mrf.mxu0
        %v1793 = vadd.f32 0.0, %v1792
        %v1794 = vpop.f32.mrf.mxu0
        %v1795 = vadd.f32 0.0, %v1794
        %1796 = vmatmul.bf16.gmra.mxu0 %v1700
        %v1797 = vpop.f32.mrf.mxu0
        %v1798 = vadd.f32 0.0, %v1797
        %v1799 = vpop.f32.mrf.mxu0
        %v1800 = vadd.f32 0.0, %v1799
        %1801 = vmatmul.bf16.gmra.mxu0 %v1701
        %v1802 = vpop.f32.mrf.mxu0
        %v1803 = vadd.f32 0.0, %v1802
        %v1804 = vpop.f32.mrf.mxu0
        %v1805 = vadd.f32 0.0, %v1804
        %1806 = vdwg.mxu0
        %v1807 = vadd.f32 %v1613, %v1768
        %v1808 = vadd.f32 %v1614, %v1770
        %v1809 = vadd.f32 %v1615, %v1773
        %v1810 = vadd.f32 %v1616, %v1775
        %v1811 = vadd.f32 %v1617, %v1778
        %v1812 = vadd.f32 %v1618, %v1780
        %v1813 = vadd.f32 %v1619, %v1783
        %v1814 = vadd.f32 %v1620, %v1785
        %v1815 = vadd.f32 %v1621, %v1788
        %v1816 = vadd.f32 %v1622, %v1790
        %v1817 = vadd.f32 %v1623, %v1793
        %v1818 = vadd.f32 %v1624, %v1795
        %v1819 = vadd.f32 %v1625, %v1798
        %v1820 = vadd.f32 %v1626, %v1800
        %v1821 = vadd.f32 %v1627, %v1803
        %v1822 = vadd.f32 %v1628, %v1805
        %s1823 = scalar_lea.vmem [#allocation2], 16
        %v1824 = vld [vmem:[%s1823] sm:$0xf]
        %v1825 = vld [vmem:[%s1823 + $0x4] sm:$0xf]
        %v1826 = vld [vmem:[%s1823 + $0x8] sm:$0xf]
        %v1827 = vld [vmem:[%s1823 + $0xc] sm:$0xf]
        %v1828 = vld [vmem:[%s1823 + $0x10] sm:$0xf]
        %v1829 = vld [vmem:[%s1823 + $0x14] sm:$0xf]
        %v1830 = vld [vmem:[%s1823 + $0x18] sm:$0xf]
        %v1831 = vld [vmem:[%s1823 + $0x1c] sm:$0xf]
        %v1832 = vld [vmem:[%s1823 + $0x20] sm:$0xf]
        %v1833 = vld [vmem:[%s1823 + $0x24] sm:$0xf]
        %v1834 = vld [vmem:[%s1823 + $0x28] sm:$0xf]
        %v1835 = vld [vmem:[%s1823 + $0x2c] sm:$0xf]
        %v1836 = vld [vmem:[%s1823 + $0x30] sm:$0xf]
        %v1837 = vld [vmem:[%s1823 + $0x34] sm:$0xf]
        %v1838 = vld [vmem:[%s1823 + $0x38] sm:$0xf]
        %v1839 = vld [vmem:[%s1823 + $0x3c] sm:$0xf]
        %s1840 = scalar_lea.vmem [#allocation6], 384
        %v1841 = vld [vmem:[%s1840] sm:$0xf]
        %v1842 = vld [vmem:[%s1840 + $0x4] sm:$0xf]
        %v1843 = vld [vmem:[%s1840 + $0x8] sm:$0xf]
        %v1844 = vld [vmem:[%s1840 + $0xc] sm:$0xf]
        %v1845 = vld [vmem:[%s1840 + $0x10] sm:$0xf]
        %v1846 = vld [vmem:[%s1840 + $0x14] sm:$0xf]
        %v1847 = vld [vmem:[%s1840 + $0x18] sm:$0xf]
        %v1848 = vld [vmem:[%s1840 + $0x1c] sm:$0xf]
        %v1849 = vld [vmem:[%s1840 + $0x20] sm:$0xf]
        %v1850 = vld [vmem:[%s1840 + $0x24] sm:$0xf]
        %v1851 = vld [vmem:[%s1840 + $0x28] sm:$0xf]
        %v1852 = vld [vmem:[%s1840 + $0x2c] sm:$0xf]
        %v1853 = vld [vmem:[%s1840 + $0x30] sm:$0xf]
        %v1854 = vld [vmem:[%s1840 + $0x34] sm:$0xf]
        %v1855 = vld [vmem:[%s1840 + $0x38] sm:$0xf]
        %v1856 = vld [vmem:[%s1840 + $0x3c] sm:$0xf]
        %v1873 = vunpack.c.l.b16 %v1824
        %v1874 = vunpack.c.l.b16 %v1825
        %v1875 = vunpack.c.l.b16 %v1826
        %v1876 = vunpack.c.l.b16 %v1827
        %v1877 = vunpack.c.l.b16 %v1828
        %v1878 = vunpack.c.l.b16 %v1829
        %v1879 = vunpack.c.l.b16 %v1830
        %v1880 = vunpack.c.l.b16 %v1831
        %v1881 = vunpack.c.l.b16 %v1832
        %v1882 = vunpack.c.l.b16 %v1833
        %v1883 = vunpack.c.l.b16 %v1834
        %v1884 = vunpack.c.l.b16 %v1835
        %v1885 = vunpack.c.l.b16 %v1836
        %v1886 = vunpack.c.l.b16 %v1837
        %v1887 = vunpack.c.l.b16 %v1838
        %v1888 = vunpack.c.l.b16 %v1839
        %v1889 = vpack.c.b16 %v1874, %v1873
        %v1890 = vpack.c.b16 %v1876, %v1875
        %v1891 = vpack.c.b16 %v1878, %v1877
        %v1892 = vpack.c.b16 %v1880, %v1879
        %v1893 = vpack.c.b16 %v1882, %v1881
        %v1894 = vpack.c.b16 %v1884, %v1883
        %v1895 = vpack.c.b16 %v1886, %v1885
        %v1896 = vpack.c.b16 %v1888, %v1887
        %v1921 = vunpack.c.l.b16 %v1841
        %v1922 = vunpack.c.l.b16 %v1842
        %v1923 = vunpack.c.l.b16 %v1843
        %v1924 = vunpack.c.l.b16 %v1844
        %v1925 = vunpack.c.l.b16 %v1845
        %v1926 = vunpack.c.l.b16 %v1846
        %v1927 = vunpack.c.l.b16 %v1847
        %v1928 = vunpack.c.l.b16 %v1848
        %v1929 = vunpack.c.l.b16 %v1849
        %v1930 = vunpack.c.l.b16 %v1850
        %v1931 = vunpack.c.l.b16 %v1851
        %v1932 = vunpack.c.l.b16 %v1852
        %v1933 = vunpack.c.l.b16 %v1853
        %v1934 = vunpack.c.l.b16 %v1854
        %v1935 = vunpack.c.l.b16 %v1855
        %v1936 = vunpack.c.l.b16 %v1856
        %v1937 = vpack.c.b16 %v1922, %v1921
        %v1938 = vpack.c.b16 %v1924, %v1923
        %v1939 = vpack.c.b16 %v1926, %v1925
        %v1940 = vpack.c.b16 %v1928, %v1927
        %v1941 = vpack.c.b16 %v1930, %v1929
        %v1942 = vpack.c.b16 %v1932, %v1931
        %v1943 = vpack.c.b16 %v1934, %v1933
        %v1944 = vpack.c.b16 %v1936, %v1935
        %1953 = vmatpush.bf16.msra.mxu0 %v1944
        %1954 = vmatpush.bf16.msra.mxu0 %v1943
        %1955 = vmatpush.bf16.msra.mxu0 %v1942
        %1956 = vmatpush.bf16.msra.mxu0 %v1941
        %1957 = vmatpush.bf16.msra.mxu0 %v1940
        %1958 = vmatpush.bf16.msra.mxu0 %v1939
        %1959 = vmatpush.bf16.msra.mxu0 %v1938
        %1960 = vmatpush.bf16.msra.mxu0 %v1937
        %1961 = vmatmul.bf16.gmra.mxu0 %v1889
        %v1962 = vpop.f32.mrf.mxu0
        %v1963 = vadd.f32 0.0, %v1962
        %v1964 = vpop.f32.mrf.mxu0
        %v1965 = vadd.f32 0.0, %v1964
        %1966 = vmatmul.bf16.gmra.mxu0 %v1890
        %v1967 = vpop.f32.mrf.mxu0
        %v1968 = vadd.f32 0.0, %v1967
        %v1969 = vpop.f32.mrf.mxu0
        %v1970 = vadd.f32 0.0, %v1969
        %1971 = vmatmul.bf16.gmra.mxu0 %v1891
        %v1972 = vpop.f32.mrf.mxu0
        %v1973 = vadd.f32 0.0, %v1972
        %v1974 = vpop.f32.mrf.mxu0
        %v1975 = vadd.f32 0.0, %v1974
        %1976 = vmatmul.bf16.gmra.mxu0 %v1892
        %v1977 = vpop.f32.mrf.mxu0
        %v1978 = vadd.f32 0.0, %v1977
        %v1979 = vpop.f32.mrf.mxu0
        %v1980 = vadd.f32 0.0, %v1979
        %1981 = vmatmul.bf16.gmra.mxu0 %v1893
        %v1982 = vpop.f32.mrf.mxu0
        %v1983 = vadd.f32 0.0, %v1982
        %v1984 = vpop.f32.mrf.mxu0
        %v1985 = vadd.f32 0.0, %v1984
        %1986 = vmatmul.bf16.gmra.mxu0 %v1894
        %v1987 = vpop.f32.mrf.mxu0
        %v1988 = vadd.f32 0.0, %v1987
        %v1989 = vpop.f32.mrf.mxu0
        %v1990 = vadd.f32 0.0, %v1989
        %1991 = vmatmul.bf16.gmra.mxu0 %v1895
        %v1992 = vpop.f32.mrf.mxu0
        %v1993 = vadd.f32 0.0, %v1992
        %v1994 = vpop.f32.mrf.mxu0
        %v1995 = vadd.f32 0.0, %v1994
        %1996 = vmatmul.bf16.gmra.mxu0 %v1896
        %v1997 = vpop.f32.mrf.mxu0
        %v1998 = vadd.f32 0.0, %v1997
        %v1999 = vpop.f32.mrf.mxu0
        %v2000 = vadd.f32 0.0, %v1999
        %2001 = vdwg.mxu0
        %v2002 = vadd.f32 %v1807, %v1963
        %v2003 = vadd.f32 %v1808, %v1965
        %v2004 = vadd.f32 %v1809, %v1968
        %v2005 = vadd.f32 %v1810, %v1970
        %v2006 = vadd.f32 %v1811, %v1973
        %v2007 = vadd.f32 %v1812, %v1975
        %v2008 = vadd.f32 %v1813, %v1978
        %v2009 = vadd.f32 %v1814, %v1980
        %v2010 = vadd.f32 %v1815, %v1983
        %v2011 = vadd.f32 %v1816, %v1985
        %v2012 = vadd.f32 %v1817, %v1988
        %v2013 = vadd.f32 %v1818, %v1990
        %v2014 = vadd.f32 %v1819, %v1993
        %v2015 = vadd.f32 %v1820, %v1995
        %v2016 = vadd.f32 %v1821, %v1998
        %v2017 = vadd.f32 %v1822, %v2000
        %s2018 = scalar_lea.vmem [#allocation2], 160
        %v2019 = vld [vmem:[%s2018] sm:$0xf]
        %v2020 = vld [vmem:[%s2018 + $0x4] sm:$0xf]
        %v2021 = vld [vmem:[%s2018 + $0x8] sm:$0xf]
        %v2022 = vld [vmem:[%s2018 + $0xc] sm:$0xf]
        %v2023 = vld [vmem:[%s2018 + $0x10] sm:$0xf]
        %v2024 = vld [vmem:[%s2018 + $0x14] sm:$0xf]
        %v2025 = vld [vmem:[%s2018 + $0x18] sm:$0xf]
        %v2026 = vld [vmem:[%s2018 + $0x1c] sm:$0xf]
        %v2027 = vld [vmem:[%s2018 + $0x20] sm:$0xf]
        %v2028 = vld [vmem:[%s2018 + $0x24] sm:$0xf]
        %v2029 = vld [vmem:[%s2018 + $0x28] sm:$0xf]
        %v2030 = vld [vmem:[%s2018 + $0x2c] sm:$0xf]
        %v2031 = vld [vmem:[%s2018 + $0x30] sm:$0xf]
        %v2032 = vld [vmem:[%s2018 + $0x34] sm:$0xf]
        %v2033 = vld [vmem:[%s2018 + $0x38] sm:$0xf]
        %v2034 = vld [vmem:[%s2018 + $0x3c] sm:$0xf]
        %s2035 = scalar_lea.vmem [#allocation6], 448
        %v2036 = vld [vmem:[%s2035] sm:$0xf]
        %v2037 = vld [vmem:[%s2035 + $0x4] sm:$0xf]
        %v2038 = vld [vmem:[%s2035 + $0x8] sm:$0xf]
        %v2039 = vld [vmem:[%s2035 + $0xc] sm:$0xf]
        %v2040 = vld [vmem:[%s2035 + $0x10] sm:$0xf]
        %v2041 = vld [vmem:[%s2035 + $0x14] sm:$0xf]
        %v2042 = vld [vmem:[%s2035 + $0x18] sm:$0xf]
        %v2043 = vld [vmem:[%s2035 + $0x1c] sm:$0xf]
        %v2044 = vld [vmem:[%s2035 + $0x20] sm:$0xf]
        %v2045 = vld [vmem:[%s2035 + $0x24] sm:$0xf]
        %v2046 = vld [vmem:[%s2035 + $0x28] sm:$0xf]
        %v2047 = vld [vmem:[%s2035 + $0x2c] sm:$0xf]
        %v2048 = vld [vmem:[%s2035 + $0x30] sm:$0xf]
        %v2049 = vld [vmem:[%s2035 + $0x34] sm:$0xf]
        %v2050 = vld [vmem:[%s2035 + $0x38] sm:$0xf]
        %v2051 = vld [vmem:[%s2035 + $0x3c] sm:$0xf]
        %v2068 = vunpack.c.l.b16 %v2019
        %v2069 = vunpack.c.l.b16 %v2020
        %v2070 = vunpack.c.l.b16 %v2021
        %v2071 = vunpack.c.l.b16 %v2022
        %v2072 = vunpack.c.l.b16 %v2023
        %v2073 = vunpack.c.l.b16 %v2024
        %v2074 = vunpack.c.l.b16 %v2025
        %v2075 = vunpack.c.l.b16 %v2026
        %v2076 = vunpack.c.l.b16 %v2027
        %v2077 = vunpack.c.l.b16 %v2028
        %v2078 = vunpack.c.l.b16 %v2029
        %v2079 = vunpack.c.l.b16 %v2030
        %v2080 = vunpack.c.l.b16 %v2031
        %v2081 = vunpack.c.l.b16 %v2032
        %v2082 = vunpack.c.l.b16 %v2033
        %v2083 = vunpack.c.l.b16 %v2034
        %v2084 = vpack.c.b16 %v2069, %v2068
        %v2085 = vpack.c.b16 %v2071, %v2070
        %v2086 = vpack.c.b16 %v2073, %v2072
        %v2087 = vpack.c.b16 %v2075, %v2074
        %v2088 = vpack.c.b16 %v2077, %v2076
        %v2089 = vpack.c.b16 %v2079, %v2078
        %v2090 = vpack.c.b16 %v2081, %v2080
        %v2091 = vpack.c.b16 %v2083, %v2082
        %v2116 = vunpack.c.l.b16 %v2036
        %v2117 = vunpack.c.l.b16 %v2037
        %v2118 = vunpack.c.l.b16 %v2038
        %v2119 = vunpack.c.l.b16 %v2039
        %v2120 = vunpack.c.l.b16 %v2040
        %v2121 = vunpack.c.l.b16 %v2041
        %v2122 = vunpack.c.l.b16 %v2042
        %v2123 = vunpack.c.l.b16 %v2043
        %v2124 = vunpack.c.l.b16 %v2044
        %v2125 = vunpack.c.l.b16 %v2045
        %v2126 = vunpack.c.l.b16 %v2046
        %v2127 = vunpack.c.l.b16 %v2047
        %v2128 = vunpack.c.l.b16 %v2048
        %v2129 = vunpack.c.l.b16 %v2049
        %v2130 = vunpack.c.l.b16 %v2050
        %v2131 = vunpack.c.l.b16 %v2051
        %v2132 = vpack.c.b16 %v2117, %v2116
        %v2133 = vpack.c.b16 %v2119, %v2118
        %v2134 = vpack.c.b16 %v2121, %v2120
        %v2135 = vpack.c.b16 %v2123, %v2122
        %v2136 = vpack.c.b16 %v2125, %v2124
        %v2137 = vpack.c.b16 %v2127, %v2126
        %v2138 = vpack.c.b16 %v2129, %v2128
        %v2139 = vpack.c.b16 %v2131, %v2130
        %2148 = vmatpush.bf16.msra.mxu0 %v2139
        %2149 = vmatpush.bf16.msra.mxu0 %v2138
        %2150 = vmatpush.bf16.msra.mxu0 %v2137
        %2151 = vmatpush.bf16.msra.mxu0 %v2136
        %2152 = vmatpush.bf16.msra.mxu0 %v2135
        %2153 = vmatpush.bf16.msra.mxu0 %v2134
        %2154 = vmatpush.bf16.msra.mxu0 %v2133
        %2155 = vmatpush.bf16.msra.mxu0 %v2132
        %2156 = vmatmul.bf16.gmra.mxu0 %v2084
        %v2157 = vpop.f32.mrf.mxu0
        %v2158 = vadd.f32 0.0, %v2157
        %v2159 = vpop.f32.mrf.mxu0
        %v2160 = vadd.f32 0.0, %v2159
        %2161 = vmatmul.bf16.gmra.mxu0 %v2085
        %v2162 = vpop.f32.mrf.mxu0
        %v2163 = vadd.f32 0.0, %v2162
        %v2164 = vpop.f32.mrf.mxu0
        %v2165 = vadd.f32 0.0, %v2164
        %2166 = vmatmul.bf16.gmra.mxu0 %v2086
        %v2167 = vpop.f32.mrf.mxu0
        %v2168 = vadd.f32 0.0, %v2167
        %v2169 = vpop.f32.mrf.mxu0
        %v2170 = vadd.f32 0.0, %v2169
        %2171 = vmatmul.bf16.gmra.mxu0 %v2087
        %v2172 = vpop.f32.mrf.mxu0
        %v2173 = vadd.f32 0.0, %v2172
        %v2174 = vpop.f32.mrf.mxu0
        %v2175 = vadd.f32 0.0, %v2174
        %2176 = vmatmul.bf16.gmra.mxu0 %v2088
        %v2177 = vpop.f32.mrf.mxu0
        %v2178 = vadd.f32 0.0, %v2177
        %v2179 = vpop.f32.mrf.mxu0
        %v2180 = vadd.f32 0.0, %v2179
        %2181 = vmatmul.bf16.gmra.mxu0 %v2089
        %v2182 = vpop.f32.mrf.mxu0
        %v2183 = vadd.f32 0.0, %v2182
        %v2184 = vpop.f32.mrf.mxu0
        %v2185 = vadd.f32 0.0, %v2184
        %2186 = vmatmul.bf16.gmra.mxu0 %v2090
        %v2187 = vpop.f32.mrf.mxu0
        %v2188 = vadd.f32 0.0, %v2187
        %v2189 = vpop.f32.mrf.mxu0
        %v2190 = vadd.f32 0.0, %v2189
        %2191 = vmatmul.bf16.gmra.mxu0 %v2091
        %v2192 = vpop.f32.mrf.mxu0
        %v2193 = vadd.f32 0.0, %v2192
        %v2194 = vpop.f32.mrf.mxu0
        %v2195 = vadd.f32 0.0, %v2194
        %2196 = vdwg.mxu0
        %v2197 = vadd.f32 %v2002, %v2158
        %v2198 = vadd.f32 %v2003, %v2160
        %v2199 = vadd.f32 %v2004, %v2163
        %v2200 = vadd.f32 %v2005, %v2165
        %v2201 = vadd.f32 %v2006, %v2168
        %v2202 = vadd.f32 %v2007, %v2170
        %v2203 = vadd.f32 %v2008, %v2173
        %v2204 = vadd.f32 %v2009, %v2175
        %v2205 = vadd.f32 %v2010, %v2178
        %v2206 = vadd.f32 %v2011, %v2180
        %v2207 = vadd.f32 %v2012, %v2183
        %v2208 = vadd.f32 %v2013, %v2185
        %v2209 = vadd.f32 %v2014, %v2188
        %v2210 = vadd.f32 %v2015, %v2190
        %v2211 = vadd.f32 %v2016, %v2193
        %v2212 = vadd.f32 %v2017, %v2195
        %s2213 = scalar_lea.vmem [#allocation2], 304
        %v2214 = vld [vmem:[%s2213] sm:$0xf]
        %v2215 = vld [vmem:[%s2213 + $0x4] sm:$0xf]
        %v2216 = vld [vmem:[%s2213 + $0x8] sm:$0xf]
        %v2217 = vld [vmem:[%s2213 + $0xc] sm:$0xf]
        %v2218 = vld [vmem:[%s2213 + $0x10] sm:$0xf]
        %v2219 = vld [vmem:[%s2213 + $0x14] sm:$0xf]
        %v2220 = vld [vmem:[%s2213 + $0x18] sm:$0xf]
        %v2221 = vld [vmem:[%s2213 + $0x1c] sm:$0xf]
        %v2222 = vld [vmem:[%s2213 + $0x20] sm:$0xf]
        %v2223 = vld [vmem:[%s2213 + $0x24] sm:$0xf]
        %v2224 = vld [vmem:[%s2213 + $0x28] sm:$0xf]
        %v2225 = vld [vmem:[%s2213 + $0x2c] sm:$0xf]
        %v2226 = vld [vmem:[%s2213 + $0x30] sm:$0xf]
        %v2227 = vld [vmem:[%s2213 + $0x34] sm:$0xf]
        %v2228 = vld [vmem:[%s2213 + $0x38] sm:$0xf]
        %v2229 = vld [vmem:[%s2213 + $0x3c] sm:$0xf]
        %s2230 = scalar_lea.vmem [#allocation6], 512
        %v2231 = vld [vmem:[%s2230] sm:$0xf]
        %v2232 = vld [vmem:[%s2230 + $0x4] sm:$0xf]
        %v2233 = vld [vmem:[%s2230 + $0x8] sm:$0xf]
        %v2234 = vld [vmem:[%s2230 + $0xc] sm:$0xf]
        %v2235 = vld [vmem:[%s2230 + $0x10] sm:$0xf]
        %v2236 = vld [vmem:[%s2230 + $0x14] sm:$0xf]
        %v2237 = vld [vmem:[%s2230 + $0x18] sm:$0xf]
        %v2238 = vld [vmem:[%s2230 + $0x1c] sm:$0xf]
        %v2239 = vld [vmem:[%s2230 + $0x20] sm:$0xf]
        %v2240 = vld [vmem:[%s2230 + $0x24] sm:$0xf]
        %v2241 = vld [vmem:[%s2230 + $0x28] sm:$0xf]
        %v2242 = vld [vmem:[%s2230 + $0x2c] sm:$0xf]
        %v2243 = vld [vmem:[%s2230 + $0x30] sm:$0xf]
        %v2244 = vld [vmem:[%s2230 + $0x34] sm:$0xf]
        %v2245 = vld [vmem:[%s2230 + $0x38] sm:$0xf]
        %v2246 = vld [vmem:[%s2230 + $0x3c] sm:$0xf]
        %v2263 = vunpack.c.l.b16 %v2214
        %v2264 = vunpack.c.l.b16 %v2215
        %v2265 = vunpack.c.l.b16 %v2216
        %v2266 = vunpack.c.l.b16 %v2217
        %v2267 = vunpack.c.l.b16 %v2218
        %v2268 = vunpack.c.l.b16 %v2219
        %v2269 = vunpack.c.l.b16 %v2220
        %v2270 = vunpack.c.l.b16 %v2221
        %v2271 = vunpack.c.l.b16 %v2222
        %v2272 = vunpack.c.l.b16 %v2223
        %v2273 = vunpack.c.l.b16 %v2224
        %v2274 = vunpack.c.l.b16 %v2225
        %v2275 = vunpack.c.l.b16 %v2226
        %v2276 = vunpack.c.l.b16 %v2227
        %v2277 = vunpack.c.l.b16 %v2228
        %v2278 = vunpack.c.l.b16 %v2229
        %v2279 = vpack.c.b16 %v2264, %v2263
        %v2280 = vpack.c.b16 %v2266, %v2265
        %v2281 = vpack.c.b16 %v2268, %v2267
        %v2282 = vpack.c.b16 %v2270, %v2269
        %v2283 = vpack.c.b16 %v2272, %v2271
        %v2284 = vpack.c.b16 %v2274, %v2273
        %v2285 = vpack.c.b16 %v2276, %v2275
        %v2286 = vpack.c.b16 %v2278, %v2277
        %v2311 = vunpack.c.l.b16 %v2231
        %v2312 = vunpack.c.l.b16 %v2232
        %v2313 = vunpack.c.l.b16 %v2233
        %v2314 = vunpack.c.l.b16 %v2234
        %v2315 = vunpack.c.l.b16 %v2235
        %v2316 = vunpack.c.l.b16 %v2236
        %v2317 = vunpack.c.l.b16 %v2237
        %v2318 = vunpack.c.l.b16 %v2238
        %v2319 = vunpack.c.l.b16 %v2239
        %v2320 = vunpack.c.l.b16 %v2240
        %v2321 = vunpack.c.l.b16 %v2241
        %v2322 = vunpack.c.l.b16 %v2242
        %v2323 = vunpack.c.l.b16 %v2243
        %v2324 = vunpack.c.l.b16 %v2244
        %v2325 = vunpack.c.l.b16 %v2245
        %v2326 = vunpack.c.l.b16 %v2246
        %v2327 = vpack.c.b16 %v2312, %v2311
        %v2328 = vpack.c.b16 %v2314, %v2313
        %v2329 = vpack.c.b16 %v2316, %v2315
        %v2330 = vpack.c.b16 %v2318, %v2317
        %v2331 = vpack.c.b16 %v2320, %v2319
        %v2332 = vpack.c.b16 %v2322, %v2321
        %v2333 = vpack.c.b16 %v2324, %v2323
        %v2334 = vpack.c.b16 %v2326, %v2325
        %2343 = vmatpush.bf16.msra.mxu0 %v2334
        %2344 = vmatpush.bf16.msra.mxu0 %v2333
        %2345 = vmatpush.bf16.msra.mxu0 %v2332
        %2346 = vmatpush.bf16.msra.mxu0 %v2331
        %2347 = vmatpush.bf16.msra.mxu0 %v2330
        %2348 = vmatpush.bf16.msra.mxu0 %v2329
        %2349 = vmatpush.bf16.msra.mxu0 %v2328
        %2350 = vmatpush.bf16.msra.mxu0 %v2327
        %2351 = vmatmul.bf16.gmra.mxu0 %v2279
        %v2352 = vpop.f32.mrf.mxu0
        %v2353 = vadd.f32 0.0, %v2352
        %v2354 = vpop.f32.mrf.mxu0
        %v2355 = vadd.f32 0.0, %v2354
        %2356 = vmatmul.bf16.gmra.mxu0 %v2280
        %v2357 = vpop.f32.mrf.mxu0
        %v2358 = vadd.f32 0.0, %v2357
        %v2359 = vpop.f32.mrf.mxu0
        %v2360 = vadd.f32 0.0, %v2359
        %2361 = vmatmul.bf16.gmra.mxu0 %v2281
        %v2362 = vpop.f32.mrf.mxu0
        %v2363 = vadd.f32 0.0, %v2362
        %v2364 = vpop.f32.mrf.mxu0
        %v2365 = vadd.f32 0.0, %v2364
        %2366 = vmatmul.bf16.gmra.mxu0 %v2282
        %v2367 = vpop.f32.mrf.mxu0
        %v2368 = vadd.f32 0.0, %v2367
        %v2369 = vpop.f32.mrf.mxu0
        %v2370 = vadd.f32 0.0, %v2369
        %2371 = vmatmul.bf16.gmra.mxu0 %v2283
        %v2372 = vpop.f32.mrf.mxu0
        %v2373 = vadd.f32 0.0, %v2372
        %v2374 = vpop.f32.mrf.mxu0
        %v2375 = vadd.f32 0.0, %v2374
        %2376 = vmatmul.bf16.gmra.mxu0 %v2284
        %v2377 = vpop.f32.mrf.mxu0
        %v2378 = vadd.f32 0.0, %v2377
        %v2379 = vpop.f32.mrf.mxu0
        %v2380 = vadd.f32 0.0, %v2379
        %2381 = vmatmul.bf16.gmra.mxu0 %v2285
        %v2382 = vpop.f32.mrf.mxu0
        %v2383 = vadd.f32 0.0, %v2382
        %v2384 = vpop.f32.mrf.mxu0
        %v2385 = vadd.f32 0.0, %v2384
        %2386 = vmatmul.bf16.gmra.mxu0 %v2286
        %v2387 = vpop.f32.mrf.mxu0
        %v2388 = vadd.f32 0.0, %v2387
        %v2389 = vpop.f32.mrf.mxu0
        %v2390 = vadd.f32 0.0, %v2389
        %2391 = vdwg.mxu0
        %v2392 = vadd.f32 %v2197, %v2353
        %v2393 = vadd.f32 %v2198, %v2355
        %v2394 = vadd.f32 %v2199, %v2358
        %v2395 = vadd.f32 %v2200, %v2360
        %v2396 = vadd.f32 %v2201, %v2363
        %v2397 = vadd.f32 %v2202, %v2365
        %v2398 = vadd.f32 %v2203, %v2368
        %v2399 = vadd.f32 %v2204, %v2370
        %v2400 = vadd.f32 %v2205, %v2373
        %v2401 = vadd.f32 %v2206, %v2375
        %v2402 = vadd.f32 %v2207, %v2378
        %v2403 = vadd.f32 %v2208, %v2380
        %v2404 = vadd.f32 %v2209, %v2383
        %v2405 = vadd.f32 %v2210, %v2385
        %v2406 = vadd.f32 %v2211, %v2388
        %v2407 = vadd.f32 %v2212, %v2390
        %v2408 = vld [vmem:[%s179] sm:$0xff]
        %v2409 = vld [vmem:[%s179 + $0x8] sm:$0xff]
        %v2410 = vld [vmem:[%s179 + $0x10] sm:$0xff]
        %v2411 = vld [vmem:[%s179 + $0x18] sm:$0xff]
        %v2412 = vld [vmem:[%s179 + $0x20] sm:$0xff]
        %v2413 = vld [vmem:[%s179 + $0x28] sm:$0xff]
        %v2414 = vld [vmem:[%s179 + $0x30] sm:$0xff]
        %v2415 = vld [vmem:[%s179 + $0x38] sm:$0xff]
        %v2416 = vld [vmem:[%s179 + $0x40] sm:$0xff]
        %v2417 = vld [vmem:[%s179 + $0x48] sm:$0xff]
        %v2418 = vld [vmem:[%s179 + $0x50] sm:$0xff]
        %v2419 = vld [vmem:[%s179 + $0x58] sm:$0xff]
        %v2420 = vld [vmem:[%s179 + $0x60] sm:$0xff]
        %v2421 = vld [vmem:[%s179 + $0x68] sm:$0xff]
        %v2422 = vld [vmem:[%s179 + $0x70] sm:$0xff]
        %v2423 = vld [vmem:[%s179 + $0x78] sm:$0xff]
        %v2424 = vadd.f32 %v2408, %v2392
        %v2425 = vadd.f32 %v2409, %v2393
        %v2426 = vadd.f32 %v2410, %v2394
        %v2427 = vadd.f32 %v2411, %v2395
        %v2428 = vadd.f32 %v2412, %v2396
        %v2429 = vadd.f32 %v2413, %v2397
        %v2430 = vadd.f32 %v2414, %v2398
        %v2431 = vadd.f32 %v2415, %v2399
        %v2432 = vadd.f32 %v2416, %v2400
        %v2433 = vadd.f32 %v2417, %v2401
        %v2434 = vadd.f32 %v2418, %v2402
        %v2435 = vadd.f32 %v2419, %v2403
        %v2436 = vadd.f32 %v2420, %v2404
        %v2437 = vadd.f32 %v2421, %v2405
        %v2438 = vadd.f32 %v2422, %v2406
        %v2439 = vadd.f32 %v2423, %v2407
        %v2440 = vld [vmem:[%s2] sm:$0x1]
        %v2442 = vperm.slane %v2440, 0
        %v2444 = vadd.f32 %v2424, %v2442
        %v2445 = vadd.f32 %v2425, %v2442
        %v2446 = vadd.f32 %v2426, %v2442
        %v2447 = vadd.f32 %v2427, %v2442
        %v2448 = vadd.f32 %v2428, %v2442
        %v2449 = vadd.f32 %v2429, %v2442
        %v2450 = vadd.f32 %v2430, %v2442
        %v2451 = vadd.f32 %v2431, %v2442
        %v2452 = vadd.f32 %v2432, %v2442
        %v2453 = vadd.f32 %v2433, %v2442
        %v2454 = vadd.f32 %v2434, %v2442
        %v2455 = vadd.f32 %v2435, %v2442
        %v2456 = vadd.f32 %v2436, %v2442
        %v2457 = vadd.f32 %v2437, %v2442
        %v2458 = vadd.f32 %v2438, %v2442
        %v2459 = vadd.f32 %v2439, %v2442
        %2460 = vst [vmem:[%s207] sm:$0xff] %v2444
        %2461 = vst [vmem:[%s207 + $0x8] sm:$0xff] %v2445
        %2462 = vst [vmem:[%s207 + $0x10] sm:$0xff] %v2446
        %2463 = vst [vmem:[%s207 + $0x18] sm:$0xff] %v2447
        %2464 = vst [vmem:[%s207 + $0x20] sm:$0xff] %v2448
        %2465 = vst [vmem:[%s207 + $0x28] sm:$0xff] %v2449
        %2466 = vst [vmem:[%s207 + $0x30] sm:$0xff] %v2450
        %2467 = vst [vmem:[%s207 + $0x38] sm:$0xff] %v2451
        %2468 = vst [vmem:[%s207 + $0x40] sm:$0xff] %v2452
        %2469 = vst [vmem:[%s207 + $0x48] sm:$0xff] %v2453
        %2470 = vst [vmem:[%s207 + $0x50] sm:$0xff] %v2454
        %2471 = vst [vmem:[%s207 + $0x58] sm:$0xff] %v2455
        %2472 = vst [vmem:[%s207 + $0x60] sm:$0xff] %v2456
        %2473 = vst [vmem:[%s207 + $0x68] sm:$0xff] %v2457
        %2474 = vst [vmem:[%s207 + $0x70] sm:$0xff] %v2458
        %2475 = vst [vmem:[%s207 + $0x78] sm:$0xff] %v2459
        %s2476 = scalar_lea.vmem [#allocation2], 64
        %v2477 = vld [vmem:[%s2476] sm:$0xf]
        %v2478 = vld [vmem:[%s2476 + $0x4] sm:$0xf]
        %v2479 = vld [vmem:[%s2476 + $0x8] sm:$0xf]
        %v2480 = vld [vmem:[%s2476 + $0xc] sm:$0xf]
        %v2481 = vld [vmem:[%s2476 + $0x10] sm:$0xf]
        %v2482 = vld [vmem:[%s2476 + $0x14] sm:$0xf]
        %v2483 = vld [vmem:[%s2476 + $0x18] sm:$0xf]
        %v2484 = vld [vmem:[%s2476 + $0x1c] sm:$0xf]
        %v2485 = vld [vmem:[%s2476 + $0x20] sm:$0xf]
        %v2486 = vld [vmem:[%s2476 + $0x24] sm:$0xf]
        %v2487 = vld [vmem:[%s2476 + $0x28] sm:$0xf]
        %v2488 = vld [vmem:[%s2476 + $0x2c] sm:$0xf]
        %v2489 = vld [vmem:[%s2476 + $0x30] sm:$0xf]
        %v2490 = vld [vmem:[%s2476 + $0x34] sm:$0xf]
        %v2491 = vld [vmem:[%s2476 + $0x38] sm:$0xf]
        %v2492 = vld [vmem:[%s2476 + $0x3c] sm:$0xf]
        %v2493 = vld [vmem:[#allocation6] sm:$0xf]
        %v2494 = vld [vmem:[#allocation6 + $0x4] sm:$0xf]
        %v2495 = vld [vmem:[#allocation6 + $0x8] sm:$0xf]
        %v2496 = vld [vmem:[#allocation6 + $0xc] sm:$0xf]
        %v2497 = vld [vmem:[#allocation6 + $0x10] sm:$0xf]
        %v2498 = vld [vmem:[#allocation6 + $0x14] sm:$0xf]
        %v2499 = vld [vmem:[#allocation6 + $0x18] sm:$0xf]
        %v2500 = vld [vmem:[#allocation6 + $0x1c] sm:$0xf]
        %v2501 = vld [vmem:[#allocation6 + $0x20] sm:$0xf]
        %v2502 = vld [vmem:[#allocation6 + $0x24] sm:$0xf]
        %v2503 = vld [vmem:[#allocation6 + $0x28] sm:$0xf]
        %v2504 = vld [vmem:[#allocation6 + $0x2c] sm:$0xf]
        %v2505 = vld [vmem:[#allocation6 + $0x30] sm:$0xf]
        %v2506 = vld [vmem:[#allocation6 + $0x34] sm:$0xf]
        %v2507 = vld [vmem:[#allocation6 + $0x38] sm:$0xf]
        %v2508 = vld [vmem:[#allocation6 + $0x3c] sm:$0xf]
        %s2509 = scalar_lea.vmem [#allocation2], 208
        %v2510 = vld [vmem:[%s2509] sm:$0xf]
        %v2511 = vld [vmem:[%s2509 + $0x4] sm:$0xf]
        %v2512 = vld [vmem:[%s2509 + $0x8] sm:$0xf]
        %v2513 = vld [vmem:[%s2509 + $0xc] sm:$0xf]
        %v2514 = vld [vmem:[%s2509 + $0x10] sm:$0xf]
        %v2515 = vld [vmem:[%s2509 + $0x14] sm:$0xf]
        %v2516 = vld [vmem:[%s2509 + $0x18] sm:$0xf]
        %v2517 = vld [vmem:[%s2509 + $0x1c] sm:$0xf]
        %v2518 = vld [vmem:[%s2509 + $0x20] sm:$0xf]
        %v2519 = vld [vmem:[%s2509 + $0x24] sm:$0xf]
        %v2520 = vld [vmem:[%s2509 + $0x28] sm:$0xf]
        %v2521 = vld [vmem:[%s2509 + $0x2c] sm:$0xf]
        %v2522 = vld [vmem:[%s2509 + $0x30] sm:$0xf]
        %v2523 = vld [vmem:[%s2509 + $0x34] sm:$0xf]
        %v2524 = vld [vmem:[%s2509 + $0x38] sm:$0xf]
        %v2525 = vld [vmem:[%s2509 + $0x3c] sm:$0xf]
        %v2526 = vld [vmem:[%s739] sm:$0xf]
        %v2527 = vld [vmem:[%s739 + $0x4] sm:$0xf]
        %v2528 = vld [vmem:[%s739 + $0x8] sm:$0xf]
        %v2529 = vld [vmem:[%s739 + $0xc] sm:$0xf]
        %v2530 = vld [vmem:[%s739 + $0x10] sm:$0xf]
        %v2531 = vld [vmem:[%s739 + $0x14] sm:$0xf]
        %v2532 = vld [vmem:[%s739 + $0x18] sm:$0xf]
        %v2533 = vld [vmem:[%s739 + $0x1c] sm:$0xf]
        %v2534 = vld [vmem:[%s739 + $0x20] sm:$0xf]
        %v2535 = vld [vmem:[%s739 + $0x24] sm:$0xf]
        %v2536 = vld [vmem:[%s739 + $0x28] sm:$0xf]
        %v2537 = vld [vmem:[%s739 + $0x2c] sm:$0xf]
        %v2538 = vld [vmem:[%s739 + $0x30] sm:$0xf]
        %v2539 = vld [vmem:[%s739 + $0x34] sm:$0xf]
        %v2540 = vld [vmem:[%s739 + $0x38] sm:$0xf]
        %v2541 = vld [vmem:[%s739 + $0x3c] sm:$0xf]
        %v2558 = vunpack.c.l.b16 %v2510
        %v2559 = vunpack.c.l.b16 %v2511
        %v2560 = vunpack.c.l.b16 %v2512
        %v2561 = vunpack.c.l.b16 %v2513
        %v2562 = vunpack.c.l.b16 %v2514
        %v2563 = vunpack.c.l.b16 %v2515
        %v2564 = vunpack.c.l.b16 %v2516
        %v2565 = vunpack.c.l.b16 %v2517
        %v2566 = vunpack.c.l.b16 %v2518
        %v2567 = vunpack.c.l.b16 %v2519
        %v2568 = vunpack.c.l.b16 %v2520
        %v2569 = vunpack.c.l.b16 %v2521
        %v2570 = vunpack.c.l.b16 %v2522
        %v2571 = vunpack.c.l.b16 %v2523
        %v2572 = vunpack.c.l.b16 %v2524
        %v2573 = vunpack.c.l.b16 %v2525
        %v2574 = vpack.c.b16 %v2559, %v2558
        %v2575 = vpack.c.b16 %v2561, %v2560
        %v2576 = vpack.c.b16 %v2563, %v2562
        %v2577 = vpack.c.b16 %v2565, %v2564
        %v2578 = vpack.c.b16 %v2567, %v2566
        %v2579 = vpack.c.b16 %v2569, %v2568
        %v2580 = vpack.c.b16 %v2571, %v2570
        %v2581 = vpack.c.b16 %v2573, %v2572
        %v2606 = vunpack.c.l.b16 %v2526
        %v2607 = vunpack.c.l.b16 %v2527
        %v2608 = vunpack.c.l.b16 %v2528
        %v2609 = vunpack.c.l.b16 %v2529
        %v2610 = vunpack.c.l.b16 %v2530
        %v2611 = vunpack.c.l.b16 %v2531
        %v2612 = vunpack.c.l.b16 %v2532
        %v2613 = vunpack.c.l.b16 %v2533
        %v2614 = vunpack.c.l.b16 %v2534
        %v2615 = vunpack.c.l.b16 %v2535
        %v2616 = vunpack.c.l.b16 %v2536
        %v2617 = vunpack.c.l.b16 %v2537
        %v2618 = vunpack.c.l.b16 %v2538
        %v2619 = vunpack.c.l.b16 %v2539
        %v2620 = vunpack.c.l.b16 %v2540
        %v2621 = vunpack.c.l.b16 %v2541
        %v2622 = vpack.c.b16 %v2607, %v2606
        %v2623 = vpack.c.b16 %v2609, %v2608
        %v2624 = vpack.c.b16 %v2611, %v2610
        %v2625 = vpack.c.b16 %v2613, %v2612
        %v2626 = vpack.c.b16 %v2615, %v2614
        %v2627 = vpack.c.b16 %v2617, %v2616
        %v2628 = vpack.c.b16 %v2619, %v2618
        %v2629 = vpack.c.b16 %v2621, %v2620
        %2638 = vmatpush.bf16.msra.mxu0 %v2629
        %2639 = vmatpush.bf16.msra.mxu0 %v2628
        %2640 = vmatpush.bf16.msra.mxu0 %v2627
        %2641 = vmatpush.bf16.msra.mxu0 %v2626
        %2642 = vmatpush.bf16.msra.mxu0 %v2625
        %2643 = vmatpush.bf16.msra.mxu0 %v2624
        %2644 = vmatpush.bf16.msra.mxu0 %v2623
        %2645 = vmatpush.bf16.msra.mxu0 %v2622
        %2646 = vmatmul.bf16.gmra.mxu0 %v2574
        %v2647 = vpop.f32.mrf.mxu0
        %v2648 = vadd.f32 0.0, %v2647
        %v2649 = vpop.f32.mrf.mxu0
        %v2650 = vadd.f32 0.0, %v2649
        %2651 = vmatmul.bf16.gmra.mxu0 %v2575
        %v2652 = vpop.f32.mrf.mxu0
        %v2653 = vadd.f32 0.0, %v2652
        %v2654 = vpop.f32.mrf.mxu0
        %v2655 = vadd.f32 0.0, %v2654
        %2656 = vmatmul.bf16.gmra.mxu0 %v2576
        %v2657 = vpop.f32.mrf.mxu0
        %v2658 = vadd.f32 0.0, %v2657
        %v2659 = vpop.f32.mrf.mxu0
        %v2660 = vadd.f32 0.0, %v2659
        %2661 = vmatmul.bf16.gmra.mxu0 %v2577
        %v2662 = vpop.f32.mrf.mxu0
        %v2663 = vadd.f32 0.0, %v2662
        %v2664 = vpop.f32.mrf.mxu0
        %v2665 = vadd.f32 0.0, %v2664
        %2666 = vmatmul.bf16.gmra.mxu0 %v2578
        %v2667 = vpop.f32.mrf.mxu0
        %v2668 = vadd.f32 0.0, %v2667
        %v2669 = vpop.f32.mrf.mxu0
        %v2670 = vadd.f32 0.0, %v2669
        %2671 = vmatmul.bf16.gmra.mxu0 %v2579
        %v2672 = vpop.f32.mrf.mxu0
        %v2673 = vadd.f32 0.0, %v2672
        %v2674 = vpop.f32.mrf.mxu0
        %v2675 = vadd.f32 0.0, %v2674
        %2676 = vmatmul.bf16.gmra.mxu0 %v2580
        %v2677 = vpop.f32.mrf.mxu0
        %v2678 = vadd.f32 0.0, %v2677
        %v2679 = vpop.f32.mrf.mxu0
        %v2680 = vadd.f32 0.0, %v2679
        %2681 = vmatmul.bf16.gmra.mxu0 %v2581
        %v2682 = vpop.f32.mrf.mxu0
        %v2683 = vadd.f32 0.0, %v2682
        %v2684 = vpop.f32.mrf.mxu0
        %v2685 = vadd.f32 0.0, %v2684
        %2686 = vdwg.mxu0
        %v2703 = vunpack.c.l.b16 %v2477
        %v2704 = vunpack.c.l.b16 %v2478
        %v2705 = vunpack.c.l.b16 %v2479
        %v2706 = vunpack.c.l.b16 %v2480
        %v2707 = vunpack.c.l.b16 %v2481
        %v2708 = vunpack.c.l.b16 %v2482
        %v2709 = vunpack.c.l.b16 %v2483
        %v2710 = vunpack.c.l.b16 %v2484
        %v2711 = vunpack.c.l.b16 %v2485
        %v2712 = vunpack.c.l.b16 %v2486
        %v2713 = vunpack.c.l.b16 %v2487
        %v2714 = vunpack.c.l.b16 %v2488
        %v2715 = vunpack.c.l.b16 %v2489
        %v2716 = vunpack.c.l.b16 %v2490
        %v2717 = vunpack.c.l.b16 %v2491
        %v2718 = vunpack.c.l.b16 %v2492
        %v2719 = vpack.c.b16 %v2704, %v2703
        %v2720 = vpack.c.b16 %v2706, %v2705
        %v2721 = vpack.c.b16 %v2708, %v2707
        %v2722 = vpack.c.b16 %v2710, %v2709
        %v2723 = vpack.c.b16 %v2712, %v2711
        %v2724 = vpack.c.b16 %v2714, %v2713
        %v2725 = vpack.c.b16 %v2716, %v2715
        %v2726 = vpack.c.b16 %v2718, %v2717
        %v2751 = vunpack.c.l.b16 %v2493
        %v2752 = vunpack.c.l.b16 %v2494
        %v2753 = vunpack.c.l.b16 %v2495
        %v2754 = vunpack.c.l.b16 %v2496
        %v2755 = vunpack.c.l.b16 %v2497
        %v2756 = vunpack.c.l.b16 %v2498
        %v2757 = vunpack.c.l.b16 %v2499
        %v2758 = vunpack.c.l.b16 %v2500
        %v2759 = vunpack.c.l.b16 %v2501
        %v2760 = vunpack.c.l.b16 %v2502
        %v2761 = vunpack.c.l.b16 %v2503
        %v2762 = vunpack.c.l.b16 %v2504
        %v2763 = vunpack.c.l.b16 %v2505
        %v2764 = vunpack.c.l.b16 %v2506
        %v2765 = vunpack.c.l.b16 %v2507
        %v2766 = vunpack.c.l.b16 %v2508
        %v2767 = vpack.c.b16 %v2752, %v2751
        %v2768 = vpack.c.b16 %v2754, %v2753
        %v2769 = vpack.c.b16 %v2756, %v2755
        %v2770 = vpack.c.b16 %v2758, %v2757
        %v2771 = vpack.c.b16 %v2760, %v2759
        %v2772 = vpack.c.b16 %v2762, %v2761
        %v2773 = vpack.c.b16 %v2764, %v2763
        %v2774 = vpack.c.b16 %v2766, %v2765
        %2783 = vmatpush.bf16.msra.mxu0 %v2774
        %2784 = vmatpush.bf16.msra.mxu0 %v2773
        %2785 = vmatpush.bf16.msra.mxu0 %v2772
        %2786 = vmatpush.bf16.msra.mxu0 %v2771
        %2787 = vmatpush.bf16.msra.mxu0 %v2770
        %2788 = vmatpush.bf16.msra.mxu0 %v2769
        %2789 = vmatpush.bf16.msra.mxu0 %v2768
        %2790 = vmatpush.bf16.msra.mxu0 %v2767
        %2791 = vmatmul.bf16.gmra.mxu0 %v2719
        %v2792 = vpop.f32.mrf.mxu0
        %v2793 = vadd.f32 %v2648, %v2792
        %v2794 = vpop.f32.mrf.mxu0
        %v2795 = vadd.f32 %v2650, %v2794
        %2796 = vmatmul.bf16.gmra.mxu0 %v2720
        %v2797 = vpop.f32.mrf.mxu0
        %v2798 = vadd.f32 %v2653, %v2797
        %v2799 = vpop.f32.mrf.mxu0
        %v2800 = vadd.f32 %v2655, %v2799
        %2801 = vmatmul.bf16.gmra.mxu0 %v2721
        %v2802 = vpop.f32.mrf.mxu0
        %v2803 = vadd.f32 %v2658, %v2802
        %v2804 = vpop.f32.mrf.mxu0
        %v2805 = vadd.f32 %v2660, %v2804
        %2806 = vmatmul.bf16.gmra.mxu0 %v2722
        %v2807 = vpop.f32.mrf.mxu0
        %v2808 = vadd.f32 %v2663, %v2807
        %v2809 = vpop.f32.mrf.mxu0
        %v2810 = vadd.f32 %v2665, %v2809
        %2811 = vmatmul.bf16.gmra.mxu0 %v2723
        %v2812 = vpop.f32.mrf.mxu0
        %v2813 = vadd.f32 %v2668, %v2812
        %v2814 = vpop.f32.mrf.mxu0
        %v2815 = vadd.f32 %v2670, %v2814
        %2816 = vmatmul.bf16.gmra.mxu0 %v2724
        %v2817 = vpop.f32.mrf.mxu0
        %v2818 = vadd.f32 %v2673, %v2817
        %v2819 = vpop.f32.mrf.mxu0
        %v2820 = vadd.f32 %v2675, %v2819
        %2821 = vmatmul.bf16.gmra.mxu0 %v2725
        %v2822 = vpop.f32.mrf.mxu0
        %v2823 = vadd.f32 %v2678, %v2822
        %v2824 = vpop.f32.mrf.mxu0
        %v2825 = vadd.f32 %v2680, %v2824
        %2826 = vmatmul.bf16.gmra.mxu0 %v2726
        %v2827 = vpop.f32.mrf.mxu0
        %v2828 = vadd.f32 %v2683, %v2827
        %v2829 = vpop.f32.mrf.mxu0
        %v2830 = vadd.f32 %v2685, %v2829
        %2831 = vdwg.mxu0
        %s2832 = scalar_lea.vmem [#allocation2], 352
        %v2833 = vld [vmem:[%s2832] sm:$0xf]
        %v2834 = vld [vmem:[%s2832 + $0x4] sm:$0xf]
        %v2835 = vld [vmem:[%s2832 + $0x8] sm:$0xf]
        %v2836 = vld [vmem:[%s2832 + $0xc] sm:$0xf]
        %v2837 = vld [vmem:[%s2832 + $0x10] sm:$0xf]
        %v2838 = vld [vmem:[%s2832 + $0x14] sm:$0xf]
        %v2839 = vld [vmem:[%s2832 + $0x18] sm:$0xf]
        %v2840 = vld [vmem:[%s2832 + $0x1c] sm:$0xf]
        %v2841 = vld [vmem:[%s2832 + $0x20] sm:$0xf]
        %v2842 = vld [vmem:[%s2832 + $0x24] sm:$0xf]
        %v2843 = vld [vmem:[%s2832 + $0x28] sm:$0xf]
        %v2844 = vld [vmem:[%s2832 + $0x2c] sm:$0xf]
        %v2845 = vld [vmem:[%s2832 + $0x30] sm:$0xf]
        %v2846 = vld [vmem:[%s2832 + $0x34] sm:$0xf]
        %v2847 = vld [vmem:[%s2832 + $0x38] sm:$0xf]
        %v2848 = vld [vmem:[%s2832 + $0x3c] sm:$0xf]
        %v2849 = vld [vmem:[%s1063] sm:$0xf]
        %v2850 = vld [vmem:[%s1063 + $0x4] sm:$0xf]
        %v2851 = vld [vmem:[%s1063 + $0x8] sm:$0xf]
        %v2852 = vld [vmem:[%s1063 + $0xc] sm:$0xf]
        %v2853 = vld [vmem:[%s1063 + $0x10] sm:$0xf]
        %v2854 = vld [vmem:[%s1063 + $0x14] sm:$0xf]
        %v2855 = vld [vmem:[%s1063 + $0x18] sm:$0xf]
        %v2856 = vld [vmem:[%s1063 + $0x1c] sm:$0xf]
        %v2857 = vld [vmem:[%s1063 + $0x20] sm:$0xf]
        %v2858 = vld [vmem:[%s1063 + $0x24] sm:$0xf]
        %v2859 = vld [vmem:[%s1063 + $0x28] sm:$0xf]
        %v2860 = vld [vmem:[%s1063 + $0x2c] sm:$0xf]
        %v2861 = vld [vmem:[%s1063 + $0x30] sm:$0xf]
        %v2862 = vld [vmem:[%s1063 + $0x34] sm:$0xf]
        %v2863 = vld [vmem:[%s1063 + $0x38] sm:$0xf]
        %v2864 = vld [vmem:[%s1063 + $0x3c] sm:$0xf]
        %v2881 = vunpack.c.l.b16 %v2833
        %v2882 = vunpack.c.l.b16 %v2834
        %v2883 = vunpack.c.l.b16 %v2835
        %v2884 = vunpack.c.l.b16 %v2836
        %v2885 = vunpack.c.l.b16 %v2837
        %v2886 = vunpack.c.l.b16 %v2838
        %v2887 = vunpack.c.l.b16 %v2839
        %v2888 = vunpack.c.l.b16 %v2840
        %v2889 = vunpack.c.l.b16 %v2841
        %v2890 = vunpack.c.l.b16 %v2842
        %v2891 = vunpack.c.l.b16 %v2843
        %v2892 = vunpack.c.l.b16 %v2844
        %v2893 = vunpack.c.l.b16 %v2845
        %v2894 = vunpack.c.l.b16 %v2846
        %v2895 = vunpack.c.l.b16 %v2847
        %v2896 = vunpack.c.l.b16 %v2848
        %v2897 = vpack.c.b16 %v2882, %v2881
        %v2898 = vpack.c.b16 %v2884, %v2883
        %v2899 = vpack.c.b16 %v2886, %v2885
        %v2900 = vpack.c.b16 %v2888, %v2887
        %v2901 = vpack.c.b16 %v2890, %v2889
        %v2902 = vpack.c.b16 %v2892, %v2891
        %v2903 = vpack.c.b16 %v2894, %v2893
        %v2904 = vpack.c.b16 %v2896, %v2895
        %v2929 = vunpack.c.l.b16 %v2849
        %v2930 = vunpack.c.l.b16 %v2850
        %v2931 = vunpack.c.l.b16 %v2851
        %v2932 = vunpack.c.l.b16 %v2852
        %v2933 = vunpack.c.l.b16 %v2853
        %v2934 = vunpack.c.l.b16 %v2854
        %v2935 = vunpack.c.l.b16 %v2855
        %v2936 = vunpack.c.l.b16 %v2856
        %v2937 = vunpack.c.l.b16 %v2857
        %v2938 = vunpack.c.l.b16 %v2858
        %v2939 = vunpack.c.l.b16 %v2859
        %v2940 = vunpack.c.l.b16 %v2860
        %v2941 = vunpack.c.l.b16 %v2861
        %v2942 = vunpack.c.l.b16 %v2862
        %v2943 = vunpack.c.l.b16 %v2863
        %v2944 = vunpack.c.l.b16 %v2864
        %v2945 = vpack.c.b16 %v2930, %v2929
        %v2946 = vpack.c.b16 %v2932, %v2931
        %v2947 = vpack.c.b16 %v2934, %v2933
        %v2948 = vpack.c.b16 %v2936, %v2935
        %v2949 = vpack.c.b16 %v2938, %v2937
        %v2950 = vpack.c.b16 %v2940, %v2939
        %v2951 = vpack.c.b16 %v2942, %v2941
        %v2952 = vpack.c.b16 %v2944, %v2943
        %2961 = vmatpush.bf16.msra.mxu0 %v2952
        %2962 = vmatpush.bf16.msra.mxu0 %v2951
        %2963 = vmatpush.bf16.msra.mxu0 %v2950
        %2964 = vmatpush.bf16.msra.mxu0 %v2949
        %2965 = vmatpush.bf16.msra.mxu0 %v2948
        %2966 = vmatpush.bf16.msra.mxu0 %v2947
        %2967 = vmatpush.bf16.msra.mxu0 %v2946
        %2968 = vmatpush.bf16.msra.mxu0 %v2945
        %2969 = vmatmul.bf16.gmra.mxu0 %v2897
        %v2970 = vpop.f32.mrf.mxu0
        %v2971 = vadd.f32 0.0, %v2970
        %v2972 = vpop.f32.mrf.mxu0
        %v2973 = vadd.f32 0.0, %v2972
        %2974 = vmatmul.bf16.gmra.mxu0 %v2898
        %v2975 = vpop.f32.mrf.mxu0
        %v2976 = vadd.f32 0.0, %v2975
        %v2977 = vpop.f32.mrf.mxu0
        %v2978 = vadd.f32 0.0, %v2977
        %2979 = vmatmul.bf16.gmra.mxu0 %v2899
        %v2980 = vpop.f32.mrf.mxu0
        %v2981 = vadd.f32 0.0, %v2980
        %v2982 = vpop.f32.mrf.mxu0
        %v2983 = vadd.f32 0.0, %v2982
        %2984 = vmatmul.bf16.gmra.mxu0 %v2900
        %v2985 = vpop.f32.mrf.mxu0
        %v2986 = vadd.f32 0.0, %v2985
        %v2987 = vpop.f32.mrf.mxu0
        %v2988 = vadd.f32 0.0, %v2987
        %2989 = vmatmul.bf16.gmra.mxu0 %v2901
        %v2990 = vpop.f32.mrf.mxu0
        %v2991 = vadd.f32 0.0, %v2990
        %v2992 = vpop.f32.mrf.mxu0
        %v2993 = vadd.f32 0.0, %v2992
        %2994 = vmatmul.bf16.gmra.mxu0 %v2902
        %v2995 = vpop.f32.mrf.mxu0
        %v2996 = vadd.f32 0.0, %v2995
        %v2997 = vpop.f32.mrf.mxu0
        %v2998 = vadd.f32 0.0, %v2997
        %2999 = vmatmul.bf16.gmra.mxu0 %v2903
        %v3000 = vpop.f32.mrf.mxu0
        %v3001 = vadd.f32 0.0, %v3000
        %v3002 = vpop.f32.mrf.mxu0
        %v3003 = vadd.f32 0.0, %v3002
        %3004 = vmatmul.bf16.gmra.mxu0 %v2904
        %v3005 = vpop.f32.mrf.mxu0
        %v3006 = vadd.f32 0.0, %v3005
        %v3007 = vpop.f32.mrf.mxu0
        %v3008 = vadd.f32 0.0, %v3007
        %3009 = vdwg.mxu0
        %v3010 = vadd.f32 %v2793, %v2971
        %v3011 = vadd.f32 %v2795, %v2973
        %v3012 = vadd.f32 %v2798, %v2976
        %v3013 = vadd.f32 %v2800, %v2978
        %v3014 = vadd.f32 %v2803, %v2981
        %v3015 = vadd.f32 %v2805, %v2983
        %v3016 = vadd.f32 %v2808, %v2986
        %v3017 = vadd.f32 %v2810, %v2988
        %v3018 = vadd.f32 %v2813, %v2991
        %v3019 = vadd.f32 %v2815, %v2993
        %v3020 = vadd.f32 %v2818, %v2996
        %v3021 = vadd.f32 %v2820, %v2998
        %v3022 = vadd.f32 %v2823, %v3001
        %v3023 = vadd.f32 %v2825, %v3003
        %v3024 = vadd.f32 %v2828, %v3006
        %v3025 = vadd.f32 %v2830, %v3008
        %s3026 = scalar_lea.vmem [#allocation2], 72
        %v3027 = vld [vmem:[%s3026] sm:$0xf]
        %v3028 = vld [vmem:[%s3026 + $0x4] sm:$0xf]
        %v3029 = vld [vmem:[%s3026 + $0x8] sm:$0xf]
        %v3030 = vld [vmem:[%s3026 + $0xc] sm:$0xf]
        %v3031 = vld [vmem:[%s3026 + $0x10] sm:$0xf]
        %v3032 = vld [vmem:[%s3026 + $0x14] sm:$0xf]
        %v3033 = vld [vmem:[%s3026 + $0x18] sm:$0xf]
        %v3034 = vld [vmem:[%s3026 + $0x1c] sm:$0xf]
        %v3035 = vld [vmem:[%s3026 + $0x20] sm:$0xf]
        %v3036 = vld [vmem:[%s3026 + $0x24] sm:$0xf]
        %v3037 = vld [vmem:[%s3026 + $0x28] sm:$0xf]
        %v3038 = vld [vmem:[%s3026 + $0x2c] sm:$0xf]
        %v3039 = vld [vmem:[%s3026 + $0x30] sm:$0xf]
        %v3040 = vld [vmem:[%s3026 + $0x34] sm:$0xf]
        %v3041 = vld [vmem:[%s3026 + $0x38] sm:$0xf]
        %v3042 = vld [vmem:[%s3026 + $0x3c] sm:$0xf]
        %v3043 = vld [vmem:[%s1257] sm:$0xf]
        %v3044 = vld [vmem:[%s1257 + $0x4] sm:$0xf]
        %v3045 = vld [vmem:[%s1257 + $0x8] sm:$0xf]
        %v3046 = vld [vmem:[%s1257 + $0xc] sm:$0xf]
        %v3047 = vld [vmem:[%s1257 + $0x10] sm:$0xf]
        %v3048 = vld [vmem:[%s1257 + $0x14] sm:$0xf]
        %v3049 = vld [vmem:[%s1257 + $0x18] sm:$0xf]
        %v3050 = vld [vmem:[%s1257 + $0x1c] sm:$0xf]
        %v3051 = vld [vmem:[%s1257 + $0x20] sm:$0xf]
        %v3052 = vld [vmem:[%s1257 + $0x24] sm:$0xf]
        %v3053 = vld [vmem:[%s1257 + $0x28] sm:$0xf]
        %v3054 = vld [vmem:[%s1257 + $0x2c] sm:$0xf]
        %v3055 = vld [vmem:[%s1257 + $0x30] sm:$0xf]
        %v3056 = vld [vmem:[%s1257 + $0x34] sm:$0xf]
        %v3057 = vld [vmem:[%s1257 + $0x38] sm:$0xf]
        %v3058 = vld [vmem:[%s1257 + $0x3c] sm:$0xf]
        %v3075 = vunpack.c.l.b16 %v3027
        %v3076 = vunpack.c.l.b16 %v3028
        %v3077 = vunpack.c.l.b16 %v3029
        %v3078 = vunpack.c.l.b16 %v3030
        %v3079 = vunpack.c.l.b16 %v3031
        %v3080 = vunpack.c.l.b16 %v3032
        %v3081 = vunpack.c.l.b16 %v3033
        %v3082 = vunpack.c.l.b16 %v3034
        %v3083 = vunpack.c.l.b16 %v3035
        %v3084 = vunpack.c.l.b16 %v3036
        %v3085 = vunpack.c.l.b16 %v3037
        %v3086 = vunpack.c.l.b16 %v3038
        %v3087 = vunpack.c.l.b16 %v3039
        %v3088 = vunpack.c.l.b16 %v3040
        %v3089 = vunpack.c.l.b16 %v3041
        %v3090 = vunpack.c.l.b16 %v3042
        %v3091 = vpack.c.b16 %v3076, %v3075
        %v3092 = vpack.c.b16 %v3078, %v3077
        %v3093 = vpack.c.b16 %v3080, %v3079
        %v3094 = vpack.c.b16 %v3082, %v3081
        %v3095 = vpack.c.b16 %v3084, %v3083
        %v3096 = vpack.c.b16 %v3086, %v3085
        %v3097 = vpack.c.b16 %v3088, %v3087
        %v3098 = vpack.c.b16 %v3090, %v3089
        %v3123 = vunpack.c.l.b16 %v3043
        %v3124 = vunpack.c.l.b16 %v3044
        %v3125 = vunpack.c.l.b16 %v3045
        %v3126 = vunpack.c.l.b16 %v3046
        %v3127 = vunpack.c.l.b16 %v3047
        %v3128 = vunpack.c.l.b16 %v3048
        %v3129 = vunpack.c.l.b16 %v3049
        %v3130 = vunpack.c.l.b16 %v3050
        %v3131 = vunpack.c.l.b16 %v3051
        %v3132 = vunpack.c.l.b16 %v3052
        %v3133 = vunpack.c.l.b16 %v3053
        %v3134 = vunpack.c.l.b16 %v3054
        %v3135 = vunpack.c.l.b16 %v3055
        %v3136 = vunpack.c.l.b16 %v3056
        %v3137 = vunpack.c.l.b16 %v3057
        %v3138 = vunpack.c.l.b16 %v3058
        %v3139 = vpack.c.b16 %v3124, %v3123
        %v3140 = vpack.c.b16 %v3126, %v3125
        %v3141 = vpack.c.b16 %v3128, %v3127
        %v3142 = vpack.c.b16 %v3130, %v3129
        %v3143 = vpack.c.b16 %v3132, %v3131
        %v3144 = vpack.c.b16 %v3134, %v3133
        %v3145 = vpack.c.b16 %v3136, %v3135
        %v3146 = vpack.c.b16 %v3138, %v3137
        %3155 = vmatpush.bf16.msra.mxu0 %v3146
        %3156 = vmatpush.bf16.msra.mxu0 %v3145
        %3157 = vmatpush.bf16.msra.mxu0 %v3144
        %3158 = vmatpush.bf16.msra.mxu0 %v3143
        %3159 = vmatpush.bf16.msra.mxu0 %v3142
        %3160 = vmatpush.bf16.msra.mxu0 %v3141
        %3161 = vmatpush.bf16.msra.mxu0 %v3140
        %3162 = vmatpush.bf16.msra.mxu0 %v3139
        %3163 = vmatmul.bf16.gmra.mxu0 %v3091
        %v3164 = vpop.f32.mrf.mxu0
        %v3165 = vadd.f32 0.0, %v3164
        %v3166 = vpop.f32.mrf.mxu0
        %v3167 = vadd.f32 0.0, %v3166
        %3168 = vmatmul.bf16.gmra.mxu0 %v3092
        %v3169 = vpop.f32.mrf.mxu0
        %v3170 = vadd.f32 0.0, %v3169
        %v3171 = vpop.f32.mrf.mxu0
        %v3172 = vadd.f32 0.0, %v3171
        %3173 = vmatmul.bf16.gmra.mxu0 %v3093
        %v3174 = vpop.f32.mrf.mxu0
        %v3175 = vadd.f32 0.0, %v3174
        %v3176 = vpop.f32.mrf.mxu0
        %v3177 = vadd.f32 0.0, %v3176
        %3178 = vmatmul.bf16.gmra.mxu0 %v3094
        %v3179 = vpop.f32.mrf.mxu0
        %v3180 = vadd.f32 0.0, %v3179
        %v3181 = vpop.f32.mrf.mxu0
        %v3182 = vadd.f32 0.0, %v3181
        %3183 = vmatmul.bf16.gmra.mxu0 %v3095
        %v3184 = vpop.f32.mrf.mxu0
        %v3185 = vadd.f32 0.0, %v3184
        %v3186 = vpop.f32.mrf.mxu0
        %v3187 = vadd.f32 0.0, %v3186
        %3188 = vmatmul.bf16.gmra.mxu0 %v3096
        %v3189 = vpop.f32.mrf.mxu0
        %v3190 = vadd.f32 0.0, %v3189
        %v3191 = vpop.f32.mrf.mxu0
        %v3192 = vadd.f32 0.0, %v3191
        %3193 = vmatmul.bf16.gmra.mxu0 %v3097
        %v3194 = vpop.f32.mrf.mxu0
        %v3195 = vadd.f32 0.0, %v3194
        %v3196 = vpop.f32.mrf.mxu0
        %v3197 = vadd.f32 0.0, %v3196
        %3198 = vmatmul.bf16.gmra.mxu0 %v3098
        %v3199 = vpop.f32.mrf.mxu0
        %v3200 = vadd.f32 0.0, %v3199
        %v3201 = vpop.f32.mrf.mxu0
        %v3202 = vadd.f32 0.0, %v3201
        %3203 = vdwg.mxu0
        %v3204 = vadd.f32 %v3010, %v3165
        %v3205 = vadd.f32 %v3011, %v3167
        %v3206 = vadd.f32 %v3012, %v3170
        %v3207 = vadd.f32 %v3013, %v3172
        %v3208 = vadd.f32 %v3014, %v3175
        %v3209 = vadd.f32 %v3015, %v3177
        %v3210 = vadd.f32 %v3016, %v3180
        %v3211 = vadd.f32 %v3017, %v3182
        %v3212 = vadd.f32 %v3018, %v3185
        %v3213 = vadd.f32 %v3019, %v3187
        %v3214 = vadd.f32 %v3020, %v3190
        %v3215 = vadd.f32 %v3021, %v3192
        %v3216 = vadd.f32 %v3022, %v3195
        %v3217 = vadd.f32 %v3023, %v3197
        %v3218 = vadd.f32 %v3024, %v3200
        %v3219 = vadd.f32 %v3025, %v3202
        %s3220 = scalar_lea.vmem [#allocation2], 216
        %v3221 = vld [vmem:[%s3220] sm:$0xf]
        %v3222 = vld [vmem:[%s3220 + $0x4] sm:$0xf]
        %v3223 = vld [vmem:[%s3220 + $0x8] sm:$0xf]
        %v3224 = vld [vmem:[%s3220 + $0xc] sm:$0xf]
        %v3225 = vld [vmem:[%s3220 + $0x10] sm:$0xf]
        %v3226 = vld [vmem:[%s3220 + $0x14] sm:$0xf]
        %v3227 = vld [vmem:[%s3220 + $0x18] sm:$0xf]
        %v3228 = vld [vmem:[%s3220 + $0x1c] sm:$0xf]
        %v3229 = vld [vmem:[%s3220 + $0x20] sm:$0xf]
        %v3230 = vld [vmem:[%s3220 + $0x24] sm:$0xf]
        %v3231 = vld [vmem:[%s3220 + $0x28] sm:$0xf]
        %v3232 = vld [vmem:[%s3220 + $0x2c] sm:$0xf]
        %v3233 = vld [vmem:[%s3220 + $0x30] sm:$0xf]
        %v3234 = vld [vmem:[%s3220 + $0x34] sm:$0xf]
        %v3235 = vld [vmem:[%s3220 + $0x38] sm:$0xf]
        %v3236 = vld [vmem:[%s3220 + $0x3c] sm:$0xf]
        %v3237 = vld [vmem:[%s1451] sm:$0xf]
        %v3238 = vld [vmem:[%s1451 + $0x4] sm:$0xf]
        %v3239 = vld [vmem:[%s1451 + $0x8] sm:$0xf]
        %v3240 = vld [vmem:[%s1451 + $0xc] sm:$0xf]
        %v3241 = vld [vmem:[%s1451 + $0x10] sm:$0xf]
        %v3242 = vld [vmem:[%s1451 + $0x14] sm:$0xf]
        %v3243 = vld [vmem:[%s1451 + $0x18] sm:$0xf]
        %v3244 = vld [vmem:[%s1451 + $0x1c] sm:$0xf]
        %v3245 = vld [vmem:[%s1451 + $0x20] sm:$0xf]
        %v3246 = vld [vmem:[%s1451 + $0x24] sm:$0xf]
        %v3247 = vld [vmem:[%s1451 + $0x28] sm:$0xf]
        %v3248 = vld [vmem:[%s1451 + $0x2c] sm:$0xf]
        %v3249 = vld [vmem:[%s1451 + $0x30] sm:$0xf]
        %v3250 = vld [vmem:[%s1451 + $0x34] sm:$0xf]
        %v3251 = vld [vmem:[%s1451 + $0x38] sm:$0xf]
        %v3252 = vld [vmem:[%s1451 + $0x3c] sm:$0xf]
        %v3269 = vunpack.c.l.b16 %v3221
        %v3270 = vunpack.c.l.b16 %v3222
        %v3271 = vunpack.c.l.b16 %v3223
        %v3272 = vunpack.c.l.b16 %v3224
        %v3273 = vunpack.c.l.b16 %v3225
        %v3274 = vunpack.c.l.b16 %v3226
        %v3275 = vunpack.c.l.b16 %v3227
        %v3276 = vunpack.c.l.b16 %v3228
        %v3277 = vunpack.c.l.b16 %v3229
        %v3278 = vunpack.c.l.b16 %v3230
        %v3279 = vunpack.c.l.b16 %v3231
        %v3280 = vunpack.c.l.b16 %v3232
        %v3281 = vunpack.c.l.b16 %v3233
        %v3282 = vunpack.c.l.b16 %v3234
        %v3283 = vunpack.c.l.b16 %v3235
        %v3284 = vunpack.c.l.b16 %v3236
        %v3285 = vpack.c.b16 %v3270, %v3269
        %v3286 = vpack.c.b16 %v3272, %v3271
        %v3287 = vpack.c.b16 %v3274, %v3273
        %v3288 = vpack.c.b16 %v3276, %v3275
        %v3289 = vpack.c.b16 %v3278, %v3277
        %v3290 = vpack.c.b16 %v3280, %v3279
        %v3291 = vpack.c.b16 %v3282, %v3281
        %v3292 = vpack.c.b16 %v3284, %v3283
        %v3317 = vunpack.c.l.b16 %v3237
        %v3318 = vunpack.c.l.b16 %v3238
        %v3319 = vunpack.c.l.b16 %v3239
        %v3320 = vunpack.c.l.b16 %v3240
        %v3321 = vunpack.c.l.b16 %v3241
        %v3322 = vunpack.c.l.b16 %v3242
        %v3323 = vunpack.c.l.b16 %v3243
        %v3324 = vunpack.c.l.b16 %v3244
        %v3325 = vunpack.c.l.b16 %v3245
        %v3326 = vunpack.c.l.b16 %v3246
        %v3327 = vunpack.c.l.b16 %v3247
        %v3328 = vunpack.c.l.b16 %v3248
        %v3329 = vunpack.c.l.b16 %v3249
        %v3330 = vunpack.c.l.b16 %v3250
        %v3331 = vunpack.c.l.b16 %v3251
        %v3332 = vunpack.c.l.b16 %v3252
        %v3333 = vpack.c.b16 %v3318, %v3317
        %v3334 = vpack.c.b16 %v3320, %v3319
        %v3335 = vpack.c.b16 %v3322, %v3321
        %v3336 = vpack.c.b16 %v3324, %v3323
        %v3337 = vpack.c.b16 %v3326, %v3325
        %v3338 = vpack.c.b16 %v3328, %v3327
        %v3339 = vpack.c.b16 %v3330, %v3329
        %v3340 = vpack.c.b16 %v3332, %v3331
        %3349 = vmatpush.bf16.msra.mxu0 %v3340
        %3350 = vmatpush.bf16.msra.mxu0 %v3339
        %3351 = vmatpush.bf16.msra.mxu0 %v3338
        %3352 = vmatpush.bf16.msra.mxu0 %v3337
        %3353 = vmatpush.bf16.msra.mxu0 %v3336
        %3354 = vmatpush.bf16.msra.mxu0 %v3335
        %3355 = vmatpush.bf16.msra.mxu0 %v3334
        %3356 = vmatpush.bf16.msra.mxu0 %v3333
        %3357 = vmatmul.bf16.gmra.mxu0 %v3285
        %v3358 = vpop.f32.mrf.mxu0
        %v3359 = vadd.f32 0.0, %v3358
        %v3360 = vpop.f32.mrf.mxu0
        %v3361 = vadd.f32 0.0, %v3360
        %3362 = vmatmul.bf16.gmra.mxu0 %v3286
        %v3363 = vpop.f32.mrf.mxu0
        %v3364 = vadd.f32 0.0, %v3363
        %v3365 = vpop.f32.mrf.mxu0
        %v3366 = vadd.f32 0.0, %v3365
        %3367 = vmatmul.bf16.gmra.mxu0 %v3287
        %v3368 = vpop.f32.mrf.mxu0
        %v3369 = vadd.f32 0.0, %v3368
        %v3370 = vpop.f32.mrf.mxu0
        %v3371 = vadd.f32 0.0, %v3370
        %3372 = vmatmul.bf16.gmra.mxu0 %v3288
        %v3373 = vpop.f32.mrf.mxu0
        %v3374 = vadd.f32 0.0, %v3373
        %v3375 = vpop.f32.mrf.mxu0
        %v3376 = vadd.f32 0.0, %v3375
        %3377 = vmatmul.bf16.gmra.mxu0 %v3289
        %v3378 = vpop.f32.mrf.mxu0
        %v3379 = vadd.f32 0.0, %v3378
        %v3380 = vpop.f32.mrf.mxu0
        %v3381 = vadd.f32 0.0, %v3380
        %3382 = vmatmul.bf16.gmra.mxu0 %v3290
        %v3383 = vpop.f32.mrf.mxu0
        %v3384 = vadd.f32 0.0, %v3383
        %v3385 = vpop.f32.mrf.mxu0
        %v3386 = vadd.f32 0.0, %v3385
        %3387 = vmatmul.bf16.gmra.mxu0 %v3291
        %v3388 = vpop.f32.mrf.mxu0
        %v3389 = vadd.f32 0.0, %v3388
        %v3390 = vpop.f32.mrf.mxu0
        %v3391 = vadd.f32 0.0, %v3390
        %3392 = vmatmul.bf16.gmra.mxu0 %v3292
        %v3393 = vpop.f32.mrf.mxu0
        %v3394 = vadd.f32 0.0, %v3393
        %v3395 = vpop.f32.mrf.mxu0
        %v3396 = vadd.f32 0.0, %v3395
        %3397 = vdwg.mxu0
        %v3398 = vadd.f32 %v3204, %v3359
        %v3399 = vadd.f32 %v3205, %v3361
        %v3400 = vadd.f32 %v3206, %v3364
        %v3401 = vadd.f32 %v3207, %v3366
        %v3402 = vadd.f32 %v3208, %v3369
        %v3403 = vadd.f32 %v3209, %v3371
        %v3404 = vadd.f32 %v3210, %v3374
        %v3405 = vadd.f32 %v3211, %v3376
        %v3406 = vadd.f32 %v3212, %v3379
        %v3407 = vadd.f32 %v3213, %v3381
        %v3408 = vadd.f32 %v3214, %v3384
        %v3409 = vadd.f32 %v3215, %v3386
        %v3410 = vadd.f32 %v3216, %v3389
        %v3411 = vadd.f32 %v3217, %v3391
        %v3412 = vadd.f32 %v3218, %v3394
        %v3413 = vadd.f32 %v3219, %v3396
        %s3414 = scalar_lea.vmem [#allocation2], 360
        %v3415 = vld [vmem:[%s3414] sm:$0xf]
        %v3416 = vld [vmem:[%s3414 + $0x4] sm:$0xf]
        %v3417 = vld [vmem:[%s3414 + $0x8] sm:$0xf]
        %v3418 = vld [vmem:[%s3414 + $0xc] sm:$0xf]
        %v3419 = vld [vmem:[%s3414 + $0x10] sm:$0xf]
        %v3420 = vld [vmem:[%s3414 + $0x14] sm:$0xf]
        %v3421 = vld [vmem:[%s3414 + $0x18] sm:$0xf]
        %v3422 = vld [vmem:[%s3414 + $0x1c] sm:$0xf]
        %v3423 = vld [vmem:[%s3414 + $0x20] sm:$0xf]
        %v3424 = vld [vmem:[%s3414 + $0x24] sm:$0xf]
        %v3425 = vld [vmem:[%s3414 + $0x28] sm:$0xf]
        %v3426 = vld [vmem:[%s3414 + $0x2c] sm:$0xf]
        %v3427 = vld [vmem:[%s3414 + $0x30] sm:$0xf]
        %v3428 = vld [vmem:[%s3414 + $0x34] sm:$0xf]
        %v3429 = vld [vmem:[%s3414 + $0x38] sm:$0xf]
        %v3430 = vld [vmem:[%s3414 + $0x3c] sm:$0xf]
        %v3431 = vld [vmem:[%s1645] sm:$0xf]
        %v3432 = vld [vmem:[%s1645 + $0x4] sm:$0xf]
        %v3433 = vld [vmem:[%s1645 + $0x8] sm:$0xf]
        %v3434 = vld [vmem:[%s1645 + $0xc] sm:$0xf]
        %v3435 = vld [vmem:[%s1645 + $0x10] sm:$0xf]
        %v3436 = vld [vmem:[%s1645 + $0x14] sm:$0xf]
        %v3437 = vld [vmem:[%s1645 + $0x18] sm:$0xf]
        %v3438 = vld [vmem:[%s1645 + $0x1c] sm:$0xf]
        %v3439 = vld [vmem:[%s1645 + $0x20] sm:$0xf]
        %v3440 = vld [vmem:[%s1645 + $0x24] sm:$0xf]
        %v3441 = vld [vmem:[%s1645 + $0x28] sm:$0xf]
        %v3442 = vld [vmem:[%s1645 + $0x2c] sm:$0xf]
        %v3443 = vld [vmem:[%s1645 + $0x30] sm:$0xf]
        %v3444 = vld [vmem:[%s1645 + $0x34] sm:$0xf]
        %v3445 = vld [vmem:[%s1645 + $0x38] sm:$0xf]
        %v3446 = vld [vmem:[%s1645 + $0x3c] sm:$0xf]
        %v3463 = vunpack.c.l.b16 %v3415
        %v3464 = vunpack.c.l.b16 %v3416
        %v3465 = vunpack.c.l.b16 %v3417
        %v3466 = vunpack.c.l.b16 %v3418
        %v3467 = vunpack.c.l.b16 %v3419
        %v3468 = vunpack.c.l.b16 %v3420
        %v3469 = vunpack.c.l.b16 %v3421
        %v3470 = vunpack.c.l.b16 %v3422
        %v3471 = vunpack.c.l.b16 %v3423
        %v3472 = vunpack.c.l.b16 %v3424
        %v3473 = vunpack.c.l.b16 %v3425
        %v3474 = vunpack.c.l.b16 %v3426
        %v3475 = vunpack.c.l.b16 %v3427
        %v3476 = vunpack.c.l.b16 %v3428
        %v3477 = vunpack.c.l.b16 %v3429
        %v3478 = vunpack.c.l.b16 %v3430
        %v3479 = vpack.c.b16 %v3464, %v3463
        %v3480 = vpack.c.b16 %v3466, %v3465
        %v3481 = vpack.c.b16 %v3468, %v3467
        %v3482 = vpack.c.b16 %v3470, %v3469
        %v3483 = vpack.c.b16 %v3472, %v3471
        %v3484 = vpack.c.b16 %v3474, %v3473
        %v3485 = vpack.c.b16 %v3476, %v3475
        %v3486 = vpack.c.b16 %v3478, %v3477
        %v3511 = vunpack.c.l.b16 %v3431
        %v3512 = vunpack.c.l.b16 %v3432
        %v3513 = vunpack.c.l.b16 %v3433
        %v3514 = vunpack.c.l.b16 %v3434
        %v3515 = vunpack.c.l.b16 %v3435
        %v3516 = vunpack.c.l.b16 %v3436
        %v3517 = vunpack.c.l.b16 %v3437
        %v3518 = vunpack.c.l.b16 %v3438
        %v3519 = vunpack.c.l.b16 %v3439
        %v3520 = vunpack.c.l.b16 %v3440
        %v3521 = vunpack.c.l.b16 %v3441
        %v3522 = vunpack.c.l.b16 %v3442
        %v3523 = vunpack.c.l.b16 %v3443
        %v3524 = vunpack.c.l.b16 %v3444
        %v3525 = vunpack.c.l.b16 %v3445
        %v3526 = vunpack.c.l.b16 %v3446
        %v3527 = vpack.c.b16 %v3512, %v3511
        %v3528 = vpack.c.b16 %v3514, %v3513
        %v3529 = vpack.c.b16 %v3516, %v3515
        %v3530 = vpack.c.b16 %v3518, %v3517
        %v3531 = vpack.c.b16 %v3520, %v3519
        %v3532 = vpack.c.b16 %v3522, %v3521
        %v3533 = vpack.c.b16 %v3524, %v3523
        %v3534 = vpack.c.b16 %v3526, %v3525
        %3543 = vmatpush.bf16.msra.mxu0 %v3534
        %3544 = vmatpush.bf16.msra.mxu0 %v3533
        %3545 = vmatpush.bf16.msra.mxu0 %v3532
        %3546 = vmatpush.bf16.msra.mxu0 %v3531
        %3547 = vmatpush.bf16.msra.mxu0 %v3530
        %3548 = vmatpush.bf16.msra.mxu0 %v3529
        %3549 = vmatpush.bf16.msra.mxu0 %v3528
        %3550 = vmatpush.bf16.msra.mxu0 %v3527
        %3551 = vmatmul.bf16.gmra.mxu0 %v3479
        %v3552 = vpop.f32.mrf.mxu0
        %v3553 = vadd.f32 0.0, %v3552
        %v3554 = vpop.f32.mrf.mxu0
        %v3555 = vadd.f32 0.0, %v3554
        %3556 = vmatmul.bf16.gmra.mxu0 %v3480
        %v3557 = vpop.f32.mrf.mxu0
        %v3558 = vadd.f32 0.0, %v3557
        %v3559 = vpop.f32.mrf.mxu0
        %v3560 = vadd.f32 0.0, %v3559
        %3561 = vmatmul.bf16.gmra.mxu0 %v3481
        %v3562 = vpop.f32.mrf.mxu0
        %v3563 = vadd.f32 0.0, %v3562
        %v3564 = vpop.f32.mrf.mxu0
        %v3565 = vadd.f32 0.0, %v3564
        %3566 = vmatmul.bf16.gmra.mxu0 %v3482
        %v3567 = vpop.f32.mrf.mxu0
        %v3568 = vadd.f32 0.0, %v3567
        %v3569 = vpop.f32.mrf.mxu0
        %v3570 = vadd.f32 0.0, %v3569
        %3571 = vmatmul.bf16.gmra.mxu0 %v3483
        %v3572 = vpop.f32.mrf.mxu0
        %v3573 = vadd.f32 0.0, %v3572
        %v3574 = vpop.f32.mrf.mxu0
        %v3575 = vadd.f32 0.0, %v3574
        %3576 = vmatmul.bf16.gmra.mxu0 %v3484
        %v3577 = vpop.f32.mrf.mxu0
        %v3578 = vadd.f32 0.0, %v3577
        %v3579 = vpop.f32.mrf.mxu0
        %v3580 = vadd.f32 0.0, %v3579
        %3581 = vmatmul.bf16.gmra.mxu0 %v3485
        %v3582 = vpop.f32.mrf.mxu0
        %v3583 = vadd.f32 0.0, %v3582
        %v3584 = vpop.f32.mrf.mxu0
        %v3585 = vadd.f32 0.0, %v3584
        %3586 = vmatmul.bf16.gmra.mxu0 %v3486
        %v3587 = vpop.f32.mrf.mxu0
        %v3588 = vadd.f32 0.0, %v3587
        %v3589 = vpop.f32.mrf.mxu0
        %v3590 = vadd.f32 0.0, %v3589
        %3591 = vdwg.mxu0
        %v3592 = vadd.f32 %v3398, %v3553
        %v3593 = vadd.f32 %v3399, %v3555
        %v3594 = vadd.f32 %v3400, %v3558
        %v3595 = vadd.f32 %v3401, %v3560
        %v3596 = vadd.f32 %v3402, %v3563
        %v3597 = vadd.f32 %v3403, %v3565
        %v3598 = vadd.f32 %v3404, %v3568
        %v3599 = vadd.f32 %v3405, %v3570
        %v3600 = vadd.f32 %v3406, %v3573
        %v3601 = vadd.f32 %v3407, %v3575
        %v3602 = vadd.f32 %v3408, %v3578
        %v3603 = vadd.f32 %v3409, %v3580
        %v3604 = vadd.f32 %v3410, %v3583
        %v3605 = vadd.f32 %v3411, %v3585
        %v3606 = vadd.f32 %v3412, %v3588
        %v3607 = vadd.f32 %v3413, %v3590
        %s3608 = scalar_lea.vmem [#allocation2], 80
        %v3609 = vld [vmem:[%s3608] sm:$0xf]
        %v3610 = vld [vmem:[%s3608 + $0x4] sm:$0xf]
        %v3611 = vld [vmem:[%s3608 + $0x8] sm:$0xf]
        %v3612 = vld [vmem:[%s3608 + $0xc] sm:$0xf]
        %v3613 = vld [vmem:[%s3608 + $0x10] sm:$0xf]
        %v3614 = vld [vmem:[%s3608 + $0x14] sm:$0xf]
        %v3615 = vld [vmem:[%s3608 + $0x18] sm:$0xf]
        %v3616 = vld [vmem:[%s3608 + $0x1c] sm:$0xf]
        %v3617 = vld [vmem:[%s3608 + $0x20] sm:$0xf]
        %v3618 = vld [vmem:[%s3608 + $0x24] sm:$0xf]
        %v3619 = vld [vmem:[%s3608 + $0x28] sm:$0xf]
        %v3620 = vld [vmem:[%s3608 + $0x2c] sm:$0xf]
        %v3621 = vld [vmem:[%s3608 + $0x30] sm:$0xf]
        %v3622 = vld [vmem:[%s3608 + $0x34] sm:$0xf]
        %v3623 = vld [vmem:[%s3608 + $0x38] sm:$0xf]
        %v3624 = vld [vmem:[%s3608 + $0x3c] sm:$0xf]
        %v3625 = vld [vmem:[%s1840] sm:$0xf]
        %v3626 = vld [vmem:[%s1840 + $0x4] sm:$0xf]
        %v3627 = vld [vmem:[%s1840 + $0x8] sm:$0xf]
        %v3628 = vld [vmem:[%s1840 + $0xc] sm:$0xf]
        %v3629 = vld [vmem:[%s1840 + $0x10] sm:$0xf]
        %v3630 = vld [vmem:[%s1840 + $0x14] sm:$0xf]
        %v3631 = vld [vmem:[%s1840 + $0x18] sm:$0xf]
        %v3632 = vld [vmem:[%s1840 + $0x1c] sm:$0xf]
        %v3633 = vld [vmem:[%s1840 + $0x20] sm:$0xf]
        %v3634 = vld [vmem:[%s1840 + $0x24] sm:$0xf]
        %v3635 = vld [vmem:[%s1840 + $0x28] sm:$0xf]
        %v3636 = vld [vmem:[%s1840 + $0x2c] sm:$0xf]
        %v3637 = vld [vmem:[%s1840 + $0x30] sm:$0xf]
        %v3638 = vld [vmem:[%s1840 + $0x34] sm:$0xf]
        %v3639 = vld [vmem:[%s1840 + $0x38] sm:$0xf]
        %v3640 = vld [vmem:[%s1840 + $0x3c] sm:$0xf]
        %v3657 = vunpack.c.l.b16 %v3609
        %v3658 = vunpack.c.l.b16 %v3610
        %v3659 = vunpack.c.l.b16 %v3611
        %v3660 = vunpack.c.l.b16 %v3612
        %v3661 = vunpack.c.l.b16 %v3613
        %v3662 = vunpack.c.l.b16 %v3614
        %v3663 = vunpack.c.l.b16 %v3615
        %v3664 = vunpack.c.l.b16 %v3616
        %v3665 = vunpack.c.l.b16 %v3617
        %v3666 = vunpack.c.l.b16 %v3618
        %v3667 = vunpack.c.l.b16 %v3619
        %v3668 = vunpack.c.l.b16 %v3620
        %v3669 = vunpack.c.l.b16 %v3621
        %v3670 = vunpack.c.l.b16 %v3622
        %v3671 = vunpack.c.l.b16 %v3623
        %v3672 = vunpack.c.l.b16 %v3624
        %v3673 = vpack.c.b16 %v3658, %v3657
        %v3674 = vpack.c.b16 %v3660, %v3659
        %v3675 = vpack.c.b16 %v3662, %v3661
        %v3676 = vpack.c.b16 %v3664, %v3663
        %v3677 = vpack.c.b16 %v3666, %v3665
        %v3678 = vpack.c.b16 %v3668, %v3667
        %v3679 = vpack.c.b16 %v3670, %v3669
        %v3680 = vpack.c.b16 %v3672, %v3671
        %v3705 = vunpack.c.l.b16 %v3625
        %v3706 = vunpack.c.l.b16 %v3626
        %v3707 = vunpack.c.l.b16 %v3627
        %v3708 = vunpack.c.l.b16 %v3628
        %v3709 = vunpack.c.l.b16 %v3629
        %v3710 = vunpack.c.l.b16 %v3630
        %v3711 = vunpack.c.l.b16 %v3631
        %v3712 = vunpack.c.l.b16 %v3632
        %v3713 = vunpack.c.l.b16 %v3633
        %v3714 = vunpack.c.l.b16 %v3634
        %v3715 = vunpack.c.l.b16 %v3635
        %v3716 = vunpack.c.l.b16 %v3636
        %v3717 = vunpack.c.l.b16 %v3637
        %v3718 = vunpack.c.l.b16 %v3638
        %v3719 = vunpack.c.l.b16 %v3639
        %v3720 = vunpack.c.l.b16 %v3640
        %v3721 = vpack.c.b16 %v3706, %v3705
        %v3722 = vpack.c.b16 %v3708, %v3707
        %v3723 = vpack.c.b16 %v3710, %v3709
        %v3724 = vpack.c.b16 %v3712, %v3711
        %v3725 = vpack.c.b16 %v3714, %v3713
        %v3726 = vpack.c.b16 %v3716, %v3715
        %v3727 = vpack.c.b16 %v3718, %v3717
        %v3728 = vpack.c.b16 %v3720, %v3719
        %3737 = vmatpush.bf16.msra.mxu0 %v3728
        %3738 = vmatpush.bf16.msra.mxu0 %v3727
        %3739 = vmatpush.bf16.msra.mxu0 %v3726
        %3740 = vmatpush.bf16.msra.mxu0 %v3725
        %3741 = vmatpush.bf16.msra.mxu0 %v3724
        %3742 = vmatpush.bf16.msra.mxu0 %v3723
        %3743 = vmatpush.bf16.msra.mxu0 %v3722
        %3744 = vmatpush.bf16.msra.mxu0 %v3721
        %3745 = vmatmul.bf16.gmra.mxu0 %v3673
        %v3746 = vpop.f32.mrf.mxu0
        %v3747 = vadd.f32 0.0, %v3746
        %v3748 = vpop.f32.mrf.mxu0
        %v3749 = vadd.f32 0.0, %v3748
        %3750 = vmatmul.bf16.gmra.mxu0 %v3674
        %v3751 = vpop.f32.mrf.mxu0
        %v3752 = vadd.f32 0.0, %v3751
        %v3753 = vpop.f32.mrf.mxu0
        %v3754 = vadd.f32 0.0, %v3753
        %3755 = vmatmul.bf16.gmra.mxu0 %v3675
        %v3756 = vpop.f32.mrf.mxu0
        %v3757 = vadd.f32 0.0, %v3756
        %v3758 = vpop.f32.mrf.mxu0
        %v3759 = vadd.f32 0.0, %v3758
        %3760 = vmatmul.bf16.gmra.mxu0 %v3676
        %v3761 = vpop.f32.mrf.mxu0
        %v3762 = vadd.f32 0.0, %v3761
        %v3763 = vpop.f32.mrf.mxu0
        %v3764 = vadd.f32 0.0, %v3763
        %3765 = vmatmul.bf16.gmra.mxu0 %v3677
        %v3766 = vpop.f32.mrf.mxu0
        %v3767 = vadd.f32 0.0, %v3766
        %v3768 = vpop.f32.mrf.mxu0
        %v3769 = vadd.f32 0.0, %v3768
        %3770 = vmatmul.bf16.gmra.mxu0 %v3678
        %v3771 = vpop.f32.mrf.mxu0
        %v3772 = vadd.f32 0.0, %v3771
        %v3773 = vpop.f32.mrf.mxu0
        %v3774 = vadd.f32 0.0, %v3773
        %3775 = vmatmul.bf16.gmra.mxu0 %v3679
        %v3776 = vpop.f32.mrf.mxu0
        %v3777 = vadd.f32 0.0, %v3776
        %v3778 = vpop.f32.mrf.mxu0
        %v3779 = vadd.f32 0.0, %v3778
        %3780 = vmatmul.bf16.gmra.mxu0 %v3680
        %v3781 = vpop.f32.mrf.mxu0
        %v3782 = vadd.f32 0.0, %v3781
        %v3783 = vpop.f32.mrf.mxu0
        %v3784 = vadd.f32 0.0, %v3783
        %3785 = vdwg.mxu0
        %v3786 = vadd.f32 %v3592, %v3747
        %v3787 = vadd.f32 %v3593, %v3749
        %v3788 = vadd.f32 %v3594, %v3752
        %v3789 = vadd.f32 %v3595, %v3754
        %v3790 = vadd.f32 %v3596, %v3757
        %v3791 = vadd.f32 %v3597, %v3759
        %v3792 = vadd.f32 %v3598, %v3762
        %v3793 = vadd.f32 %v3599, %v3764
        %v3794 = vadd.f32 %v3600, %v3767
        %v3795 = vadd.f32 %v3601, %v3769
        %v3796 = vadd.f32 %v3602, %v3772
        %v3797 = vadd.f32 %v3603, %v3774
        %v3798 = vadd.f32 %v3604, %v3777
        %v3799 = vadd.f32 %v3605, %v3779
        %v3800 = vadd.f32 %v3606, %v3782
        %v3801 = vadd.f32 %v3607, %v3784
        %s3802 = scalar_lea.vmem [#allocation2], 224
        %v3803 = vld [vmem:[%s3802] sm:$0xf]
        %v3804 = vld [vmem:[%s3802 + $0x4] sm:$0xf]
        %v3805 = vld [vmem:[%s3802 + $0x8] sm:$0xf]
        %v3806 = vld [vmem:[%s3802 + $0xc] sm:$0xf]
        %v3807 = vld [vmem:[%s3802 + $0x10] sm:$0xf]
        %v3808 = vld [vmem:[%s3802 + $0x14] sm:$0xf]
        %v3809 = vld [vmem:[%s3802 + $0x18] sm:$0xf]
        %v3810 = vld [vmem:[%s3802 + $0x1c] sm:$0xf]
        %v3811 = vld [vmem:[%s3802 + $0x20] sm:$0xf]
        %v3812 = vld [vmem:[%s3802 + $0x24] sm:$0xf]
        %v3813 = vld [vmem:[%s3802 + $0x28] sm:$0xf]
        %v3814 = vld [vmem:[%s3802 + $0x2c] sm:$0xf]
        %v3815 = vld [vmem:[%s3802 + $0x30] sm:$0xf]
        %v3816 = vld [vmem:[%s3802 + $0x34] sm:$0xf]
        %v3817 = vld [vmem:[%s3802 + $0x38] sm:$0xf]
        %v3818 = vld [vmem:[%s3802 + $0x3c] sm:$0xf]
        %v3819 = vld [vmem:[%s2035] sm:$0xf]
        %v3820 = vld [vmem:[%s2035 + $0x4] sm:$0xf]
        %v3821 = vld [vmem:[%s2035 + $0x8] sm:$0xf]
        %v3822 = vld [vmem:[%s2035 + $0xc] sm:$0xf]
        %v3823 = vld [vmem:[%s2035 + $0x10] sm:$0xf]
        %v3824 = vld [vmem:[%s2035 + $0x14] sm:$0xf]
        %v3825 = vld [vmem:[%s2035 + $0x18] sm:$0xf]
        %v3826 = vld [vmem:[%s2035 + $0x1c] sm:$0xf]
        %v3827 = vld [vmem:[%s2035 + $0x20] sm:$0xf]
        %v3828 = vld [vmem:[%s2035 + $0x24] sm:$0xf]
        %v3829 = vld [vmem:[%s2035 + $0x28] sm:$0xf]
        %v3830 = vld [vmem:[%s2035 + $0x2c] sm:$0xf]
        %v3831 = vld [vmem:[%s2035 + $0x30] sm:$0xf]
        %v3832 = vld [vmem:[%s2035 + $0x34] sm:$0xf]
        %v3833 = vld [vmem:[%s2035 + $0x38] sm:$0xf]
        %v3834 = vld [vmem:[%s2035 + $0x3c] sm:$0xf]
        %v3851 = vunpack.c.l.b16 %v3803
        %v3852 = vunpack.c.l.b16 %v3804
        %v3853 = vunpack.c.l.b16 %v3805
        %v3854 = vunpack.c.l.b16 %v3806
        %v3855 = vunpack.c.l.b16 %v3807
        %v3856 = vunpack.c.l.b16 %v3808
        %v3857 = vunpack.c.l.b16 %v3809
        %v3858 = vunpack.c.l.b16 %v3810
        %v3859 = vunpack.c.l.b16 %v3811
        %v3860 = vunpack.c.l.b16 %v3812
        %v3861 = vunpack.c.l.b16 %v3813
        %v3862 = vunpack.c.l.b16 %v3814
        %v3863 = vunpack.c.l.b16 %v3815
        %v3864 = vunpack.c.l.b16 %v3816
        %v3865 = vunpack.c.l.b16 %v3817
        %v3866 = vunpack.c.l.b16 %v3818
        %v3867 = vpack.c.b16 %v3852, %v3851
        %v3868 = vpack.c.b16 %v3854, %v3853
        %v3869 = vpack.c.b16 %v3856, %v3855
        %v3870 = vpack.c.b16 %v3858, %v3857
        %v3871 = vpack.c.b16 %v3860, %v3859
        %v3872 = vpack.c.b16 %v3862, %v3861
        %v3873 = vpack.c.b16 %v3864, %v3863
        %v3874 = vpack.c.b16 %v3866, %v3865
        %v3899 = vunpack.c.l.b16 %v3819
        %v3900 = vunpack.c.l.b16 %v3820
        %v3901 = vunpack.c.l.b16 %v3821
        %v3902 = vunpack.c.l.b16 %v3822
        %v3903 = vunpack.c.l.b16 %v3823
        %v3904 = vunpack.c.l.b16 %v3824
        %v3905 = vunpack.c.l.b16 %v3825
        %v3906 = vunpack.c.l.b16 %v3826
        %v3907 = vunpack.c.l.b16 %v3827
        %v3908 = vunpack.c.l.b16 %v3828
        %v3909 = vunpack.c.l.b16 %v3829
        %v3910 = vunpack.c.l.b16 %v3830
        %v3911 = vunpack.c.l.b16 %v3831
        %v3912 = vunpack.c.l.b16 %v3832
        %v3913 = vunpack.c.l.b16 %v3833
        %v3914 = vunpack.c.l.b16 %v3834
        %v3915 = vpack.c.b16 %v3900, %v3899
        %v3916 = vpack.c.b16 %v3902, %v3901
        %v3917 = vpack.c.b16 %v3904, %v3903
        %v3918 = vpack.c.b16 %v3906, %v3905
        %v3919 = vpack.c.b16 %v3908, %v3907
        %v3920 = vpack.c.b16 %v3910, %v3909
        %v3921 = vpack.c.b16 %v3912, %v3911
        %v3922 = vpack.c.b16 %v3914, %v3913
        %3931 = vmatpush.bf16.msra.mxu0 %v3922
        %3932 = vmatpush.bf16.msra.mxu0 %v3921
        %3933 = vmatpush.bf16.msra.mxu0 %v3920
        %3934 = vmatpush.bf16.msra.mxu0 %v3919
        %3935 = vmatpush.bf16.msra.mxu0 %v3918
        %3936 = vmatpush.bf16.msra.mxu0 %v3917
        %3937 = vmatpush.bf16.msra.mxu0 %v3916
        %3938 = vmatpush.bf16.msra.mxu0 %v3915
        %3939 = vmatmul.bf16.gmra.mxu0 %v3867
        %v3940 = vpop.f32.mrf.mxu0
        %v3941 = vadd.f32 0.0, %v3940
        %v3942 = vpop.f32.mrf.mxu0
        %v3943 = vadd.f32 0.0, %v3942
        %3944 = vmatmul.bf16.gmra.mxu0 %v3868
        %v3945 = vpop.f32.mrf.mxu0
        %v3946 = vadd.f32 0.0, %v3945
        %v3947 = vpop.f32.mrf.mxu0
        %v3948 = vadd.f32 0.0, %v3947
        %3949 = vmatmul.bf16.gmra.mxu0 %v3869
        %v3950 = vpop.f32.mrf.mxu0
        %v3951 = vadd.f32 0.0, %v3950
        %v3952 = vpop.f32.mrf.mxu0
        %v3953 = vadd.f32 0.0, %v3952
        %3954 = vmatmul.bf16.gmra.mxu0 %v3870
        %v3955 = vpop.f32.mrf.mxu0
        %v3956 = vadd.f32 0.0, %v3955
        %v3957 = vpop.f32.mrf.mxu0
        %v3958 = vadd.f32 0.0, %v3957
        %3959 = vmatmul.bf16.gmra.mxu0 %v3871
        %v3960 = vpop.f32.mrf.mxu0
        %v3961 = vadd.f32 0.0, %v3960
        %v3962 = vpop.f32.mrf.mxu0
        %v3963 = vadd.f32 0.0, %v3962
        %3964 = vmatmul.bf16.gmra.mxu0 %v3872
        %v3965 = vpop.f32.mrf.mxu0
        %v3966 = vadd.f32 0.0, %v3965
        %v3967 = vpop.f32.mrf.mxu0
        %v3968 = vadd.f32 0.0, %v3967
        %3969 = vmatmul.bf16.gmra.mxu0 %v3873
        %v3970 = vpop.f32.mrf.mxu0
        %v3971 = vadd.f32 0.0, %v3970
        %v3972 = vpop.f32.mrf.mxu0
        %v3973 = vadd.f32 0.0, %v3972
        %3974 = vmatmul.bf16.gmra.mxu0 %v3874
        %v3975 = vpop.f32.mrf.mxu0
        %v3976 = vadd.f32 0.0, %v3975
        %v3977 = vpop.f32.mrf.mxu0
        %v3978 = vadd.f32 0.0, %v3977
        %3979 = vdwg.mxu0
        %v3980 = vadd.f32 %v3786, %v3941
        %v3981 = vadd.f32 %v3787, %v3943
        %v3982 = vadd.f32 %v3788, %v3946
        %v3983 = vadd.f32 %v3789, %v3948
        %v3984 = vadd.f32 %v3790, %v3951
        %v3985 = vadd.f32 %v3791, %v3953
        %v3986 = vadd.f32 %v3792, %v3956
        %v3987 = vadd.f32 %v3793, %v3958
        %v3988 = vadd.f32 %v3794, %v3961
        %v3989 = vadd.f32 %v3795, %v3963
        %v3990 = vadd.f32 %v3796, %v3966
        %v3991 = vadd.f32 %v3797, %v3968
        %v3992 = vadd.f32 %v3798, %v3971
        %v3993 = vadd.f32 %v3799, %v3973
        %v3994 = vadd.f32 %v3800, %v3976
        %v3995 = vadd.f32 %v3801, %v3978
        %s3996 = scalar_lea.vmem [#allocation2], 368
        %v3997 = vld [vmem:[%s3996] sm:$0xf]
        %v3998 = vld [vmem:[%s3996 + $0x4] sm:$0xf]
        %v3999 = vld [vmem:[%s3996 + $0x8] sm:$0xf]
        %v4000 = vld [vmem:[%s3996 + $0xc] sm:$0xf]
        %v4001 = vld [vmem:[%s3996 + $0x10] sm:$0xf]
        %v4002 = vld [vmem:[%s3996 + $0x14] sm:$0xf]
        %v4003 = vld [vmem:[%s3996 + $0x18] sm:$0xf]
        %v4004 = vld [vmem:[%s3996 + $0x1c] sm:$0xf]
        %v4005 = vld [vmem:[%s3996 + $0x20] sm:$0xf]
        %v4006 = vld [vmem:[%s3996 + $0x24] sm:$0xf]
        %v4007 = vld [vmem:[%s3996 + $0x28] sm:$0xf]
        %v4008 = vld [vmem:[%s3996 + $0x2c] sm:$0xf]
        %v4009 = vld [vmem:[%s3996 + $0x30] sm:$0xf]
        %v4010 = vld [vmem:[%s3996 + $0x34] sm:$0xf]
        %v4011 = vld [vmem:[%s3996 + $0x38] sm:$0xf]
        %v4012 = vld [vmem:[%s3996 + $0x3c] sm:$0xf]
        %v4013 = vld [vmem:[%s2230] sm:$0xf]
        %v4014 = vld [vmem:[%s2230 + $0x4] sm:$0xf]
        %v4015 = vld [vmem:[%s2230 + $0x8] sm:$0xf]
        %v4016 = vld [vmem:[%s2230 + $0xc] sm:$0xf]
        %v4017 = vld [vmem:[%s2230 + $0x10] sm:$0xf]
        %v4018 = vld [vmem:[%s2230 + $0x14] sm:$0xf]
        %v4019 = vld [vmem:[%s2230 + $0x18] sm:$0xf]
        %v4020 = vld [vmem:[%s2230 + $0x1c] sm:$0xf]
        %v4021 = vld [vmem:[%s2230 + $0x20] sm:$0xf]
        %v4022 = vld [vmem:[%s2230 + $0x24] sm:$0xf]
        %v4023 = vld [vmem:[%s2230 + $0x28] sm:$0xf]
        %v4024 = vld [vmem:[%s2230 + $0x2c] sm:$0xf]
        %v4025 = vld [vmem:[%s2230 + $0x30] sm:$0xf]
        %v4026 = vld [vmem:[%s2230 + $0x34] sm:$0xf]
        %v4027 = vld [vmem:[%s2230 + $0x38] sm:$0xf]
        %v4028 = vld [vmem:[%s2230 + $0x3c] sm:$0xf]
        %v4045 = vunpack.c.l.b16 %v3997
        %v4046 = vunpack.c.l.b16 %v3998
        %v4047 = vunpack.c.l.b16 %v3999
        %v4048 = vunpack.c.l.b16 %v4000
        %v4049 = vunpack.c.l.b16 %v4001
        %v4050 = vunpack.c.l.b16 %v4002
        %v4051 = vunpack.c.l.b16 %v4003
        %v4052 = vunpack.c.l.b16 %v4004
        %v4053 = vunpack.c.l.b16 %v4005
        %v4054 = vunpack.c.l.b16 %v4006
        %v4055 = vunpack.c.l.b16 %v4007
        %v4056 = vunpack.c.l.b16 %v4008
        %v4057 = vunpack.c.l.b16 %v4009
        %v4058 = vunpack.c.l.b16 %v4010
        %v4059 = vunpack.c.l.b16 %v4011
        %v4060 = vunpack.c.l.b16 %v4012
        %v4061 = vpack.c.b16 %v4046, %v4045
        %v4062 = vpack.c.b16 %v4048, %v4047
        %v4063 = vpack.c.b16 %v4050, %v4049
        %v4064 = vpack.c.b16 %v4052, %v4051
        %v4065 = vpack.c.b16 %v4054, %v4053
        %v4066 = vpack.c.b16 %v4056, %v4055
        %v4067 = vpack.c.b16 %v4058, %v4057
        %v4068 = vpack.c.b16 %v4060, %v4059
        %v4093 = vunpack.c.l.b16 %v4013
        %v4094 = vunpack.c.l.b16 %v4014
        %v4095 = vunpack.c.l.b16 %v4015
        %v4096 = vunpack.c.l.b16 %v4016
        %v4097 = vunpack.c.l.b16 %v4017
        %v4098 = vunpack.c.l.b16 %v4018
        %v4099 = vunpack.c.l.b16 %v4019
        %v4100 = vunpack.c.l.b16 %v4020
        %v4101 = vunpack.c.l.b16 %v4021
        %v4102 = vunpack.c.l.b16 %v4022
        %v4103 = vunpack.c.l.b16 %v4023
        %v4104 = vunpack.c.l.b16 %v4024
        %v4105 = vunpack.c.l.b16 %v4025
        %v4106 = vunpack.c.l.b16 %v4026
        %v4107 = vunpack.c.l.b16 %v4027
        %v4108 = vunpack.c.l.b16 %v4028
        %v4109 = vpack.c.b16 %v4094, %v4093
        %v4110 = vpack.c.b16 %v4096, %v4095
        %v4111 = vpack.c.b16 %v4098, %v4097
        %v4112 = vpack.c.b16 %v4100, %v4099
        %v4113 = vpack.c.b16 %v4102, %v4101
        %v4114 = vpack.c.b16 %v4104, %v4103
        %v4115 = vpack.c.b16 %v4106, %v4105
        %v4116 = vpack.c.b16 %v4108, %v4107
        %4125 = vmatpush.bf16.msra.mxu0 %v4116
        %4126 = vmatpush.bf16.msra.mxu0 %v4115
        %4127 = vmatpush.bf16.msra.mxu0 %v4114
        %4128 = vmatpush.bf16.msra.mxu0 %v4113
        %4129 = vmatpush.bf16.msra.mxu0 %v4112
        %4130 = vmatpush.bf16.msra.mxu0 %v4111
        %4131 = vmatpush.bf16.msra.mxu0 %v4110
        %4132 = vmatpush.bf16.msra.mxu0 %v4109
        %4133 = vmatmul.bf16.gmra.mxu0 %v4061
        %v4134 = vpop.f32.mrf.mxu0
        %v4135 = vadd.f32 0.0, %v4134
        %v4136 = vpop.f32.mrf.mxu0
        %v4137 = vadd.f32 0.0, %v4136
        %4138 = vmatmul.bf16.gmra.mxu0 %v4062
        %v4139 = vpop.f32.mrf.mxu0
        %v4140 = vadd.f32 0.0, %v4139
        %v4141 = vpop.f32.mrf.mxu0
        %v4142 = vadd.f32 0.0, %v4141
        %4143 = vmatmul.bf16.gmra.mxu0 %v4063
        %v4144 = vpop.f32.mrf.mxu0
        %v4145 = vadd.f32 0.0, %v4144
        %v4146 = vpop.f32.mrf.mxu0
        %v4147 = vadd.f32 0.0, %v4146
        %4148 = vmatmul.bf16.gmra.mxu0 %v4064
        %v4149 = vpop.f32.mrf.mxu0
        %v4150 = vadd.f32 0.0, %v4149
        %v4151 = vpop.f32.mrf.mxu0
        %v4152 = vadd.f32 0.0, %v4151
        %4153 = vmatmul.bf16.gmra.mxu0 %v4065
        %v4154 = vpop.f32.mrf.mxu0
        %v4155 = vadd.f32 0.0, %v4154
        %v4156 = vpop.f32.mrf.mxu0
        %v4157 = vadd.f32 0.0, %v4156
        %4158 = vmatmul.bf16.gmra.mxu0 %v4066
        %v4159 = vpop.f32.mrf.mxu0
        %v4160 = vadd.f32 0.0, %v4159
        %v4161 = vpop.f32.mrf.mxu0
        %v4162 = vadd.f32 0.0, %v4161
        %4163 = vmatmul.bf16.gmra.mxu0 %v4067
        %v4164 = vpop.f32.mrf.mxu0
        %v4165 = vadd.f32 0.0, %v4164
        %v4166 = vpop.f32.mrf.mxu0
        %v4167 = vadd.f32 0.0, %v4166
        %4168 = vmatmul.bf16.gmra.mxu0 %v4068
        %v4169 = vpop.f32.mrf.mxu0
        %v4170 = vadd.f32 0.0, %v4169
        %v4171 = vpop.f32.mrf.mxu0
        %v4172 = vadd.f32 0.0, %v4171
        %4173 = vdwg.mxu0
        %v4174 = vadd.f32 %v3980, %v4135
        %v4175 = vadd.f32 %v3981, %v4137
        %v4176 = vadd.f32 %v3982, %v4140
        %v4177 = vadd.f32 %v3983, %v4142
        %v4178 = vadd.f32 %v3984, %v4145
        %v4179 = vadd.f32 %v3985, %v4147
        %v4180 = vadd.f32 %v3986, %v4150
        %v4181 = vadd.f32 %v3987, %v4152
        %v4182 = vadd.f32 %v3988, %v4155
        %v4183 = vadd.f32 %v3989, %v4157
        %v4184 = vadd.f32 %v3990, %v4160
        %v4185 = vadd.f32 %v3991, %v4162
        %v4186 = vadd.f32 %v3992, %v4165
        %v4187 = vadd.f32 %v3993, %v4167
        %v4188 = vadd.f32 %v3994, %v4170
        %v4189 = vadd.f32 %v3995, %v4172
        %s4190 = scalar_lea.vmem %s179, 128 [#allocation3]
        %v4191 = vld [vmem:[%s4190] sm:$0xff]
        %v4192 = vld [vmem:[%s4190 + $0x8] sm:$0xff]
        %v4193 = vld [vmem:[%s4190 + $0x10] sm:$0xff]
        %v4194 = vld [vmem:[%s4190 + $0x18] sm:$0xff]
        %v4195 = vld [vmem:[%s4190 + $0x20] sm:$0xff]
        %v4196 = vld [vmem:[%s4190 + $0x28] sm:$0xff]
        %v4197 = vld [vmem:[%s4190 + $0x30] sm:$0xff]
        %v4198 = vld [vmem:[%s4190 + $0x38] sm:$0xff]
        %v4199 = vld [vmem:[%s4190 + $0x40] sm:$0xff]
        %v4200 = vld [vmem:[%s4190 + $0x48] sm:$0xff]
        %v4201 = vld [vmem:[%s4190 + $0x50] sm:$0xff]
        %v4202 = vld [vmem:[%s4190 + $0x58] sm:$0xff]
        %v4203 = vld [vmem:[%s4190 + $0x60] sm:$0xff]
        %v4204 = vld [vmem:[%s4190 + $0x68] sm:$0xff]
        %v4205 = vld [vmem:[%s4190 + $0x70] sm:$0xff]
        %v4206 = vld [vmem:[%s4190 + $0x78] sm:$0xff]
        %v4207 = vadd.f32 %v4191, %v4174
        %v4208 = vadd.f32 %v4192, %v4175
        %v4209 = vadd.f32 %v4193, %v4176
        %v4210 = vadd.f32 %v4194, %v4177
        %v4211 = vadd.f32 %v4195, %v4178
        %v4212 = vadd.f32 %v4196, %v4179
        %v4213 = vadd.f32 %v4197, %v4180
        %v4214 = vadd.f32 %v4198, %v4181
        %v4215 = vadd.f32 %v4199, %v4182
        %v4216 = vadd.f32 %v4200, %v4183
        %v4217 = vadd.f32 %v4201, %v4184
        %v4218 = vadd.f32 %v4202, %v4185
        %v4219 = vadd.f32 %v4203, %v4186
        %v4220 = vadd.f32 %v4204, %v4187
        %v4221 = vadd.f32 %v4205, %v4188
        %v4222 = vadd.f32 %v4206, %v4189
        %v4223 = vld [vmem:[%s2] sm:$0x1]
        %v4225 = vperm.slane %v4223, 0
        %v4227 = vadd.f32 %v4207, %v4225
        %v4228 = vadd.f32 %v4208, %v4225
        %v4229 = vadd.f32 %v4209, %v4225
        %v4230 = vadd.f32 %v4210, %v4225
        %v4231 = vadd.f32 %v4211, %v4225
        %v4232 = vadd.f32 %v4212, %v4225
        %v4233 = vadd.f32 %v4213, %v4225
        %v4234 = vadd.f32 %v4214, %v4225
        %v4235 = vadd.f32 %v4215, %v4225
        %v4236 = vadd.f32 %v4216, %v4225
        %v4237 = vadd.f32 %v4217, %v4225
        %v4238 = vadd.f32 %v4218, %v4225
        %v4239 = vadd.f32 %v4219, %v4225
        %v4240 = vadd.f32 %v4220, %v4225
        %v4241 = vadd.f32 %v4221, %v4225
        %v4242 = vadd.f32 %v4222, %v4225
        %s4243 = scalar_lea.vmem %s207, 128 [#allocation8]
        %4244 = vst [vmem:[%s4243] sm:$0xff] %v4227
        %4245 = vst [vmem:[%s4243 + $0x8] sm:$0xff] %v4228
        %4246 = vst [vmem:[%s4243 + $0x10] sm:$0xff] %v4229
        %4247 = vst [vmem:[%s4243 + $0x18] sm:$0xff] %v4230
        %4248 = vst [vmem:[%s4243 + $0x20] sm:$0xff] %v4231
        %4249 = vst [vmem:[%s4243 + $0x28] sm:$0xff] %v4232
        %4250 = vst [vmem:[%s4243 + $0x30] sm:$0xff] %v4233
        %4251 = vst [vmem:[%s4243 + $0x38] sm:$0xff] %v4234
        %4252 = vst [vmem:[%s4243 + $0x40] sm:$0xff] %v4235
        %4253 = vst [vmem:[%s4243 + $0x48] sm:$0xff] %v4236
        %4254 = vst [vmem:[%s4243 + $0x50] sm:$0xff] %v4237
        %4255 = vst [vmem:[%s4243 + $0x58] sm:$0xff] %v4238
        %4256 = vst [vmem:[%s4243 + $0x60] sm:$0xff] %v4239
        %4257 = vst [vmem:[%s4243 + $0x68] sm:$0xff] %v4240
        %4258 = vst [vmem:[%s4243 + $0x70] sm:$0xff] %v4241
        %4259 = vst [vmem:[%s4243 + $0x78] sm:$0xff] %v4242
        %s4260 = sand.u32 %s97, 1
        %s4261 = scalar_lea.sflag [#allocation5], %s4260
        %s4262 = sand.u32 %s97, 1
        %s4263 = smul.addr %s4262, 256
        %s4264 = scalar_lea.vmem [#allocation8], %s4263
        // Predicated region
        $region41: #{tpu_custom_call.1} parent=31 // pred_check
          %p4265 = pneg %p107
        $region42: #{tpu_custom_call.1} parent=31 // pred_check_branch
          %4267 = sbr.rel (%p4265) target = $region44
        $region43: #{tpu_custom_call.1} parent=31 // pred_region
          %4269 = vsyncadd %s4261, 0
          %s4270 = smul.addr %s21, 32
          %s4271 = smul.addr %s4270, 8
          %s4272 = scalar_lea.hbm %s3, %s4271
          %s4273 = sshll.u32 %s4264, 4
          %s4274 = int_to_ptr.vmem [resolvable:$true] %s4273
          %s4275 = sshll.u32 %s4272, 4
          %s4276 = int_to_ptr.hbm [resolvable:$true] %s4275
          %4281 = dma.vmem_to_hbm [thread:$0]  %s4274, 4096, %s4276, %s4261, 128, 128, 8
        $region44: #{tpu_custom_call.1} parent=31 // pred_fallthru
          _
      $region32: #{tpu_custom_call.1} parent=5 // pred_fallthru
        _
      %p4282 = scmp.le.s32.totalorder 2, %s16
      // Predicated region
      $region45: #{tpu_custom_call.1} parent=5 // pred_check
        %p4283 = pneg %p4282
      $region46: #{tpu_custom_call.1} parent=5 // pred_check_branch
        %4285 = sbr.rel (%p4283) target = $region48
      $region47: #{tpu_custom_call.1} parent=5 // pred_region
        %s4286 = ssub.s32 %s16, 2
        // Predicated region
        $region49: #{tpu_custom_call.1} parent=47 // pred_check
          %p4287 = pneg %p113
        $region50: #{tpu_custom_call.1} parent=47 // pred_check_branch
          %4289 = sbr.rel (%p4287) target = $region52
        $region51: #{tpu_custom_call.1} parent=47 // pred_region
          %s4290 = sand.u32 %s98, 1
          %s4291 = scalar_lea.sflag [#allocation5], %s4290
          %s4292 = sand.u32 %s98, 1
          %s4293 = smul.addr %s4292, 256
          %s4294 = scalar_lea.vmem [#allocation8], %s4293
          %4296 = dma.done %s4291, 4096
        $region52: #{tpu_custom_call.1} parent=47 // pred_fallthru
          _
      $region48: #{tpu_custom_call.1} parent=5 // pred_fallthru
        _
    $region6: #{tpu_custom_call.1} parent=1 // loop_footer
      %s20 = sadd.s32 1, %s16
    $region7: #{tpu_custom_call.1} parent=1 // loop_footer_branch
      %15 = sbr.rel target = $region3
    $region8: #{tpu_custom_call.1} parent=1 // loop_exit
      _
    %4297 = vsyncpa [#allocation4], 1
    %s4298 = scalar_lea.sflag [#allocation4], 1
    %4299 = vsyncpa %s4298, 1
    %4300 = vsyncpa [#allocation7], 1
    %4301 = vsyncpa [#allocation5], 1
    %s4302 = scalar_lea.sflag [#allocation5], 1
    %4303 = vsyncpa %s4302, 1

</llo_original>
